<compile_context>
chip_gen: v7x
topology: tpu7x:2x2x1
jax: 0.10.0
libtpu: 0.0.40
codegen_flags: <defaults>
</compile_context>

<pallas_src>
import functools

import jax
import jax.numpy as jnp
from jax.experimental import pallas as pl
from jax.experimental.pallas import tpu as pltpu


# ----------------------------------------------------------------------------- helpers
def _silu(x):
    return x * jax.nn.sigmoid(x)


# ----------------------------------------------------------------------------- kernel
def _fused_cspnet_kernel(emb_ref, sincos_ref, lat0_ref, wle_ref,
                         lnw_ref, lnb_ref,
                         w1ij_ref, w1sc_ref, b1_ref,
                         w2_ref, b2_ref,
                         wn1_ref, bn1_ref,
                         wn2_ref, bn2_ref,
                         flnw_ref, flnb_ref, wc_ref,
                         o_ref, hfeat_ref, *, gb, n_per, hidden):
    """One (graph_block, layer) step of the fused dock stack."""
    f32 = jnp.float32
    l = pl.program_id(1)
    n_nodes = gb * n_per

    # ---- layer 0: atom_latent_emb + SiLU (time embedding folded into lat0) ----
    @pl.when(l == 0)
    def _():
        y = jnp.dot(emb_ref[...], wle_ref[...], preferred_element_type=f32)
        hfeat_ref[...] = _silu(y + lat0_ref[...])

    x = hfeat_ref[...]                                  # (n_nodes, H) f32 residual stream

    # ---- LayerNorm (f32, eps=1e-5, biased variance — torch default) ----
    mu = jnp.mean(x, axis=-1, keepdims=True)
    var = jnp.mean(jnp.square(x - mu), axis=-1, keepdims=True)
    h = (x - mu) * jax.lax.rsqrt(var + 1e-5) * lnw_ref[0] + lnb_ref[0]
    h_bf = h.astype(jnp.bfloat16)

    # ---- edge MLP linear 1: merged [hi|hj] weight, broadcast-add edge formation ----
    a = jnp.dot(h_bf, w1ij_ref[0], preferred_element_type=f32)          # (n_nodes, 2H)
    b1g = b1_ref[0, 0]                                                  # (gb, H): b1 + lat@W1_lat
    a_i = a[:, :hidden].reshape(gb, n_per, hidden) + b1g[:, None, :]    # bias folded at src level
    a_j = a[:, hidden:].reshape(gb, n_per, hidden)
    sc = jnp.dot(sincos_ref[...], w1sc_ref[0], preferred_element_type=f32)  # (E_blk, H)
    e_pre = (a_i[:, :, None, :] + a_j[:, None, :, :]
             + sc.reshape(gb, n_per, n_per, hidden))                    # (gb, src, dst, H)
    e1 = _silu(e_pre).astype(jnp.bfloat16).reshape(gb * n_per * n_per, hidden)

    # ---- edge MLP linear 2 ----
    e2 = jnp.dot(e1, w2_ref[0], preferred_element_type=f32) + b2_ref[0]
    e2 = _silu(e2)                                                      # (E_blk, H) f32

    # ---- scatter(reduce='mean', index=edge_src): sum over dst axis, / n_per ----
    agg = jnp.sum(e2.reshape(gb, n_per, n_per, hidden), axis=2) * (1.0 / n_per)
    agg = agg.reshape(n_nodes, hidden)

    # ---- node MLP: lane-concat [h | agg] against one (2H, H) weight ----
    hin = jnp.concatenate([h_bf, agg.astype(jnp.bfloat16)], axis=-1)    # (n_nodes, 2H)
    n1 = _silu(jnp.dot(hin, wn1_ref[0], preferred_element_type=f32) + bn1_ref[0])
    n2 = _silu(jnp.dot(n1.astype(jnp.bfloat16), wn2_ref[0],
                       preferred_element_type=f32) + bn2_ref[0])

    # residual (stays in VMEM scratch across the layer axis)
    hfeat_ref[...] = x + n2

    # ---- last layer: final LayerNorm + coord_out (kept f32), lane-padded output ----
    @pl.when(l == pl.num_programs(1) - 1)
    def _():
        xf = hfeat_ref[...]
        mu_f = jnp.mean(xf, axis=-1, keepdims=True)
        var_f = jnp.mean(jnp.square(xf - mu_f), axis=-1, keepdims=True)
        hf = (xf - mu_f) * jax.lax.rsqrt(var_f + 1e-5) * flnw_ref[...] + flnb_ref[...]
        o_ref[...] = jnp.dot(hf, wc_ref[...], preferred_element_type=f32)


# ----------------------------------------------------------------------------- wrapper
def fused_cspnet(emb, sincos, lat_bias0, b1_eff, params, *, n_per, graphs_per_block):
    N, H = emb.shape
    B = N // n_per
    ngb = B // graphs_per_block
    L = params["ln_w"].shape[0]
    sc_dim = sincos.shape[-1]
    cpad = params["coord_w_pad"].shape[1]
    nb_nodes = graphs_per_block * n_per
    nb_edges = graphs_per_block * n_per * n_per

    def cspec(shape):  # fully constant block (weights resident across the grid)
        nd = len(shape)
        return pl.BlockSpec(shape, lambda g, l, _n=nd: (0,) * _n)

    def lspec(arr):    # per-layer stacked weight, constant over the graph axis
        nd = arr.ndim
        return pl.BlockSpec((1,) + arr.shape[1:],
                            lambda g, l, _n=nd: (l,) + (0,) * (_n - 1))

    kernel = functools.partial(_fused_cspnet_kernel, gb=graphs_per_block,
                               n_per=n_per, hidden=H)

    return pl.pallas_call(
        kernel,
        grid=(ngb, L),  # layer axis innermost -> node features carried in scratch
        in_specs=[
            pl.BlockSpec((nb_nodes, H), lambda g, l: (g, 0)),        # node embeddings
            pl.BlockSpec((nb_edges, sc_dim), lambda g, l: (g, 0)),   # [sin|cos] dist feats
            cspec((1, H)),                                           # folded time/latent bias
            cspec((H, H)),                                           # atom_latent_emb weight
            lspec(params["ln_w"]), lspec(params["ln_b"]),            # per-layer LayerNorm
            lspec(params["w1_ij"]), lspec(params["w1_sc"]),          # edge W1 merged blocks
            pl.BlockSpec((1, 1, graphs_per_block, H),
                         lambda g, l: (l, g, 0, 0)),                 # b1 + lattice fold
            lspec(params["w2"]), lspec(params["b2"]),                # edge W2
            lspec(params["wn1"]), lspec(params["bn1"]),              # node W1 (merged [h|agg])
            lspec(params["wn2"]), lspec(params["bn2"]),              # node W2
            cspec((1, H)), cspec((1, H)),                            # final LayerNorm
            cspec((H, cpad)),                                        # coord_out (f32, padded)
        ],
        out_specs=pl.BlockSpec((nb_nodes, cpad), lambda g, l: (g, 0)),
        out_shape=jax.ShapeDtypeStruct((N, cpad), jnp.float32),
        scratch_shapes=[pltpu.VMEM((nb_nodes, H), jnp.float32)],     # residual stream
        compiler_params=pltpu.CompilerParams(
            dimension_semantics=("parallel", "arbitrary")),
    )(emb, sincos, lat_bias0, params["latent_w_emb"],
      params["ln_w"], params["ln_b"],
      params["w1_ij"], params["w1_sc"], b1_eff,
      params["w2"], params["b2"],
      params["wn1"], params["bn1"],
      params["wn2"], params["bn2"],
      params["final_ln_w"], params["final_ln_b"], params["coord_w_pad"])


# ----------------------------------------------------------------------------- params
def init_params(key, hidden, time_dim, num_layers, num_freqs, n_space=3, vocab=119,
                coord_pad=128):
    """Random params, laid out for the fused kernel.

    Weight-import mapping from PyTorch (documented so a real checkpoint can be
    loaded): edge_mlp[0].weight (H, 2H+6+2*fdim) splits column-wise into
    [hi | hj | lattice(6) | sin | cos]; we store w1_ij = [W_hi^T | W_hj^T] (H,2H),
    w1_sc = [W_sin^T ; W_cos^T] (2*fdim,H), w1_lat = W_lat^T (6,H) (folded into
    b1_eff outside the kernel).  node_mlp[0].weight splits into [h | agg] and is
    stored stacked along the input axis as wn1 (2H,H).
    """
    fdim = n_space * num_freqs
    edge_in = 2 * hidden + 6 + 2 * fdim
    node_in = 2 * hidden
    L = num_layers

    def uni(k, shape, fan_in, dtype=jnp.bfloat16):
        b = 1.0 / float(max(fan_in, 1)) ** 0.5
        return jax.random.uniform(k, shape, jnp.float32, -b, b).astype(dtype)

    ki = iter(jax.random.split(key, 20))
    params = {
        "node_emb": jax.random.normal(next(ki), (vocab, hidden), jnp.float32),
        "time_w": uni(next(ki), (1, time_dim), 1, jnp.float32),         # Linear(1, Td, bias=False)
        "latent_w_emb": uni(next(ki), (hidden, hidden), hidden + time_dim),
        "latent_w_t": uni(next(ki), (time_dim, hidden), hidden + time_dim, jnp.float32),
        "latent_b": uni(next(ki), (1, hidden), hidden + time_dim, jnp.float32),
        "final_ln_w": jnp.ones((1, hidden), jnp.float32),
        "final_ln_b": jnp.zeros((1, hidden), jnp.float32),
        # per-layer stacks (leading L axis) — forward only uses dock_layer_* stack
        "ln_w": jnp.ones((L, 1, hidden), jnp.float32),
        "ln_b": jnp.zeros((L, 1, hidden), jnp.float32),
        "w1_ij": uni(next(ki), (L, hidden, 2 * hidden), edge_in),       # [hi | hj] out-concat
        "w1_sc": uni(next(ki), (L, 2 * fdim, hidden), edge_in),         # [sin | cos] in-concat
        "w1_lat": uni(next(ki), (L, 6, hidden), edge_in, jnp.float32),  # folded into b1_eff
        "b1": uni(next(ki), (L, 1, hidden), edge_in, jnp.float32),
        "w2": uni(next(ki), (L, hidden, hidden), hidden),
        "b2": uni(next(ki), (L, 1, hidden), hidden, jnp.float32),
        "wn1": uni(next(ki), (L, 2 * hidden, hidden), node_in),         # [h | agg] in-concat
        "bn1": uni(next(ki), (L, 1, hidden), node_in, jnp.float32),
        "wn2": uni(next(ki), (L, hidden, hidden), hidden),
        "bn2": uni(next(ki), (L, 1, hidden), hidden, jnp.float32),
    }
    coord_w = uni(next(ki), (hidden, n_space), hidden, jnp.float32)     # Linear(H, 3, bias=False)
    params["coord_w_pad"] = jnp.pad(coord_w, ((0, 0), (0, coord_pad - n_space)))
    return params


# ----------------------------------------------------------------------------- forward
def projected_cspnet_forward(params, x_flat, t, atom_types, lattices, *,
                             n_per, num_freqs, graphs_per_block):
    """ProjectedConjugatedCSPNet.forward (self_cond=False, cond=None)."""
    n_space = 3
    B = x_flat.shape[0]
    H = params["node_emb"].shape[1]
    L = params["ln_w"].shape[0]
    assert B % graphs_per_block == 0
    ngb = B // graphs_per_block

    # manifold.projx (FlatTorus01): wrap coordinates into [0, 1)
    x_flat = jnp.mod(x_flat.astype(jnp.float32), 1.0)
    frac = x_flat.reshape(B, n_per, n_space)            # flatrep -> georep (equal atoms/graph)

    # ---- gen_edges ----
    # TODO(synk): reference forward uses edge_style='knn' (radius_graph_pbc +
    # reorder_symmetric_edges) — dynamic PBC graph construction has no clean
    # Pallas equivalent; the reference's 'fc' path (dense_to_sparse(block_diag(
    # ones)), src-major, self-edges) with torus logmap is used instead, so the
    # scatter-mean degree is exactly n_per.
    frac_diff = jnp.mod(frac[:, None, :, :] - frac[:, :, None, :] + 0.5, 1.0) - 0.5
    freqs = 2.0 * jnp.pi * jnp.arange(num_freqs, dtype=jnp.float32)
    phase = (frac_diff[..., None] * freqs).reshape(B * n_per * n_per, n_space * num_freqs)
    # SinusoidsEmbedding: emb = cat(sin, cos); precomputed once, VMEM-resident per block.
    sincos = jnp.concatenate([jnp.sin(phase), jnp.cos(phase)], axis=-1).astype(jnp.bfloat16)

    # Fold lattice into a per-(layer, graph) effective edge bias (tiny XLA matmul).
    lat = lattices.reshape(B, 6).astype(jnp.float32)
    b1_eff = jnp.einsum("gk,lkh->lgh", lat, params["w1_lat"]) + params["b1"]   # (L, B, H)
    b1_eff = b1_eff.reshape(L, ngb, graphs_per_block, H)

    # Fold time embedding + atom_latent_emb bias into one (1, H) constant (f32).
    # TODO(synk): scalar t is broadcast to every graph (matches the reference's
    # expand); per-graph timesteps would need a (B,) input indexed per block.
    t_row = t.astype(jnp.float32).reshape(1, 1) * params["time_w"]             # (1, Td)
    lat_bias0 = t_row @ params["latent_w_t"] + params["latent_b"]              # (1, H)

    # node embedding lookup (glue gather)
    emb = params["node_emb"][atom_types].astype(jnp.bfloat16)                  # (N, H)

    # single fused Pallas kernel: latent emb + L CSP layers + final LN + coord head
    coord_pad = fused_cspnet(emb, sincos, lat_bias0, b1_eff, params,
                             n_per=n_per, graphs_per_block=graphs_per_block)
    coord = coord_pad[:, :n_space]                                             # (N, 3)

    # georep -> flatrep; FlatTorus01.proju is identity, metric_normalized=False.
    return coord.reshape(B, n_per * n_space)


# ----------------------------------------------------------------------------- main
if __name__ == "__main__":
    B, n_per, gpb = 8, 8, 4            # 8 graphs x 8 atoms; 4 graphs/block
    hidden, time_dim = 128, 128        # lane-dense feature widths
    num_layers, num_freqs = 3, 4       # dis_dim = 4 * 2 * 3 = 24

    key = jax.random.PRNGKey(0)
    kp, kx, kt, ka, kl = jax.random.split(key, 5)

    params = init_params(kp, hidden, time_dim, num_layers, num_freqs)

    # inputs: flat torus rep (B, n_per*3), time (1,1), atom types (N,), lattices (B,6)
    x = jax.random.uniform(kx, (B, n_per * 3), jnp.float32) * 2.0 - 0.5   # exercise projx wrap
    t = jax.random.uniform(kt, (1, 1), jnp.float32)
    atom_types = jax.random.randint(ka, (B * n_per,), 1, 100)
    lattices = jnp.concatenate(
        [jax.random.uniform(kl, (B, 3), jnp.float32) * 5.0 + 3.0,
         jnp.full((B, 3), 90.0, jnp.float32)], axis=1)

    fwd = jax.jit(projected_cspnet_forward,
                  static_argnames=("n_per", "num_freqs", "graphs_per_block"))
    v = fwd(params, x, t, atom_types, lattices,
            n_per=n_per, num_freqs=num_freqs, graphs_per_block=gpb)
    v = jax.block_until_ready(v)
    assert v.shape == (B, n_per * 3) and v.dtype == jnp.float32
    print("KERNEL_OK")
</pallas_src>

<mosaic_0001>
module attributes {stable_mosaic.version = 11 : i64} {
  func.func @_fused_cspnet_kernel(%arg0: i32, %arg1: i32, %arg2: memref<32x128xbf16, #tpu.memory_space<vmem>>, %arg3: memref<256x24xbf16, #tpu.memory_space<vmem>>, %arg4: memref<1x128xf32, #tpu.memory_space<vmem>>, %arg5: memref<128x128xbf16, #tpu.memory_space<vmem>>, %arg6: memref<1x1x128xf32, #tpu.memory_space<vmem>>, %arg7: memref<1x1x128xf32, #tpu.memory_space<vmem>>, %arg8: memref<1x128x256xbf16, #tpu.memory_space<vmem>>, %arg9: memref<1x24x128xbf16, #tpu.memory_space<vmem>>, %arg10: memref<1x1x4x128xf32, #tpu.memory_space<vmem>>, %arg11: memref<1x128x128xbf16, #tpu.memory_space<vmem>>, %arg12: memref<1x1x128xf32, #tpu.memory_space<vmem>>, %arg13: memref<1x256x128xbf16, #tpu.memory_space<vmem>>, %arg14: memref<1x1x128xf32, #tpu.memory_space<vmem>>, %arg15: memref<1x128x128xbf16, #tpu.memory_space<vmem>>, %arg16: memref<1x1x128xf32, #tpu.memory_space<vmem>>, %arg17: memref<1x128xf32, #tpu.memory_space<vmem>>, %arg18: memref<1x128xf32, #tpu.memory_space<vmem>>, %arg19: memref<128x128xf32, #tpu.memory_space<vmem>>, %arg20: memref<32x128xf32, #tpu.memory_space<vmem>>, %arg21: memref<32x128xf32, #tpu.memory_space<vmem>>) attributes {dimension_semantics = [#tpu.dimension_semantics<parallel>, #tpu.dimension_semantics<arbitrary>], iteration_bounds = array<i64: 2, 3>, scalar_prefetch = 0 : i64, scratch_operands = 1 : i64, tpu.core_type = #tpu.core_type<tc>, window_params = [{transform_indices = @transform_0, window_bounds = array<i64: 32, 128>}, {transform_indices = @transform_1, window_bounds = array<i64: 256, 24>}, {pipeline_mode = #tpu.pipeline_mode<synchronous>, transform_indices = @transform_2, window_bounds = array<i64: 1, 128>}, {pipeline_mode = #tpu.pipeline_mode<synchronous>, transform_indices = @transform_3, window_bounds = array<i64: 128, 128>}, {transform_indices = @transform_4, window_bounds = array<i64: 1, 1, 128>}, {transform_indices = @transform_5, window_bounds = array<i64: 1, 1, 128>}, {transform_indices = @transform_6, window_bounds = array<i64: 1, 128, 256>}, {transform_indices = @transform_7, window_bounds = array<i64: 1, 24, 128>}, {transform_indices = @transform_8, window_bounds = array<i64: 1, 1, 4, 128>}, {transform_indices = @transform_9, window_bounds = array<i64: 1, 128, 128>}, {transform_indices = @transform_10, window_bounds = array<i64: 1, 1, 128>}, {transform_indices = @transform_11, window_bounds = array<i64: 1, 256, 128>}, {transform_indices = @transform_12, window_bounds = array<i64: 1, 1, 128>}, {transform_indices = @transform_13, window_bounds = array<i64: 1, 128, 128>}, {transform_indices = @transform_14, window_bounds = array<i64: 1, 1, 128>}, {pipeline_mode = #tpu.pipeline_mode<synchronous>, transform_indices = @transform_15, window_bounds = array<i64: 1, 128>}, {pipeline_mode = #tpu.pipeline_mode<synchronous>, transform_indices = @transform_16, window_bounds = array<i64: 1, 128>}, {pipeline_mode = #tpu.pipeline_mode<synchronous>, transform_indices = @transform_17, window_bounds = array<i64: 128, 128>}, {transform_indices = @transform_18, window_bounds = array<i64: 32, 128>}]} {
    %c0_i32 = arith.constant 0 : i32
    %0 = arith.cmpi eq, %arg1, %c0_i32 : i32
    %1 = arith.extui %0 : i1 to i32
    %c0_i32_0 = arith.constant 0 : i32
    %2 = arith.cmpi ne, %1, %c0_i32_0 : i32
    scf.if %2 {
      %c0_56 = arith.constant 0 : index
      %c0_57 = arith.constant 0 : index
      %114 = vector.load %arg2[%c0_56, %c0_57] : memref<32x128xbf16, #tpu.memory_space<vmem>>, vector<32x128xbf16>
      %c0_58 = arith.constant 0 : index
      %c0_59 = arith.constant 0 : index
      %115 = vector.load %arg5[%c0_58, %c0_59] : memref<128x128xbf16, #tpu.memory_space<vmem>>, vector<128x128xbf16>
      %cst_60 = arith.constant dense<0.000000e+00> : vector<32x128xf32>
      %116 = tpu.matmul %114, %115, %cst_60 {dimension_numbers = #tpu.dot_dimension_numbers<[1], [0], [0], [1], [0, 0, 1, 1], [], []>} : vector<32x128xbf16>, vector<128x128xbf16>, vector<32x128xf32> -> vector<32x128xf32>
      %c0_61 = arith.constant 0 : index
      %c0_62 = arith.constant 0 : index
      %117 = vector.load %arg4[%c0_61, %c0_62] : memref<1x128xf32, #tpu.memory_space<vmem>>, vector<1x128xf32>
      %118 = vector.broadcast %117 : vector<1x128xf32> to vector<32x128xf32>
      %119 = arith.addf %116, %118 : vector<32x128xf32>
      %120 = arith.negf %119 : vector<32x128xf32>
      %121 = math.exp %120 : vector<32x128xf32>
      %cst_63 = arith.constant 1.000000e+00 : f32
      %122 = vector.broadcast %cst_63 : f32 to vector<32x128xf32>
      %123 = arith.addf %122, %121 : vector<32x128xf32>
      %124 = arith.divf %122, %123 : vector<32x128xf32>
      %125 = arith.mulf %119, %124 : vector<32x128xf32>
      %c0_64 = arith.constant 0 : index
      %c0_65 = arith.constant 0 : index
      %126 = vector.load %arg21[%c0_64, %c0_65] : memref<32x128xf32, #tpu.memory_space<vmem>>, vector<32x128xf32>
      tpu.vector_store %arg21[%c0_64, %c0_65], %125 {strides = array<i32>} : memref<32x128xf32, #tpu.memory_space<vmem>>, vector<32x128xf32>,
    } else {
    }
    %c0 = arith.constant 0 : index
    %c0_1 = arith.constant 0 : index
    %3 = vector.load %arg21[%c0, %c0_1] : memref<32x128xf32, #tpu.memory_space<vmem>>, vector<32x128xf32>
    %cst = arith.constant dense<0.000000e+00> : vector<32xf32>
    %4 = vector.multi_reduction <add>, %3, %cst [1] : vector<32x128xf32> to vector<32xf32>
    %5 = vector.shape_cast %4 : vector<32xf32> to vector<32x1xf32>
    %cst_2 = arith.constant 1.280000e+02 : f32
    %6 = vector.broadcast %cst_2 : f32 to vector<32x1xf32>
    %7 = arith.divf %5, %6 : vector<32x1xf32>
    %8 = vector.broadcast %7 : vector<32x1xf32> to vector<32x128xf32>
    %9 = arith.subf %3, %8 : vector<32x128xf32>
    %10 = arith.mulf %9, %9 : vector<32x128xf32>
    %cst_3 = arith.constant dense<0.000000e+00> : vector<32xf32>
    %11 = vector.multi_reduction <add>, %10, %cst_3 [1] : vector<32x128xf32> to vector<32xf32>
    %12 = vector.shape_cast %11 : vector<32xf32> to vector<32x1xf32>
    %cst_4 = arith.constant 1.280000e+02 : f32
    %13 = vector.broadcast %cst_4 : f32 to vector<32x1xf32>
    %14 = arith.divf %12, %13 : vector<32x1xf32>
    %15 = vector.broadcast %7 : vector<32x1xf32> to vector<32x128xf32>
    %16 = arith.subf %3, %15 : vector<32x128xf32>
    %cst_5 = arith.constant 9.99999974E-6 : f32
    %17 = vector.broadcast %cst_5 : f32 to vector<32x1xf32>
    %18 = arith.addf %14, %17 : vector<32x1xf32>
    %19 = math.rsqrt %18 : vector<32x1xf32>
    %20 = vector.broadcast %19 : vector<32x1xf32> to vector<32x128xf32>
    %21 = arith.mulf %16, %20 : vector<32x128xf32>
    %c0_6 = arith.constant 0 : index
    %c0_7 = arith.constant 0 : index
    %c0_8 = arith.constant 0 : index
    %22 = vector.load %arg6[%c0_6, %c0_7, %c0_8] : memref<1x1x128xf32, #tpu.memory_space<vmem>>, vector<1x1x128xf32>
    %23 = vector.shape_cast %22 : vector<1x1x128xf32> to vector<1x128xf32>
    %24 = vector.broadcast %23 : vector<1x128xf32> to vector<32x128xf32>
    %25 = arith.mulf %21, %24 : vector<32x128xf32>
    %c0_9 = arith.constant 0 : index
    %c0_10 = arith.constant 0 : index
    %c0_11 = arith.constant 0 : index
    %26 = vector.load %arg7[%c0_9, %c0_10, %c0_11] : memref<1x1x128xf32, #tpu.memory_space<vmem>>, vector<1x1x128xf32>
    %27 = vector.shape_cast %26 : vector<1x1x128xf32> to vector<1x128xf32>
    %28 = vector.broadcast %27 : vector<1x128xf32> to vector<32x128xf32>
    %29 = arith.addf %25, %28 : vector<32x128xf32>
    %30 = arith.truncf %29 : vector<32x128xf32> to vector<32x128xbf16>
    %c0_12 = arith.constant 0 : index
    %c0_13 = arith.constant 0 : index
    %c0_14 = arith.constant 0 : index
    %31 = vector.load %arg8[%c0_12, %c0_13, %c0_14] : memref<1x128x256xbf16, #tpu.memory_space<vmem>>, vector<1x128x256xbf16>
    %32 = vector.shape_cast %31 : vector<1x128x256xbf16> to vector<128x256xbf16>
    %cst_15 = arith.constant dense<0.000000e+00> : vector<32x256xf32>
    %33 = tpu.matmul %30, %32, %cst_15 {dimension_numbers = #tpu.dot_dimension_numbers<[1], [0], [0], [1], [0, 0, 1, 1], [], []>} : vector<32x128xbf16>, vector<128x256xbf16>, vector<32x256xf32> -> vector<32x256xf32>
    %c0_16 = arith.constant 0 : index
    %c0_17 = arith.constant 0 : index
    %c0_18 = arith.constant 0 : index
    %c0_19 = arith.constant 0 : index
    %34 = vector.load %arg10[%c0_16, %c0_17, %c0_18, %c0_19] : memref<1x1x4x128xf32, #tpu.memory_space<vmem>>, vector<1x1x4x128xf32>
    %35 = vector.shape_cast %34 : vector<1x1x4x128xf32> to vector<4x128xf32>
    %36 = vector.extract_strided_slice %33 {offsets = [0, 0], sizes = [32, 128], strides = [1, 1]} : vector<32x256xf32> to vector<32x128xf32>
    %37 = vector.shape_cast %36 : vector<32x128xf32> to vector<4x8x128xf32>
    %38 = vector.shape_cast %35 : vector<4x128xf32> to vector<4x1x128xf32>
    %39 = vector.broadcast %38 : vector<4x1x128xf32> to vector<4x8x128xf32>
    %40 = arith.addf %37, %39 : vector<4x8x128xf32>
    %41 = vector.extract_strided_slice %33 {offsets = [0, 128], sizes = [32, 128], strides = [1, 1]} : vector<32x256xf32> to vector<32x128xf32>
    %42 = vector.shape_cast %41 : vector<32x128xf32> to vector<4x8x128xf32>
    %c0_20 = arith.constant 0 : index
    %c0_21 = arith.constant 0 : index
    %43 = vector.load %arg3[%c0_20, %c0_21] : memref<256x24xbf16, #tpu.memory_space<vmem>>, vector<256x24xbf16>
    %c0_22 = arith.constant 0 : index
    %c0_23 = arith.constant 0 : index
    %c0_24 = arith.constant 0 : index
    %44 = vector.load %arg9[%c0_22, %c0_23, %c0_24] : memref<1x24x128xbf16, #tpu.memory_space<vmem>>, vector<1x24x128xbf16>
    %45 = vector.shape_cast %44 : vector<1x24x128xbf16> to vector<24x128xbf16>
    %cst_25 = arith.constant dense<0.000000e+00> : vector<256x128xf32>
    %46 = tpu.matmul %43, %45, %cst_25 {dimension_numbers = #tpu.dot_dimension_numbers<[1], [0], [0], [1], [0, 0, 1, 1], [], []>} : vector<256x24xbf16>, vector<24x128xbf16>, vector<256x128xf32> -> vector<256x128xf32>
    %47 = vector.shape_cast %40 : vector<4x8x128xf32> to vector<4x8x1x128xf32>
    %48 = vector.shape_cast %42 : vector<4x8x128xf32> to vector<4x1x8x128xf32>
    %49 = vector.broadcast %47 : vector<4x8x1x128xf32> to vector<4x8x8x128xf32>
    %50 = vector.broadcast %48 : vector<4x1x8x128xf32> to vector<4x8x8x128xf32>
    %51 = arith.addf %49, %50 : vector<4x8x8x128xf32>
    %52 = vector.shape_cast %46 : vector<256x128xf32> to vector<4x8x8x128xf32>
    %53 = arith.addf %51, %52 : vector<4x8x8x128xf32>
    %54 = arith.negf %53 : vector<4x8x8x128xf32>
    %55 = math.exp %54 : vector<4x8x8x128xf32>
    %cst_26 = arith.constant 1.000000e+00 : f32
    %56 = vector.broadcast %cst_26 : f32 to vector<4x8x8x128xf32>
    %57 = arith.addf %56, %55 : vector<4x8x8x128xf32>
    %58 = arith.divf %56, %57 : vector<4x8x8x128xf32>
    %59 = arith.mulf %53, %58 : vector<4x8x8x128xf32>
    %60 = arith.truncf %59 : vector<4x8x8x128xf32> to vector<4x8x8x128xbf16>
    %61 = vector.shape_cast %60 : vector<4x8x8x128xbf16> to vector<256x128xbf16>
    %c0_27 = arith.constant 0 : index
    %c0_28 = arith.constant 0 : index
    %c0_29 = arith.constant 0 : index
    %62 = vector.load %arg11[%c0_27, %c0_28, %c0_29] : memref<1x128x128xbf16, #tpu.memory_space<vmem>>, vector<1x128x128xbf16>
    %63 = vector.shape_cast %62 : vector<1x128x128xbf16> to vector<128x128xbf16>
    %cst_30 = arith.constant dense<0.000000e+00> : vector<256x128xf32>
    %64 = tpu.matmul %61, %63, %cst_30 {dimension_numbers = #tpu.dot_dimension_numbers<[1], [0], [0], [1], [0, 0, 1, 1], [], []>} : vector<256x128xbf16>, vector<128x128xbf16>, vector<256x128xf32> -> vector<256x128xf32>
    %c0_31 = arith.constant 0 : index
    %c0_32 = arith.constant 0 : index
    %c0_33 = arith.constant 0 : index
    %65 = vector.load %arg12[%c0_31, %c0_32, %c0_33] : memref<1x1x128xf32, #tpu.memory_space<vmem>>, vector<1x1x128xf32>
    %66 = vector.shape_cast %65 : vector<1x1x128xf32> to vector<1x128xf32>
    %67 = vector.broadcast %66 : vector<1x128xf32> to vector<256x128xf32>
    %68 = arith.addf %64, %67 : vector<256x128xf32>
    %69 = arith.negf %68 : vector<256x128xf32>
    %70 = math.exp %69 : vector<256x128xf32>
    %cst_34 = arith.constant 1.000000e+00 : f32
    %71 = vector.broadcast %cst_34 : f32 to vector<256x128xf32>
    %72 = arith.addf %71, %70 : vector<256x128xf32>
    %73 = arith.divf %71, %72 : vector<256x128xf32>
    %74 = arith.mulf %68, %73 : vector<256x128xf32>
    %75 = vector.shape_cast %74 : vector<256x128xf32> to vector<4x8x8x128xf32>
    %cst_35 = arith.constant dense<0.000000e+00> : vector<4x8x128xf32>
    %76 = vector.multi_reduction <add>, %75, %cst_35 [2] : vector<4x8x8x128xf32> to vector<4x8x128xf32>
    %cst_36 = arith.constant 1.250000e-01 : f32
    %77 = vector.broadcast %cst_36 : f32 to vector<4x8x128xf32>
    %78 = arith.mulf %76, %77 : vector<4x8x128xf32>
    %79 = vector.shape_cast %78 : vector<4x8x128xf32> to vector<32x128xf32>
    %80 = arith.truncf %79 : vector<32x128xf32> to vector<32x128xbf16>
    %81 = tpu.concatenate %30, %80 in 1 : vector<32x128xbf16>, vector<32x128xbf16> -> vector<32x256xbf16>
    %c0_37 = arith.constant 0 : index
    %c0_38 = arith.constant 0 : index
    %c0_39 = arith.constant 0 : index
    %82 = vector.load %arg13[%c0_37, %c0_38, %c0_39] : memref<1x256x128xbf16, #tpu.memory_space<vmem>>, vector<1x256x128xbf16>
    %83 = vector.shape_cast %82 : vector<1x256x128xbf16> to vector<256x128xbf16>
    %cst_40 = arith.constant dense<0.000000e+00> : vector<32x128xf32>
    %84 = tpu.matmul %81, %83, %cst_40 {dimension_numbers = #tpu.dot_dimension_numbers<[1], [0], [0], [1], [0, 0, 1, 1], [], []>} : vector<32x256xbf16>, vector<256x128xbf16>, vector<32x128xf32> -> vector<32x128xf32>
    %c0_41 = arith.constant 0 : index
    %c0_42 = arith.constant 0 : index
    %c0_43 = arith.constant 0 : index
    %85 = vector.load %arg14[%c0_41, %c0_42, %c0_43] : memref<1x1x128xf32, #tpu.memory_space<vmem>>, vector<1x1x128xf32>
    %86 = vector.shape_cast %85 : vector<1x1x128xf32> to vector<1x128xf32>
    %87 = vector.broadcast %86 : vector<1x128xf32> to vector<32x128xf32>
    %88 = arith.addf %84, %87 : vector<32x128xf32>
    %89 = arith.negf %88 : vector<32x128xf32>
    %90 = math.exp %89 : vector<32x128xf32>
    %cst_44 = arith.constant 1.000000e+00 : f32
    %91 = vector.broadcast %cst_44 : f32 to vector<32x128xf32>
    %92 = arith.addf %91, %90 : vector<32x128xf32>
    %93 = arith.divf %91, %92 : vector<32x128xf32>
    %94 = arith.mulf %88, %93 : vector<32x128xf32>
    %95 = arith.truncf %94 : vector<32x128xf32> to vector<32x128xbf16>
    %c0_45 = arith.constant 0 : index
    %c0_46 = arith.constant 0 : index
    %c0_47 = arith.constant 0 : index
    %96 = vector.load %arg15[%c0_45, %c0_46, %c0_47] : memref<1x128x128xbf16, #tpu.memory_space<vmem>>, vector<1x128x128xbf16>
    %97 = vector.shape_cast %96 : vector<1x128x128xbf16> to vector<128x128xbf16>
    %cst_48 = arith.constant dense<0.000000e+00> : vector<32x128xf32>
    %98 = tpu.matmul %95, %97, %cst_48 {dimension_numbers = #tpu.dot_dimension_numbers<[1], [0], [0], [1], [0, 0, 1, 1], [], []>} : vector<32x128xbf16>, vector<128x128xbf16>, vector<32x128xf32> -> vector<32x128xf32>
    %c0_49 = arith.constant 0 : index
    %c0_50 = arith.constant 0 : index
    %c0_51 = arith.constant 0 : index
    %99 = vector.load %arg16[%c0_49, %c0_50, %c0_51] : memref<1x1x128xf32, #tpu.memory_space<vmem>>, vector<1x1x128xf32>
    %100 = vector.shape_cast %99 : vector<1x1x128xf32> to vector<1x128xf32>
    %101 = vector.broadcast %100 : vector<1x128xf32> to vector<32x128xf32>
    %102 = arith.addf %98, %101 : vector<32x128xf32>
    %103 = arith.negf %102 : vector<32x128xf32>
    %104 = math.exp %103 : vector<32x128xf32>
    %cst_52 = arith.constant 1.000000e+00 : f32
    %105 = vector.broadcast %cst_52 : f32 to vector<32x128xf32>
    %106 = arith.addf %105, %104 : vector<32x128xf32>
    %107 = arith.divf %105, %106 : vector<32x128xf32>
    %108 = arith.mulf %102, %107 : vector<32x128xf32>
    %109 = arith.addf %3, %108 : vector<32x128xf32>
    %c0_53 = arith.constant 0 : index
    %c0_54 = arith.constant 0 : index
    %110 = vector.load %arg21[%c0_53, %c0_54] : memref<32x128xf32, #tpu.memory_space<vmem>>, vector<32x128xf32>
    tpu.vector_store %arg21[%c0_53, %c0_54], %109 {strides = array<i32>} : memref<32x128xf32, #tpu.memory_space<vmem>>, vector<32x128xf32>,
    %c2_i32 = arith.constant 2 : i32
    %111 = arith.cmpi eq, %arg1, %c2_i32 : i32
    %112 = arith.extui %111 : i1 to i32
    %c0_i32_55 = arith.constant 0 : i32
    %113 = arith.cmpi ne, %112, %c0_i32_55 : i32
    scf.if %113 {
      %c0_56 = arith.constant 0 : index
      %c0_57 = arith.constant 0 : index
      %114 = vector.load %arg21[%c0_56, %c0_57] : memref<32x128xf32, #tpu.memory_space<vmem>>, vector<32x128xf32>
      %cst_58 = arith.constant dense<0.000000e+00> : vector<32xf32>
      %115 = vector.multi_reduction <add>, %114, %cst_58 [1] : vector<32x128xf32> to vector<32xf32>
      %116 = vector.shape_cast %115 : vector<32xf32> to vector<32x1xf32>
      %cst_59 = arith.constant 1.280000e+02 : f32
      %117 = vector.broadcast %cst_59 : f32 to vector<32x1xf32>
      %118 = arith.divf %116, %117 : vector<32x1xf32>
      %119 = vector.broadcast %118 : vector<32x1xf32> to vector<32x128xf32>
      %120 = arith.subf %114, %119 : vector<32x128xf32>
      %121 = arith.mulf %120, %120 : vector<32x128xf32>
      %cst_60 = arith.constant dense<0.000000e+00> : vector<32xf32>
      %122 = vector.multi_reduction <add>, %121, %cst_60 [1] : vector<32x128xf32> to vector<32xf32>
      %123 = vector.shape_cast %122 : vector<32xf32> to vector<32x1xf32>
      %cst_61 = arith.constant 1.280000e+02 : f32
      %124 = vector.broadcast %cst_61 : f32 to vector<32x1xf32>
      %125 = arith.divf %123, %124 : vector<32x1xf32>
      %126 = vector.broadcast %118 : vector<32x1xf32> to vector<32x128xf32>
      %127 = arith.subf %114, %126 : vector<32x128xf32>
      %cst_62 = arith.constant 9.99999974E-6 : f32
      %128 = vector.broadcast %cst_62 : f32 to vector<32x1xf32>
      %129 = arith.addf %125, %128 : vector<32x1xf32>
      %130 = math.rsqrt %129 : vector<32x1xf32>
      %131 = vector.broadcast %130 : vector<32x1xf32> to vector<32x128xf32>
      %132 = arith.mulf %127, %131 : vector<32x128xf32>
      %c0_63 = arith.constant 0 : index
      %c0_64 = arith.constant 0 : index
      %133 = vector.load %arg17[%c0_63, %c0_64] : memref<1x128xf32, #tpu.memory_space<vmem>>, vector<1x128xf32>
      %134 = vector.broadcast %133 : vector<1x128xf32> to vector<32x128xf32>
      %135 = arith.mulf %132, %134 : vector<32x128xf32>
      %c0_65 = arith.constant 0 : index
      %c0_66 = arith.constant 0 : index
      %136 = vector.load %arg18[%c0_65, %c0_66] : memref<1x128xf32, #tpu.memory_space<vmem>>, vector<1x128xf32>
      %137 = vector.broadcast %136 : vector<1x128xf32> to vector<32x128xf32>
      %138 = arith.addf %135, %137 : vector<32x128xf32>
      %c0_67 = arith.constant 0 : index
      %c0_68 = arith.constant 0 : index
      %139 = vector.load %arg19[%c0_67, %c0_68] : memref<128x128xf32, #tpu.memory_space<vmem>>, vector<128x128xf32>
      %cst_69 = arith.constant dense<0.000000e+00> : vector<32x128xf32>
      %140 = tpu.matmul %138, %139, %cst_69 {dimension_numbers = #tpu.dot_dimension_numbers<[1], [0], [0], [1], [0, 0, 1, 1], [], []>} : vector<32x128xf32>, vector<128x128xf32>, vector<32x128xf32> -> vector<32x128xf32>
      %c0_70 = arith.constant 0 : index
      %c0_71 = arith.constant 0 : index
      %141 = vector.load %arg20[%c0_70, %c0_71] : memref<32x128xf32, #tpu.memory_space<vmem>>, vector<32x128xf32>
      tpu.vector_store %arg20[%c0_70, %c0_71], %140 {strides = array<i32>} : memref<32x128xf32, #tpu.memory_space<vmem>>, vector<32x128xf32>,
    } else {
    }
    return
  }
  func.func @transform_0(%arg0: i32, %arg1: i32) -> (i32, i32) {
    %c0_i32 = arith.constant 0 : i32
    %c0_i32_0 = arith.constant 0 : i32
    return %arg0, %c0_i32 : i32, i32
  }
  func.func @transform_1(%arg0: i32, %arg1: i32) -> (i32, i32) {
    %c0_i32 = arith.constant 0 : i32
    %c0_i32_0 = arith.constant 0 : i32
    return %arg0, %c0_i32 : i32, i32
  }
  func.func @transform_2(%arg0: i32, %arg1: i32) -> (i32, i32) {
    %c0_i32 = arith.constant 0 : i32
    %c0_i32_0 = arith.constant 0 : i32
    %c0_i32_1 = arith.constant 0 : i32
    return %c0_i32, %c0_i32_0 : i32, i32
  }
  func.func @transform_3(%arg0: i32, %arg1: i32) -> (i32, i32) {
    %c0_i32 = arith.constant 0 : i32
    %c0_i32_0 = arith.constant 0 : i32
    %c0_i32_1 = arith.constant 0 : i32
    return %c0_i32, %c0_i32_0 : i32, i32
  }
  func.func @transform_4(%arg0: i32, %arg1: i32) -> (i32, i32, i32) {
    %c0_i32 = arith.constant 0 : i32
    %c0_i32_0 = arith.constant 0 : i32
    %c0_i32_1 = arith.constant 0 : i32
    return %arg1, %c0_i32, %c0_i32_0 : i32, i32, i32
  }
  func.func @transform_5(%arg0: i32, %arg1: i32) -> (i32, i32, i32) {
    %c0_i32 = arith.constant 0 : i32
    %c0_i32_0 = arith.constant 0 : i32
    %c0_i32_1 = arith.constant 0 : i32
    return %arg1, %c0_i32, %c0_i32_0 : i32, i32, i32
  }
  func.func @transform_6(%arg0: i32, %arg1: i32) -> (i32, i32, i32) {
    %c0_i32 = arith.constant 0 : i32
    %c0_i32_0 = arith.constant 0 : i32
    %c0_i32_1 = arith.constant 0 : i32
    return %arg1, %c0_i32, %c0_i32_0 : i32, i32, i32
  }
  func.func @transform_7(%arg0: i32, %arg1: i32) -> (i32, i32, i32) {
    %c0_i32 = arith.constant 0 : i32
    %c0_i32_0 = arith.constant 0 : i32
    %c0_i32_1 = arith.constant 0 : i32
    return %arg1, %c0_i32, %c0_i32_0 : i32, i32, i32
  }
  func.func @transform_8(%arg0: i32, %arg1: i32) -> (i32, i32, i32, i32) {
    %c0_i32 = arith.constant 0 : i32
    %c0_i32_0 = arith.constant 0 : i32
    %c0_i32_1 = arith.constant 0 : i32
    return %arg1, %arg0, %c0_i32, %c0_i32_0 : i32, i32, i32, i32
  }
  func.func @transform_9(%arg0: i32, %arg1: i32) -> (i32, i32, i32) {
    %c0_i32 = arith.constant 0 : i32
    %c0_i32_0 = arith.constant 0 : i32
    %c0_i32_1 = arith.constant 0 : i32
    return %arg1, %c0_i32, %c0_i32_0 : i32, i32, i32
  }
  func.func @transform_10(%arg0: i32, %arg1: i32) -> (i32, i32, i32) {
    %c0_i32 = arith.constant 0 : i32
    %c0_i32_0 = arith.constant 0 : i32
    %c0_i32_1 = arith.constant 0 : i32
    return %arg1, %c0_i32, %c0_i32_0 : i32, i32, i32
  }
  func.func @transform_11(%arg0: i32, %arg1: i32) -> (i32, i32, i32) {
    %c0_i32 = arith.constant 0 : i32
    %c0_i32_0 = arith.constant 0 : i32
    %c0_i32_1 = arith.constant 0 : i32
    return %arg1, %c0_i32, %c0_i32_0 : i32, i32, i32
  }
  func.func @transform_12(%arg0: i32, %arg1: i32) -> (i32, i32, i32) {
    %c0_i32 = arith.constant 0 : i32
    %c0_i32_0 = arith.constant 0 : i32
    %c0_i32_1 = arith.constant 0 : i32
    return %arg1, %c0_i32, %c0_i32_0 : i32, i32, i32
  }
  func.func @transform_13(%arg0: i32, %arg1: i32) -> (i32, i32, i32) {
    %c0_i32 = arith.constant 0 : i32
    %c0_i32_0 = arith.constant 0 : i32
    %c0_i32_1 = arith.constant 0 : i32
    return %arg1, %c0_i32, %c0_i32_0 : i32, i32, i32
  }
  func.func @transform_14(%arg0: i32, %arg1: i32) -> (i32, i32, i32) {
    %c0_i32 = arith.constant 0 : i32
    %c0_i32_0 = arith.constant 0 : i32
    %c0_i32_1 = arith.constant 0 : i32
    return %arg1, %c0_i32, %c0_i32_0 : i32, i32, i32
  }
  func.func @transform_15(%arg0: i32, %arg1: i32) -> (i32, i32) {
    %c0_i32 = arith.constant 0 : i32
    %c0_i32_0 = arith.constant 0 : i32
    %c0_i32_1 = arith.constant 0 : i32
    return %c0_i32, %c0_i32_0 : i32, i32
  }
  func.func @transform_16(%arg0: i32, %arg1: i32) -> (i32, i32) {
    %c0_i32 = arith.constant 0 : i32
    %c0_i32_0 = arith.constant 0 : i32
    %c0_i32_1 = arith.constant 0 : i32
    return %c0_i32, %c0_i32_0 : i32, i32
  }
  func.func @transform_17(%arg0: i32, %arg1: i32) -> (i32, i32) {
    %c0_i32 = arith.constant 0 : i32
    %c0_i32_0 = arith.constant 0 : i32
    %c0_i32_1 = arith.constant 0 : i32
    return %c0_i32, %c0_i32_0 : i32, i32
  }
  func.func @transform_18(%arg0: i32, %arg1: i32) -> (i32, i32) {
    %c0_i32 = arith.constant 0 : i32
    %c0_i32_0 = arith.constant 0 : i32
    return %arg0, %c0_i32 : i32, i32
  }
}

</mosaic_0001>

<llo_original>
// kernel: projected_cspnet_forward.1
$region0: #{projected_cspnet_forward.1}
  #allocation0 [shape = 'u32[]', space=smem, size = 0x4, offset = 0x4, fixed_abs, tag = 'smem constant byte address 0x4 - core index']
  #allocation1 [shape = 'u32[144,128]{1,0:T(1,128)}', space=vmem, size = 0x12000, scoped, tag = 'internal scratch']
  #allocation2 [shape = 'f32[32,128]{1,0:T(8,128)}', space=vmem, size = 0x4000, scoped, tag = 'scratch operand']
  %s0 = inlined_call_operand.vmem [shape: bf16[64,128], index: 0, kind: input, shape index: {}]
  %s1 = inlined_call_operand.vmem [shape: bf16[512,24], index: 1, kind: input, shape index: {}]
  %s2 = inlined_call_operand.vmem [shape: f32[1,128], index: 2, kind: input, shape index: {}]
  %s3 = inlined_call_operand.vmem [shape: bf16[128,128], index: 3, kind: input, shape index: {}]
  %s4 = inlined_call_operand.vmem [shape: f32[3,1,128], index: 4, kind: input, shape index: {}]
  %s5 = inlined_call_operand.vmem [shape: f32[3,1,128], index: 5, kind: input, shape index: {}]
  %s6 = inlined_call_operand.vmem [shape: bf16[3,128,256], index: 6, kind: input, shape index: {}]
  %s7 = inlined_call_operand.vmem [shape: bf16[3,24,128], index: 7, kind: input, shape index: {}]
  %s8 = inlined_call_operand.vmem [shape: f32[3,2,4,128], index: 8, kind: input, shape index: {}]
  %s9 = inlined_call_operand.vmem [shape: bf16[3,128,128], index: 9, kind: input, shape index: {}]
  %s10 = inlined_call_operand.vmem [shape: f32[3,1,128], index: 10, kind: input, shape index: {}]
  %s11 = inlined_call_operand.vmem [shape: bf16[3,256,128], index: 11, kind: input, shape index: {}]
  %s12 = inlined_call_operand.vmem [shape: f32[3,1,128], index: 12, kind: input, shape index: {}]
  %s13 = inlined_call_operand.vmem [shape: bf16[3,128,128], index: 13, kind: input, shape index: {}]
  %s14 = inlined_call_operand.vmem [shape: f32[3,1,128], index: 14, kind: input, shape index: {}]
  %s15 = inlined_call_operand.vmem [shape: f32[1,128], index: 15, kind: input, shape index: {}]
  %s16 = inlined_call_operand.vmem [shape: f32[1,128], index: 16, kind: input, shape index: {}]
  %s17 = inlined_call_operand.vmem [shape: f32[128,128], index: 17, kind: input, shape index: {}]
  %s18 = inlined_call_operand.vmem [shape: f32[64,128], index: 18, kind: output, shape index: {}]
  %s19 = sld [smem:[#allocation0]]
  $region113: #{projected_cspnet_forward.1} parent=0
    _
  %s21 = ssub.s32 1, %s19
  %s22 = scalar_select 0, %s21, %s19
  loop: start=0, step=1, limit=8
  $region2: #{projected_cspnet_forward.1} parent=0 // loop_pre_header
    _
  $region3: #{projected_cspnet_forward.1} parent=0 // loop_header
    %s24 = sphi 0, %s28
    %p25 = scmp.ge.s32.totalorder %s24, 8
    %s31 = sphi 0, %s43
    %s32 = sphi 0, %s39
    %s33 = sphi 0, %s31
    %s34 = sphi 0, %s32
    %s35 = sphi 0, %s33
    %s36 = sphi 0, %s34
    %s46 = sphi 0, %s48
    %s49 = sphi 0, %s46
    %s50 = sphi 0, %s49
    %s66 = sphi 0, %s50
    %s72 = sphi 0, %s74
    %s75 = sphi 0, %s72
    %s76 = sphi 0, %s75
    %s92 = sphi 0, %s76
    %s96 = sphi 0, %s96
    %s98 = sphi 0, %s96
    %s99 = sphi 0, %s98
    %s113 = sphi 0, %s99
    %s117 = sphi 0, %s117
    %s119 = sphi 0, %s117
    %s120 = sphi 0, %s119
    %s134 = sphi 0, %s120
    %s140 = sphi 0, %s142
    %s143 = sphi 0, %s140
    %s144 = sphi 0, %s143
    %s160 = sphi 0, %s144
    %s166 = sphi 0, %s168
    %s169 = sphi 0, %s166
    %s170 = sphi 0, %s169
    %s186 = sphi 0, %s170
    %s192 = sphi 0, %s194
    %s195 = sphi 0, %s192
    %s196 = sphi 0, %s195
    %s212 = sphi 0, %s196
    %s218 = sphi 0, %s220
    %s221 = sphi 0, %s218
    %s222 = sphi 0, %s221
    %s238 = sphi 0, %s222
    %s246 = sphi 0, %s248
    %s249 = sphi 0, %s246
    %s250 = sphi 0, %s249
    %s266 = sphi 0, %s250
    %s272 = sphi 0, %s274
    %s275 = sphi 0, %s272
    %s276 = sphi 0, %s275
    %s292 = sphi 0, %s276
    %s298 = sphi 0, %s300
    %s301 = sphi 0, %s298
    %s302 = sphi 0, %s301
    %s318 = sphi 0, %s302
    %s324 = sphi 0, %s326
    %s327 = sphi 0, %s324
    %s328 = sphi 0, %s327
    %s344 = sphi 0, %s328
    %s350 = sphi 0, %s352
    %s353 = sphi 0, %s350
    %s354 = sphi 0, %s353
    %s370 = sphi 0, %s354
    %s376 = sphi 0, %s378
    %s379 = sphi 0, %s376
    %s380 = sphi 0, %s379
    %s396 = sphi 0, %s380
    %s402 = sphi 0, %s404
    %s405 = sphi 0, %s402
    %s406 = sphi 0, %s405
    %s422 = sphi 0, %s406
    %s426 = sphi 0, %s426
    %s428 = sphi 0, %s426
    %s429 = sphi 0, %s428
    %s443 = sphi 0, %s429
    %s447 = sphi 0, %s447
    %s449 = sphi 0, %s447
    %s450 = sphi 0, %s449
    %s464 = sphi 0, %s450
    %s468 = sphi 0, %s468
    %s470 = sphi 0, %s468
    %s471 = sphi 0, %s470
    %s485 = sphi 0, %s471
    %s491 = sphi 0, %s493
    %s494 = sphi 0, %s491
    %s495 = sphi 0, %s494
    %s511 = sphi 0, %s495
  $region4: #{projected_cspnet_forward.1} parent=0 // loop_header_branch
    %27 = sbr.rel (%p25) target = $region8
  $region5: #{projected_cspnet_forward.1} parent=0 // loop_body
    %s29 = ssub.s32 %s24, 1
    %s30 = ssub.s32 %s24, 2
    %s37 = sadd.s32 1, %s32
    %p38 = scmp.ge.s32.totalorder %s37, 3
    %s39 = scalar_select %p38, 0, %s37
    %s40 = sadd.s32 1, %s31
    %s41 = scalar_select %p38, %s40, %s31
    %p42 = scmp.ge.s32.totalorder %s41, 2
    %s43 = scalar_select %p42, 0, %s41
    %s44 = ssub.s32 %s31, %s43
    %p45 = scmp.eq.s32.totalorder %s44, 0
    %s47 = sadd.s32 %s46, 1
    %s48 = scalar_select %p45, %s46, %s47
    %p51 = pneg %p45
    %p52 = scmp.eq.s32.totalorder %s24, 5
    %p53 = por %p51, %p52
    %p54 = scmp.ne.s32.totalorder %s46, %s49
    %p55 = scmp.eq.s32.totalorder %s24, 0
    %p56 = por %p54, %p55
    %p57 = scmp.ne.s32.totalorder %s46, %s49
    %p58 = scmp.eq.s32.totalorder %s29, 5
    %p59 = por %p57, %p58
    %p60 = scmp.ne.s32.totalorder %s49, %s50
    %p61 = scmp.eq.s32.totalorder %s29, 0
    %p62 = por %p60, %p61
    %p63 = scmp.ne.s32.totalorder %s49, %s50
    %p64 = scmp.eq.s32.totalorder %s30, 5
    %p65 = por %p63, %p64
    %p67 = scmp.ne.s32.totalorder %s50, %s66
    %p68 = scmp.eq.s32.totalorder %s30, 0
    %p69 = por %p67, %p68
    %s70 = ssub.s32 %s31, %s43
    %p71 = scmp.eq.s32.totalorder %s70, 0
    %s73 = sadd.s32 %s72, 1
    %s74 = scalar_select %p71, %s72, %s73
    %p77 = pneg %p71
    %p78 = scmp.eq.s32.totalorder %s24, 5
    %p79 = por %p77, %p78
    %p80 = scmp.ne.s32.totalorder %s72, %s75
    %p81 = scmp.eq.s32.totalorder %s24, 0
    %p82 = por %p80, %p81
    %p83 = scmp.ne.s32.totalorder %s72, %s75
    %p84 = scmp.eq.s32.totalorder %s29, 5
    %p85 = por %p83, %p84
    %p86 = scmp.ne.s32.totalorder %s75, %s76
    %p87 = scmp.eq.s32.totalorder %s29, 0
    %p88 = por %p86, %p87
    %p89 = scmp.ne.s32.totalorder %s75, %s76
    %p90 = scmp.eq.s32.totalorder %s30, 5
    %p91 = por %p89, %p90
    %p93 = scmp.ne.s32.totalorder %s76, %s92
    %p94 = scmp.eq.s32.totalorder %s30, 0
    %p95 = por %p93, %p94
    %s97 = sadd.s32 %s96, 1
    %p100 = scmp.eq.s32.totalorder %s24, 5
    %p101 = scmp.ne.s32.totalorder %s96, %s98
    %p102 = scmp.eq.s32.totalorder %s24, 0
    %p103 = por %p101, %p102
    %p104 = scmp.ne.s32.totalorder %s96, %s98
    %p105 = scmp.eq.s32.totalorder %s29, 5
    %p106 = por %p104, %p105
    %p107 = scmp.ne.s32.totalorder %s98, %s99
    %p108 = scmp.eq.s32.totalorder %s29, 0
    %p109 = por %p107, %p108
    %p110 = scmp.ne.s32.totalorder %s98, %s99
    %p111 = scmp.eq.s32.totalorder %s30, 5
    %p112 = por %p110, %p111
    %p114 = scmp.ne.s32.totalorder %s99, %s113
    %p115 = scmp.eq.s32.totalorder %s30, 0
    %p116 = por %p114, %p115
    %s118 = sadd.s32 %s117, 1
    %p121 = scmp.eq.s32.totalorder %s24, 5
    %p122 = scmp.ne.s32.totalorder %s117, %s119
    %p123 = scmp.eq.s32.totalorder %s24, 0
    %p124 = por %p122, %p123
    %p125 = scmp.ne.s32.totalorder %s117, %s119
    %p126 = scmp.eq.s32.totalorder %s29, 5
    %p127 = por %p125, %p126
    %p128 = scmp.ne.s32.totalorder %s119, %s120
    %p129 = scmp.eq.s32.totalorder %s29, 0
    %p130 = por %p128, %p129
    %p131 = scmp.ne.s32.totalorder %s119, %s120
    %p132 = scmp.eq.s32.totalorder %s30, 5
    %p133 = por %p131, %p132
    %p135 = scmp.ne.s32.totalorder %s120, %s134
    %p136 = scmp.eq.s32.totalorder %s30, 0
    %p137 = por %p135, %p136
    %s138 = ssub.s32 %s32, %s39
    %p139 = scmp.eq.s32.totalorder %s138, 0
    %s141 = sadd.s32 %s140, 1
    %s142 = scalar_select %p139, %s140, %s141
    %p145 = pneg %p139
    %p146 = scmp.eq.s32.totalorder %s24, 5
    %p147 = por %p145, %p146
    %p148 = scmp.ne.s32.totalorder %s140, %s143
    %p149 = scmp.eq.s32.totalorder %s24, 0
    %p150 = por %p148, %p149
    %p151 = scmp.ne.s32.totalorder %s140, %s143
    %p152 = scmp.eq.s32.totalorder %s29, 5
    %p153 = por %p151, %p152
    %p154 = scmp.ne.s32.totalorder %s143, %s144
    %p155 = scmp.eq.s32.totalorder %s29, 0
    %p156 = por %p154, %p155
    %p157 = scmp.ne.s32.totalorder %s143, %s144
    %p158 = scmp.eq.s32.totalorder %s30, 5
    %p159 = por %p157, %p158
    %p161 = scmp.ne.s32.totalorder %s144, %s160
    %p162 = scmp.eq.s32.totalorder %s30, 0
    %p163 = por %p161, %p162
    %s164 = ssub.s32 %s32, %s39
    %p165 = scmp.eq.s32.totalorder %s164, 0
    %s167 = sadd.s32 %s166, 1
    %s168 = scalar_select %p165, %s166, %s167
    %p171 = pneg %p165
    %p172 = scmp.eq.s32.totalorder %s24, 5
    %p173 = por %p171, %p172
    %p174 = scmp.ne.s32.totalorder %s166, %s169
    %p175 = scmp.eq.s32.totalorder %s24, 0
    %p176 = por %p174, %p175
    %p177 = scmp.ne.s32.totalorder %s166, %s169
    %p178 = scmp.eq.s32.totalorder %s29, 5
    %p179 = por %p177, %p178
    %p180 = scmp.ne.s32.totalorder %s169, %s170
    %p181 = scmp.eq.s32.totalorder %s29, 0
    %p182 = por %p180, %p181
    %p183 = scmp.ne.s32.totalorder %s169, %s170
    %p184 = scmp.eq.s32.totalorder %s30, 5
    %p185 = por %p183, %p184
    %p187 = scmp.ne.s32.totalorder %s170, %s186
    %p188 = scmp.eq.s32.totalorder %s30, 0
    %p189 = por %p187, %p188
    %s190 = ssub.s32 %s32, %s39
    %p191 = scmp.eq.s32.totalorder %s190, 0
    %s193 = sadd.s32 %s192, 1
    %s194 = scalar_select %p191, %s192, %s193
    %p197 = pneg %p191
    %p198 = scmp.eq.s32.totalorder %s24, 5
    %p199 = por %p197, %p198
    %p200 = scmp.ne.s32.totalorder %s192, %s195
    %p201 = scmp.eq.s32.totalorder %s24, 0
    %p202 = por %p200, %p201
    %p203 = scmp.ne.s32.totalorder %s192, %s195
    %p204 = scmp.eq.s32.totalorder %s29, 5
    %p205 = por %p203, %p204
    %p206 = scmp.ne.s32.totalorder %s195, %s196
    %p207 = scmp.eq.s32.totalorder %s29, 0
    %p208 = por %p206, %p207
    %p209 = scmp.ne.s32.totalorder %s195, %s196
    %p210 = scmp.eq.s32.totalorder %s30, 5
    %p211 = por %p209, %p210
    %p213 = scmp.ne.s32.totalorder %s196, %s212
    %p214 = scmp.eq.s32.totalorder %s30, 0
    %p215 = por %p213, %p214
    %s216 = ssub.s32 %s32, %s39
    %p217 = scmp.eq.s32.totalorder %s216, 0
    %s219 = sadd.s32 %s218, 1
    %s220 = scalar_select %p217, %s218, %s219
    %p223 = pneg %p217
    %p224 = scmp.eq.s32.totalorder %s24, 5
    %p225 = por %p223, %p224
    %p226 = scmp.ne.s32.totalorder %s218, %s221
    %p227 = scmp.eq.s32.totalorder %s24, 0
    %p228 = por %p226, %p227
    %p229 = scmp.ne.s32.totalorder %s218, %s221
    %p230 = scmp.eq.s32.totalorder %s29, 5
    %p231 = por %p229, %p230
    %p232 = scmp.ne.s32.totalorder %s221, %s222
    %p233 = scmp.eq.s32.totalorder %s29, 0
    %p234 = por %p232, %p233
    %p235 = scmp.ne.s32.totalorder %s221, %s222
    %p236 = scmp.eq.s32.totalorder %s30, 5
    %p237 = por %p235, %p236
    %p239 = scmp.ne.s32.totalorder %s222, %s238
    %p240 = scmp.eq.s32.totalorder %s30, 0
    %p241 = por %p239, %p240
    %s242 = ssub.s32 %s32, %s39
    %s243 = ssub.s32 %s31, %s43
    %s244 = sor.u32 %s242, %s243
    %p245 = scmp.eq.s32.totalorder %s244, 0
    %s247 = sadd.s32 %s246, 1
    %s248 = scalar_select %p245, %s246, %s247
    %p251 = pneg %p245
    %p252 = scmp.eq.s32.totalorder %s24, 5
    %p253 = por %p251, %p252
    %p254 = scmp.ne.s32.totalorder %s246, %s249
    %p255 = scmp.eq.s32.totalorder %s24, 0
    %p256 = por %p254, %p255
    %p257 = scmp.ne.s32.totalorder %s246, %s249
    %p258 = scmp.eq.s32.totalorder %s29, 5
    %p259 = por %p257, %p258
    %p260 = scmp.ne.s32.totalorder %s249, %s250
    %p261 = scmp.eq.s32.totalorder %s29, 0
    %p262 = por %p260, %p261
    %p263 = scmp.ne.s32.totalorder %s249, %s250
    %p264 = scmp.eq.s32.totalorder %s30, 5
    %p265 = por %p263, %p264
    %p267 = scmp.ne.s32.totalorder %s250, %s266
    %p268 = scmp.eq.s32.totalorder %s30, 0
    %p269 = por %p267, %p268
    %s270 = ssub.s32 %s32, %s39
    %p271 = scmp.eq.s32.totalorder %s270, 0
    %s273 = sadd.s32 %s272, 1
    %s274 = scalar_select %p271, %s272, %s273
    %p277 = pneg %p271
    %p278 = scmp.eq.s32.totalorder %s24, 5
    %p279 = por %p277, %p278
    %p280 = scmp.ne.s32.totalorder %s272, %s275
    %p281 = scmp.eq.s32.totalorder %s24, 0
    %p282 = por %p280, %p281
    %p283 = scmp.ne.s32.totalorder %s272, %s275
    %p284 = scmp.eq.s32.totalorder %s29, 5
    %p285 = por %p283, %p284
    %p286 = scmp.ne.s32.totalorder %s275, %s276
    %p287 = scmp.eq.s32.totalorder %s29, 0
    %p288 = por %p286, %p287
    %p289 = scmp.ne.s32.totalorder %s275, %s276
    %p290 = scmp.eq.s32.totalorder %s30, 5
    %p291 = por %p289, %p290
    %p293 = scmp.ne.s32.totalorder %s276, %s292
    %p294 = scmp.eq.s32.totalorder %s30, 0
    %p295 = por %p293, %p294
    %s296 = ssub.s32 %s32, %s39
    %p297 = scmp.eq.s32.totalorder %s296, 0
    %s299 = sadd.s32 %s298, 1
    %s300 = scalar_select %p297, %s298, %s299
    %p303 = pneg %p297
    %p304 = scmp.eq.s32.totalorder %s24, 5
    %p305 = por %p303, %p304
    %p306 = scmp.ne.s32.totalorder %s298, %s301
    %p307 = scmp.eq.s32.totalorder %s24, 0
    %p308 = por %p306, %p307
    %p309 = scmp.ne.s32.totalorder %s298, %s301
    %p310 = scmp.eq.s32.totalorder %s29, 5
    %p311 = por %p309, %p310
    %p312 = scmp.ne.s32.totalorder %s301, %s302
    %p313 = scmp.eq.s32.totalorder %s29, 0
    %p314 = por %p312, %p313
    %p315 = scmp.ne.s32.totalorder %s301, %s302
    %p316 = scmp.eq.s32.totalorder %s30, 5
    %p317 = por %p315, %p316
    %p319 = scmp.ne.s32.totalorder %s302, %s318
    %p320 = scmp.eq.s32.totalorder %s30, 0
    %p321 = por %p319, %p320
    %s322 = ssub.s32 %s32, %s39
    %p323 = scmp.eq.s32.totalorder %s322, 0
    %s325 = sadd.s32 %s324, 1
    %s326 = scalar_select %p323, %s324, %s325
    %p329 = pneg %p323
    %p330 = scmp.eq.s32.totalorder %s24, 5
    %p331 = por %p329, %p330
    %p332 = scmp.ne.s32.totalorder %s324, %s327
    %p333 = scmp.eq.s32.totalorder %s24, 0
    %p334 = por %p332, %p333
    %p335 = scmp.ne.s32.totalorder %s324, %s327
    %p336 = scmp.eq.s32.totalorder %s29, 5
    %p337 = por %p335, %p336
    %p338 = scmp.ne.s32.totalorder %s327, %s328
    %p339 = scmp.eq.s32.totalorder %s29, 0
    %p340 = por %p338, %p339
    %p341 = scmp.ne.s32.totalorder %s327, %s328
    %p342 = scmp.eq.s32.totalorder %s30, 5
    %p343 = por %p341, %p342
    %p345 = scmp.ne.s32.totalorder %s328, %s344
    %p346 = scmp.eq.s32.totalorder %s30, 0
    %p347 = por %p345, %p346
    %s348 = ssub.s32 %s32, %s39
    %p349 = scmp.eq.s32.totalorder %s348, 0
    %s351 = sadd.s32 %s350, 1
    %s352 = scalar_select %p349, %s350, %s351
    %p355 = pneg %p349
    %p356 = scmp.eq.s32.totalorder %s24, 5
    %p357 = por %p355, %p356
    %p358 = scmp.ne.s32.totalorder %s350, %s353
    %p359 = scmp.eq.s32.totalorder %s24, 0
    %p360 = por %p358, %p359
    %p361 = scmp.ne.s32.totalorder %s350, %s353
    %p362 = scmp.eq.s32.totalorder %s29, 5
    %p363 = por %p361, %p362
    %p364 = scmp.ne.s32.totalorder %s353, %s354
    %p365 = scmp.eq.s32.totalorder %s29, 0
    %p366 = por %p364, %p365
    %p367 = scmp.ne.s32.totalorder %s353, %s354
    %p368 = scmp.eq.s32.totalorder %s30, 5
    %p369 = por %p367, %p368
    %p371 = scmp.ne.s32.totalorder %s354, %s370
    %p372 = scmp.eq.s32.totalorder %s30, 0
    %p373 = por %p371, %p372
    %s374 = ssub.s32 %s32, %s39
    %p375 = scmp.eq.s32.totalorder %s374, 0
    %s377 = sadd.s32 %s376, 1
    %s378 = scalar_select %p375, %s376, %s377
    %p381 = pneg %p375
    %p382 = scmp.eq.s32.totalorder %s24, 5
    %p383 = por %p381, %p382
    %p384 = scmp.ne.s32.totalorder %s376, %s379
    %p385 = scmp.eq.s32.totalorder %s24, 0
    %p386 = por %p384, %p385
    %p387 = scmp.ne.s32.totalorder %s376, %s379
    %p388 = scmp.eq.s32.totalorder %s29, 5
    %p389 = por %p387, %p388
    %p390 = scmp.ne.s32.totalorder %s379, %s380
    %p391 = scmp.eq.s32.totalorder %s29, 0
    %p392 = por %p390, %p391
    %p393 = scmp.ne.s32.totalorder %s379, %s380
    %p394 = scmp.eq.s32.totalorder %s30, 5
    %p395 = por %p393, %p394
    %p397 = scmp.ne.s32.totalorder %s380, %s396
    %p398 = scmp.eq.s32.totalorder %s30, 0
    %p399 = por %p397, %p398
    %s400 = ssub.s32 %s32, %s39
    %p401 = scmp.eq.s32.totalorder %s400, 0
    %s403 = sadd.s32 %s402, 1
    %s404 = scalar_select %p401, %s402, %s403
    %p407 = pneg %p401
    %p408 = scmp.eq.s32.totalorder %s24, 5
    %p409 = por %p407, %p408
    %p410 = scmp.ne.s32.totalorder %s402, %s405
    %p411 = scmp.eq.s32.totalorder %s24, 0
    %p412 = por %p410, %p411
    %p413 = scmp.ne.s32.totalorder %s402, %s405
    %p414 = scmp.eq.s32.totalorder %s29, 5
    %p415 = por %p413, %p414
    %p416 = scmp.ne.s32.totalorder %s405, %s406
    %p417 = scmp.eq.s32.totalorder %s29, 0
    %p418 = por %p416, %p417
    %p419 = scmp.ne.s32.totalorder %s405, %s406
    %p420 = scmp.eq.s32.totalorder %s30, 5
    %p421 = por %p419, %p420
    %p423 = scmp.ne.s32.totalorder %s406, %s422
    %p424 = scmp.eq.s32.totalorder %s30, 0
    %p425 = por %p423, %p424
    %s427 = sadd.s32 %s426, 1
    %p430 = scmp.eq.s32.totalorder %s24, 5
    %p431 = scmp.ne.s32.totalorder %s426, %s428
    %p432 = scmp.eq.s32.totalorder %s24, 0
    %p433 = por %p431, %p432
    %p434 = scmp.ne.s32.totalorder %s426, %s428
    %p435 = scmp.eq.s32.totalorder %s29, 5
    %p436 = por %p434, %p435
    %p437 = scmp.ne.s32.totalorder %s428, %s429
    %p438 = scmp.eq.s32.totalorder %s29, 0
    %p439 = por %p437, %p438
    %p440 = scmp.ne.s32.totalorder %s428, %s429
    %p441 = scmp.eq.s32.totalorder %s30, 5
    %p442 = por %p440, %p441
    %p444 = scmp.ne.s32.totalorder %s429, %s443
    %p445 = scmp.eq.s32.totalorder %s30, 0
    %p446 = por %p444, %p445
    %s448 = sadd.s32 %s447, 1
    %p451 = scmp.eq.s32.totalorder %s24, 5
    %p452 = scmp.ne.s32.totalorder %s447, %s449
    %p453 = scmp.eq.s32.totalorder %s24, 0
    %p454 = por %p452, %p453
    %p455 = scmp.ne.s32.totalorder %s447, %s449
    %p456 = scmp.eq.s32.totalorder %s29, 5
    %p457 = por %p455, %p456
    %p458 = scmp.ne.s32.totalorder %s449, %s450
    %p459 = scmp.eq.s32.totalorder %s29, 0
    %p460 = por %p458, %p459
    %p461 = scmp.ne.s32.totalorder %s449, %s450
    %p462 = scmp.eq.s32.totalorder %s30, 5
    %p463 = por %p461, %p462
    %p465 = scmp.ne.s32.totalorder %s450, %s464
    %p466 = scmp.eq.s32.totalorder %s30, 0
    %p467 = por %p465, %p466
    %s469 = sadd.s32 %s468, 1
    %p472 = scmp.eq.s32.totalorder %s24, 5
    %p473 = scmp.ne.s32.totalorder %s468, %s470
    %p474 = scmp.eq.s32.totalorder %s24, 0
    %p475 = por %p473, %p474
    %p476 = scmp.ne.s32.totalorder %s468, %s470
    %p477 = scmp.eq.s32.totalorder %s29, 5
    %p478 = por %p476, %p477
    %p479 = scmp.ne.s32.totalorder %s470, %s471
    %p480 = scmp.eq.s32.totalorder %s29, 0
    %p481 = por %p479, %p480
    %p482 = scmp.ne.s32.totalorder %s470, %s471
    %p483 = scmp.eq.s32.totalorder %s30, 5
    %p484 = por %p482, %p483
    %p486 = scmp.ne.s32.totalorder %s471, %s485
    %p487 = scmp.eq.s32.totalorder %s30, 0
    %p488 = por %p486, %p487
    %s489 = ssub.s32 %s31, %s43
    %p490 = scmp.eq.s32.totalorder %s489, 0
    %s492 = sadd.s32 %s491, 1
    %s493 = scalar_select %p490, %s491, %s492
    %p496 = pneg %p490
    %p497 = scmp.eq.s32.totalorder %s24, 5
    %p498 = por %p496, %p497
    %p499 = scmp.ne.s32.totalorder %s491, %s494
    %p500 = scmp.eq.s32.totalorder %s24, 0
    %p501 = por %p499, %p500
    %p502 = scmp.ne.s32.totalorder %s491, %s494
    %p503 = scmp.eq.s32.totalorder %s29, 5
    %p504 = por %p502, %p503
    %p505 = scmp.ne.s32.totalorder %s494, %s495
    %p506 = scmp.eq.s32.totalorder %s29, 0
    %p507 = por %p505, %p506
    %p508 = scmp.ne.s32.totalorder %s494, %s495
    %p509 = scmp.eq.s32.totalorder %s30, 5
    %p510 = por %p508, %p509
    %p512 = scmp.ne.s32.totalorder %s495, %s511
    %p513 = scmp.eq.s32.totalorder %s30, 0
    %p514 = por %p512, %p513
    %p515 = scmp.le.s32.totalorder 1, %s24
    %p516 = scmp.lt.s32.totalorder %s24, 7
    %p517 = pnand %p515, %p516
    %p518 = pneg %p517
    // Predicated region
    $region9: #{projected_cspnet_forward.1} parent=5 // pred_check
      _
    $region10: #{projected_cspnet_forward.1} parent=5 // pred_check_branch
      %520 = sbr.rel (%p517) target = $region12
    $region11: #{projected_cspnet_forward.1} parent=5 // pred_region
      %s521 = ssub.s32 %s24, 1
      // Predicated region
      $region13: #{projected_cspnet_forward.1} parent=11 // pred_check
        %p522 = pneg %p109
      $region14: #{projected_cspnet_forward.1} parent=11 // pred_check_branch
        %524 = sbr.rel (%p522) target = $region16
      $region15: #{projected_cspnet_forward.1} parent=11 // pred_region
        _
      $region16: #{projected_cspnet_forward.1} parent=11 // pred_fallthru
        _
      // Predicated region
      $region17: #{projected_cspnet_forward.1} parent=11 // pred_check
        %p525 = pneg %p130
      $region18: #{projected_cspnet_forward.1} parent=11 // pred_check_branch
        %527 = sbr.rel (%p525) target = $region20
      $region19: #{projected_cspnet_forward.1} parent=11 // pred_region
        _
      $region20: #{projected_cspnet_forward.1} parent=11 // pred_fallthru
        _
      // Predicated region
      $region21: #{projected_cspnet_forward.1} parent=11 // pred_check
        %p528 = pneg %p439
      $region22: #{projected_cspnet_forward.1} parent=11 // pred_check_branch
        %530 = sbr.rel (%p528) target = $region24
      $region23: #{projected_cspnet_forward.1} parent=11 // pred_region
        _
      $region24: #{projected_cspnet_forward.1} parent=11 // pred_fallthru
        _
      // Predicated region
      $region25: #{projected_cspnet_forward.1} parent=11 // pred_check
        %p531 = pneg %p460
      $region26: #{projected_cspnet_forward.1} parent=11 // pred_check_branch
        %533 = sbr.rel (%p531) target = $region28
      $region27: #{projected_cspnet_forward.1} parent=11 // pred_region
        _
      $region28: #{projected_cspnet_forward.1} parent=11 // pred_fallthru
        _
      // Predicated region
      $region29: #{projected_cspnet_forward.1} parent=11 // pred_check
        %p534 = pneg %p481
      $region30: #{projected_cspnet_forward.1} parent=11 // pred_check_branch
        %536 = sbr.rel (%p534) target = $region32
      $region31: #{projected_cspnet_forward.1} parent=11 // pred_region
        _
      $region32: #{projected_cspnet_forward.1} parent=11 // pred_fallthru
        _
    $region12: #{projected_cspnet_forward.1} parent=5 // pred_fallthru
      _
    %p537 = scmp.lt.s32.totalorder %s24, 6
    // Predicated region
    $region33: #{projected_cspnet_forward.1} parent=5 // pred_check
      %p538 = pneg %p537
    $region34: #{projected_cspnet_forward.1} parent=5 // pred_check_branch
      %540 = sbr.rel (%p538) target = $region36
    $region35: #{projected_cspnet_forward.1} parent=5 // pred_region
      // Predicated region
      $region37: #{projected_cspnet_forward.1} parent=35 // pred_check
        %p541 = pneg %p56
      $region38: #{projected_cspnet_forward.1} parent=35 // pred_check_branch
        %543 = sbr.rel (%p541) target = $region40
      $region39: #{projected_cspnet_forward.1} parent=35 // pred_region
        %s544 = smul.u32 4, %s31
        %p545 = scmp.lt.s32.totalorder %s544, 7
        %s546 = scalar_select %p545, %s544, 7
        %s547 = smul.addr %s546, 4
        %s548 = scalar_lea.vmem %s0, %s547
        %s549 = smul.u32 4, %s31
      $region40: #{projected_cspnet_forward.1} parent=35 // pred_fallthru
        _
      // Predicated region
      $region41: #{projected_cspnet_forward.1} parent=35 // pred_check
        %p550 = pneg %p82
      $region42: #{projected_cspnet_forward.1} parent=35 // pred_check_branch
        %552 = sbr.rel (%p550) target = $region44
      $region43: #{projected_cspnet_forward.1} parent=35 // pred_region
        %s553 = smul.u32 32, %s31
        %p554 = scmp.lt.s32.totalorder %s553, 63
        %s555 = scalar_select %p554, %s553, 63
        %s556 = smul.addr %s555, 4
        %s557 = scalar_lea.vmem %s1, %s556
        %s558 = smul.u32 32, %s31
      $region44: #{projected_cspnet_forward.1} parent=35 // pred_fallthru
        _
      // Predicated region
      $region45: #{projected_cspnet_forward.1} parent=35 // pred_check
        %p559 = pneg %p150
      $region46: #{projected_cspnet_forward.1} parent=35 // pred_check_branch
        %561 = sbr.rel (%p559) target = $region48
      $region47: #{projected_cspnet_forward.1} parent=35 // pred_region
        %p562 = scmp.lt.s32.totalorder %s32, 2
        %s563 = scalar_select %p562, %s32, 2
        %s564 = scalar_lea.vmem %s4, %s563
      $region48: #{projected_cspnet_forward.1} parent=35 // pred_fallthru
        _
      // Predicated region
      $region49: #{projected_cspnet_forward.1} parent=35 // pred_check
        %p565 = pneg %p176
      $region50: #{projected_cspnet_forward.1} parent=35 // pred_check_branch
        %567 = sbr.rel (%p565) target = $region52
      $region51: #{projected_cspnet_forward.1} parent=35 // pred_region
        %p568 = scmp.lt.s32.totalorder %s32, 2
        %s569 = scalar_select %p568, %s32, 2
        %s570 = scalar_lea.vmem %s5, %s569
      $region52: #{projected_cspnet_forward.1} parent=35 // pred_fallthru
        _
      // Predicated region
      $region53: #{projected_cspnet_forward.1} parent=35 // pred_check
        %p571 = pneg %p202
      $region54: #{projected_cspnet_forward.1} parent=35 // pred_check_branch
        %573 = sbr.rel (%p571) target = $region56
      $region55: #{projected_cspnet_forward.1} parent=35 // pred_region
        %p574 = scmp.lt.s32.totalorder %s32, 2
        %s575 = scalar_select %p574, %s32, 2
        %s576 = smul.addr %s575, 32
        %s577 = smul.addr %s576, 4
        %s578 = scalar_lea.vmem %s6, %s577
      $region56: #{projected_cspnet_forward.1} parent=35 // pred_fallthru
        _
      // Predicated region
      $region57: #{projected_cspnet_forward.1} parent=35 // pred_check
        %p579 = pneg %p228
      $region58: #{projected_cspnet_forward.1} parent=35 // pred_check_branch
        %581 = sbr.rel (%p579) target = $region60
      $region59: #{projected_cspnet_forward.1} parent=35 // pred_region
        %p582 = scmp.lt.s32.totalorder %s32, 2
        %s583 = scalar_select %p582, %s32, 2
        %s584 = smul.addr %s583, 3
        %s585 = smul.addr %s584, 4
        %s586 = scalar_lea.vmem %s7, %s585
      $region60: #{projected_cspnet_forward.1} parent=35 // pred_fallthru
        _
      // Predicated region
      $region61: #{projected_cspnet_forward.1} parent=35 // pred_check
        %p587 = pneg %p256
      $region62: #{projected_cspnet_forward.1} parent=35 // pred_check_branch
        %589 = sbr.rel (%p587) target = $region64
      $region63: #{projected_cspnet_forward.1} parent=35 // pred_region
        %p590 = scmp.lt.s32.totalorder %s32, 2
        %s591 = scalar_select %p590, %s32, 2
        %p592 = scmp.lt.s32.totalorder %s31, 1
        %s593 = scalar_select %p592, %s31, 1
        %s594 = smul.addr %s591, 2
        %s595 = sadd.s32 %s593, %s594
        %s596 = smul.addr %s595, 4
        %s597 = scalar_lea.vmem %s8, %s596
      $region64: #{projected_cspnet_forward.1} parent=35 // pred_fallthru
        _
      // Predicated region
      $region65: #{projected_cspnet_forward.1} parent=35 // pred_check
        %p598 = pneg %p282
      $region66: #{projected_cspnet_forward.1} parent=35 // pred_check_branch
        %600 = sbr.rel (%p598) target = $region68
      $region67: #{projected_cspnet_forward.1} parent=35 // pred_region
        %p601 = scmp.lt.s32.totalorder %s32, 2
        %s602 = scalar_select %p601, %s32, 2
        %s603 = smul.addr %s602, 16
        %s604 = smul.addr %s603, 4
        %s605 = scalar_lea.vmem %s9, %s604
      $region68: #{projected_cspnet_forward.1} parent=35 // pred_fallthru
        _
      // Predicated region
      $region69: #{projected_cspnet_forward.1} parent=35 // pred_check
        %p606 = pneg %p308
      $region70: #{projected_cspnet_forward.1} parent=35 // pred_check_branch
        %608 = sbr.rel (%p606) target = $region72
      $region71: #{projected_cspnet_forward.1} parent=35 // pred_region
        %p609 = scmp.lt.s32.totalorder %s32, 2
        %s610 = scalar_select %p609, %s32, 2
        %s611 = scalar_lea.vmem %s10, %s610
      $region72: #{projected_cspnet_forward.1} parent=35 // pred_fallthru
        _
      // Predicated region
      $region73: #{projected_cspnet_forward.1} parent=35 // pred_check
        %p612 = pneg %p334
      $region74: #{projected_cspnet_forward.1} parent=35 // pred_check_branch
        %614 = sbr.rel (%p612) target = $region76
      $region75: #{projected_cspnet_forward.1} parent=35 // pred_region
        %p615 = scmp.lt.s32.totalorder %s32, 2
        %s616 = scalar_select %p615, %s32, 2
        %s617 = smul.addr %s616, 32
        %s618 = smul.addr %s617, 4
        %s619 = scalar_lea.vmem %s11, %s618
      $region76: #{projected_cspnet_forward.1} parent=35 // pred_fallthru
        _
      // Predicated region
      $region77: #{projected_cspnet_forward.1} parent=35 // pred_check
        %p620 = pneg %p360
      $region78: #{projected_cspnet_forward.1} parent=35 // pred_check_branch
        %622 = sbr.rel (%p620) target = $region80
      $region79: #{projected_cspnet_forward.1} parent=35 // pred_region
        %p623 = scmp.lt.s32.totalorder %s32, 2
        %s624 = scalar_select %p623, %s32, 2
        %s625 = scalar_lea.vmem %s12, %s624
      $region80: #{projected_cspnet_forward.1} parent=35 // pred_fallthru
        _
      // Predicated region
      $region81: #{projected_cspnet_forward.1} parent=35 // pred_check
        %p626 = pneg %p386
      $region82: #{projected_cspnet_forward.1} parent=35 // pred_check_branch
        %628 = sbr.rel (%p626) target = $region84
      $region83: #{projected_cspnet_forward.1} parent=35 // pred_region
        %p629 = scmp.lt.s32.totalorder %s32, 2
        %s630 = scalar_select %p629, %s32, 2
        %s631 = smul.addr %s630, 16
        %s632 = smul.addr %s631, 4
        %s633 = scalar_lea.vmem %s13, %s632
      $region84: #{projected_cspnet_forward.1} parent=35 // pred_fallthru
        _
      // Predicated region
      $region85: #{projected_cspnet_forward.1} parent=35 // pred_check
        %p634 = pneg %p412
      $region86: #{projected_cspnet_forward.1} parent=35 // pred_check_branch
        %636 = sbr.rel (%p634) target = $region88
      $region87: #{projected_cspnet_forward.1} parent=35 // pred_region
        %p637 = scmp.lt.s32.totalorder %s32, 2
        %s638 = scalar_select %p637, %s32, 2
        %s639 = scalar_lea.vmem %s14, %s638
      $region88: #{projected_cspnet_forward.1} parent=35 // pred_fallthru
        _
    $region36: #{projected_cspnet_forward.1} parent=5 // pred_fallthru
      _
    %p640 = scmp.le.s32.totalorder 1, %s24
    %p641 = scmp.lt.s32.totalorder %s24, 7
    %p642 = pnand %p640, %p641
    %p643 = pneg %p642
    // Predicated region
    $region89: #{projected_cspnet_forward.1} parent=5 // pred_check
      _
    $region90: #{projected_cspnet_forward.1} parent=5 // pred_check_branch
      %645 = sbr.rel (%p642) target = $region92
    $region91: #{projected_cspnet_forward.1} parent=5 // pred_region
      %s646 = ssub.s32 %s24, 1
      %s647 = smul.u32 4, %s33
      %p648 = scmp.lt.s32.totalorder %s647, 7
      %s649 = scalar_select %p648, %s647, 7
      %s650 = smul.addr %s649, 4
      %s651 = scalar_lea.vmem %s0, %s650
      %p652 = pneg %p62
      %p653 = pneg %p59
      %s654 = smul.u32 32, %s33
      %p655 = scmp.lt.s32.totalorder %s654, 63
      %s656 = scalar_select %p655, %s654, 63
      %s657 = smul.addr %s656, 4
      %s658 = scalar_lea.vmem %s1, %s657
      %p659 = pneg %p88
      %p660 = pneg %p85
      %p661 = pneg %p109
      %p662 = pneg %p106
      %p663 = pneg %p130
      %p664 = pneg %p127
      %p665 = scmp.lt.s32.totalorder %s34, 2
      %s666 = scalar_select %p665, %s34, 2
      %s667 = scalar_lea.vmem %s4, %s666
      %p668 = pneg %p156
      %p669 = pneg %p153
      %p670 = scmp.lt.s32.totalorder %s34, 2
      %s671 = scalar_select %p670, %s34, 2
      %s672 = scalar_lea.vmem %s5, %s671
      %p673 = pneg %p182
      %p674 = pneg %p179
      %p675 = scmp.lt.s32.totalorder %s34, 2
      %s676 = scalar_select %p675, %s34, 2
      %s677 = smul.addr %s676, 32
      %s678 = smul.addr %s677, 4
      %s679 = scalar_lea.vmem %s6, %s678
      %p680 = pneg %p208
      %p681 = pneg %p205
      %p682 = scmp.lt.s32.totalorder %s34, 2
      %s683 = scalar_select %p682, %s34, 2
      %s684 = smul.addr %s683, 3
      %s685 = smul.addr %s684, 4
      %s686 = scalar_lea.vmem %s7, %s685
      %p687 = pneg %p234
      %p688 = pneg %p231
      %p689 = scmp.lt.s32.totalorder %s34, 2
      %s690 = scalar_select %p689, %s34, 2
      %p691 = scmp.lt.s32.totalorder %s33, 1
      %s692 = scalar_select %p691, %s33, 1
      %s693 = smul.addr %s690, 2
      %s694 = sadd.s32 %s692, %s693
      %s695 = smul.addr %s694, 4
      %s696 = scalar_lea.vmem %s8, %s695
      %p697 = pneg %p262
      %p698 = pneg %p259
      %p699 = scmp.lt.s32.totalorder %s34, 2
      %s700 = scalar_select %p699, %s34, 2
      %s701 = smul.addr %s700, 16
      %s702 = smul.addr %s701, 4
      %s703 = scalar_lea.vmem %s9, %s702
      %p704 = pneg %p288
      %p705 = pneg %p285
      %p706 = scmp.lt.s32.totalorder %s34, 2
      %s707 = scalar_select %p706, %s34, 2
      %s708 = scalar_lea.vmem %s10, %s707
      %p709 = pneg %p314
      %p710 = pneg %p311
      %p711 = scmp.lt.s32.totalorder %s34, 2
      %s712 = scalar_select %p711, %s34, 2
      %s713 = smul.addr %s712, 32
      %s714 = smul.addr %s713, 4
      %s715 = scalar_lea.vmem %s11, %s714
      %p716 = pneg %p340
      %p717 = pneg %p337
      %p718 = scmp.lt.s32.totalorder %s34, 2
      %s719 = scalar_select %p718, %s34, 2
      %s720 = scalar_lea.vmem %s12, %s719
      %p721 = pneg %p366
      %p722 = pneg %p363
      %p723 = scmp.lt.s32.totalorder %s34, 2
      %s724 = scalar_select %p723, %s34, 2
      %s725 = smul.addr %s724, 16
      %s726 = smul.addr %s725, 4
      %s727 = scalar_lea.vmem %s13, %s726
      %p728 = pneg %p392
      %p729 = pneg %p389
      %p730 = scmp.lt.s32.totalorder %s34, 2
      %s731 = scalar_select %p730, %s34, 2
      %s732 = scalar_lea.vmem %s14, %s731
      %p733 = pneg %p418
      %p734 = pneg %p415
      %p735 = pneg %p439
      %p736 = pneg %p436
      %p737 = pneg %p460
      %p738 = pneg %p457
      %p739 = pneg %p481
      %p740 = pneg %p478
      %p741 = pneg %p507
      %p742 = pneg %p504
      %s743 = smul.u32 4, %s33
      %p744 = scmp.lt.s32.totalorder %s743, 7
      %s745 = scalar_select %p744, %s743, 7
      %s746 = smul.addr %s745, 8
      %s747 = scalar_lea.vmem %s18, %s746
      %s748 = smul.u32 4, %s33
      %p749 = scmp.lt.s32.totalorder %s748, 7
      %s750 = scalar_select %p749, %s748, 7
      %s751 = smul.addr %s750, 4
      %s752 = scalar_lea.vmem %s0, %s751
      %s753 = smul.u32 4, %s33
      %s754 = smul.u32 32, %s33
      %p755 = scmp.lt.s32.totalorder %s754, 63
      %s756 = scalar_select %p755, %s754, 63
      %s757 = smul.addr %s756, 4
      %s758 = scalar_lea.vmem %s1, %s757
      %s759 = smul.u32 32, %s33
      %p760 = scmp.lt.s32.totalorder %s34, 2
      %s761 = scalar_select %p760, %s34, 2
      %s762 = scalar_lea.vmem %s4, %s761
      %p763 = scmp.lt.s32.totalorder %s34, 2
      %s764 = scalar_select %p763, %s34, 2
      %s765 = scalar_lea.vmem %s5, %s764
      %p766 = scmp.lt.s32.totalorder %s34, 2
      %s767 = scalar_select %p766, %s34, 2
      %s768 = smul.addr %s767, 32
      %s769 = smul.addr %s768, 4
      %s770 = scalar_lea.vmem %s6, %s769
      %p771 = scmp.lt.s32.totalorder %s34, 2
      %s772 = scalar_select %p771, %s34, 2
      %s773 = smul.addr %s772, 3
      %s774 = smul.addr %s773, 4
      %s775 = scalar_lea.vmem %s7, %s774
      %p776 = scmp.lt.s32.totalorder %s34, 2
      %s777 = scalar_select %p776, %s34, 2
      %p778 = scmp.lt.s32.totalorder %s33, 1
      %s779 = scalar_select %p778, %s33, 1
      %s780 = smul.addr %s777, 2
      %s781 = sadd.s32 %s779, %s780
      %s782 = smul.addr %s781, 4
      %s783 = scalar_lea.vmem %s8, %s782
      %p784 = scmp.lt.s32.totalorder %s34, 2
      %s785 = scalar_select %p784, %s34, 2
      %s786 = smul.addr %s785, 16
      %s787 = smul.addr %s786, 4
      %s788 = scalar_lea.vmem %s9, %s787
      %p789 = scmp.lt.s32.totalorder %s34, 2
      %s790 = scalar_select %p789, %s34, 2
      %s791 = scalar_lea.vmem %s10, %s790
      %p792 = scmp.lt.s32.totalorder %s34, 2
      %s793 = scalar_select %p792, %s34, 2
      %s794 = smul.addr %s793, 32
      %s795 = smul.addr %s794, 4
      %s796 = scalar_lea.vmem %s11, %s795
      %p797 = scmp.lt.s32.totalorder %s34, 2
      %s798 = scalar_select %p797, %s34, 2
      %s799 = scalar_lea.vmem %s12, %s798
      %p800 = scmp.lt.s32.totalorder %s34, 2
      %s801 = scalar_select %p800, %s34, 2
      %s802 = smul.addr %s801, 16
      %s803 = smul.addr %s802, 4
      %s804 = scalar_lea.vmem %s13, %s803
      %p805 = scmp.lt.s32.totalorder %s34, 2
      %s806 = scalar_select %p805, %s34, 2
      %s807 = scalar_lea.vmem %s14, %s806
      %s808 = smul.u32 4, %s33
      %p809 = scmp.lt.s32.totalorder %s808, 7
      %s810 = scalar_select %p809, %s808, 7
      %s811 = smul.addr %s810, 8
      %s812 = scalar_lea.vmem %s18, %s811
      %s813 = smul.u32 4, %s33
      %p815 = scmp.eq.s32.totalorder %s34, 0
      // Predicated region
      $region93: #{projected_cspnet_forward.1} parent=91 // pred_check
        %p816 = pneg %p815
      $region94: #{projected_cspnet_forward.1} parent=91 // pred_check_branch
        %818 = sbr.rel (%p816) target = $region96
      $region95: #{projected_cspnet_forward.1} parent=91 // pred_region
        %v819 = vld [vmem:[%s752] sm:$0xf]
        %v820 = vld [vmem:[%s752 + $0x4] sm:$0xf]
        %v821 = vld [vmem:[%s752 + $0x8] sm:$0xf]
        %v822 = vld [vmem:[%s752 + $0xc] sm:$0xf]
        %v823 = vld [vmem:[%s3] sm:$0xf]
        %v824 = vld [vmem:[%s3 + $0x4] sm:$0xf]
        %v825 = vld [vmem:[%s3 + $0x8] sm:$0xf]
        %v826 = vld [vmem:[%s3 + $0xc] sm:$0xf]
        %v827 = vld [vmem:[%s3 + $0x10] sm:$0xf]
        %v828 = vld [vmem:[%s3 + $0x14] sm:$0xf]
        %v829 = vld [vmem:[%s3 + $0x18] sm:$0xf]
        %v830 = vld [vmem:[%s3 + $0x1c] sm:$0xf]
        %v831 = vld [vmem:[%s3 + $0x20] sm:$0xf]
        %v832 = vld [vmem:[%s3 + $0x24] sm:$0xf]
        %v833 = vld [vmem:[%s3 + $0x28] sm:$0xf]
        %v834 = vld [vmem:[%s3 + $0x2c] sm:$0xf]
        %v835 = vld [vmem:[%s3 + $0x30] sm:$0xf]
        %v836 = vld [vmem:[%s3 + $0x34] sm:$0xf]
        %v837 = vld [vmem:[%s3 + $0x38] sm:$0xf]
        %v838 = vld [vmem:[%s3 + $0x3c] sm:$0xf]
        %v839 = vld [vmem:[%s2] sm:$0x1]
        %v841 = vlaneseq
        %v842 = vshrl.u32 %v841, 7
        %v843 = vsub.s32 0, %v842
        %v844 = vrot.slane %v839, %v843
        %v850 = vunpack.c.l.b16 %v819
        %v851 = vunpack.c.l.b16 %v820
        %v852 = vunpack.c.l.b16 %v821
        %v853 = vunpack.c.l.b16 %v822
        %v854 = vpack.c.b16 %v851, %v850
        %v855 = vpack.c.b16 %v853, %v852
        %v874 = vunpack.c.l.b16 %v823
        %v875 = vunpack.c.l.b16 %v824
        %v876 = vunpack.c.l.b16 %v825
        %v877 = vunpack.c.l.b16 %v826
        %v878 = vunpack.c.l.b16 %v827
        %v879 = vunpack.c.l.b16 %v828
        %v880 = vunpack.c.l.b16 %v829
        %v881 = vunpack.c.l.b16 %v830
        %v882 = vunpack.c.l.b16 %v831
        %v883 = vunpack.c.l.b16 %v832
        %v884 = vunpack.c.l.b16 %v833
        %v885 = vunpack.c.l.b16 %v834
        %v886 = vunpack.c.l.b16 %v835
        %v887 = vunpack.c.l.b16 %v836
        %v888 = vunpack.c.l.b16 %v837
        %v889 = vunpack.c.l.b16 %v838
        %v890 = vpack.c.b16 %v875, %v874
        %v891 = vpack.c.b16 %v877, %v876
        %v892 = vpack.c.b16 %v879, %v878
        %v893 = vpack.c.b16 %v881, %v880
        %v894 = vpack.c.b16 %v883, %v882
        %v895 = vpack.c.b16 %v885, %v884
        %v896 = vpack.c.b16 %v887, %v886
        %v897 = vpack.c.b16 %v889, %v888
        %906 = vmatprep.subr.bf16.mxu0 0
        %907 = vmatpush1.bf16.msra.mxu0 %v890
        %908 = vmatprep.subr.bf16.mxu0 0
        %909 = vmatpush1.bf16.msra.mxu0 %v891
        %910 = vmatprep.subr.bf16.mxu0 0
        %911 = vmatpush1.bf16.msra.mxu0 %v892
        %912 = vmatprep.subr.bf16.mxu0 0
        %913 = vmatpush1.bf16.msra.mxu0 %v893
        %914 = vmatprep.subr.bf16.mxu0 0
        %915 = vmatpush1.bf16.msra.mxu0 %v894
        %916 = vmatprep.subr.bf16.mxu0 0
        %917 = vmatpush1.bf16.msra.mxu0 %v895
        %918 = vmatprep.subr.bf16.mxu0 0
        %919 = vmatpush1.bf16.msra.mxu0 %v896
        %920 = vmatprep.subr.bf16.mxu0 0
        %921 = vmatpush1.bf16.msra.mxu0 %v897
        %922 = vmatprep.subr.bf16.mxu0 0
        %923 = vmatpush1.bf16.msra.mxu0 0
        %924 = vmatprep.subr.bf16.mxu0 0
        %925 = vmatpush1.bf16.msra.mxu0 0
        %926 = vmatprep.subr.bf16.mxu0 0
        %927 = vmatpush1.bf16.msra.mxu0 0
        %928 = vmatprep.subr.bf16.mxu0 0
        %929 = vmatpush1.bf16.msra.mxu0 0
        %930 = vmatprep.subr.bf16.mxu0 0
        %931 = vmatpush1.bf16.msra.mxu0 0
        %932 = vmatprep.subr.bf16.mxu0 0
        %933 = vmatpush1.bf16.msra.mxu0 0
        %934 = vmatprep.subr.bf16.mxu0 0
        %935 = vmatpush1.bf16.msra.mxu0 0
        %936 = vmatprep.subr.bf16.mxu0 0
        %937 = vmatpush1.bf16.msra.mxu0 0
        %938 = vmatprep.mubr.bf16.mxu0 0
        %939 = vmatmul.mubr.bf16.gmra.mrb[0].mxu0 %v854
        %v940 = vpop.f32.mrb[0].mxu0
        %v941 = vadd.f32 %v844, %v940
        %v942 = vpop.f32.mrb[0].mxu0
        %v943 = vpop.f32.mrb[0].mxu0
        %v944 = vadd.f32 %v844, %v943
        %v945 = vpop.f32.mrb[0].mxu0
        %946 = vmatprep.mubr.bf16.mxu0 0
        %947 = vmatmul.mubr.bf16.gmra.mrb[0].mxu0 %v855
        %v948 = vpop.f32.mrb[0].mxu0
        %v949 = vadd.f32 %v844, %v948
        %v950 = vpop.f32.mrb[0].mxu0
        %v951 = vpop.f32.mrb[0].mxu0
        %v952 = vadd.f32 %v844, %v951
        %v953 = vpop.f32.mrb[0].mxu0
        %954 = vdwg.mxu0
        %v955 = vxor.u32 %v941, 2147483648
        %v956 = vxor.u32 %v944, 2147483648
        %v957 = vxor.u32 %v949, 2147483648
        %v958 = vxor.u32 %v952, 2147483648
        %v959 = vmul.f32 %v955, 1.442695
        %v960 = vpow.pop %v959
        %v961 = vmul.f32 %v956, 1.442695
        %v962 = vpow.pop %v961
        %v963 = vmul.f32 %v957, 1.442695
        %v964 = vpow.pop %v963
        %v965 = vmul.f32 %v958, 1.442695
        %v966 = vpow.pop %v965
        %v967 = vadd.f32 %v960, 1.0
        %v968 = vadd.f32 %v962, 1.0
        %v969 = vadd.f32 %v964, 1.0
        %v970 = vadd.f32 %v966, 1.0
        %v971 = vrcp.pop %v967
        %v972 = vmul.f32 1.0, %v971
        %v973 = vrcp.pop %v968
        %v974 = vmul.f32 1.0, %v973
        %v975 = vrcp.pop %v969
        %v976 = vmul.f32 1.0, %v975
        %v977 = vrcp.pop %v970
        %v978 = vmul.f32 1.0, %v977
        %v979 = vmul.f32 %v941, %v972
        %v980 = vmul.f32 %v944, %v974
        %v981 = vmul.f32 %v949, %v976
        %v982 = vmul.f32 %v952, %v978
        %983 = vst [vmem:[#allocation2] sm:$0xff] %v979
        %984 = vst [vmem:[#allocation2 + $0x8] sm:$0xff] %v980
        %985 = vst [vmem:[#allocation2 + $0x10] sm:$0xff] %v981
        %986 = vst [vmem:[#allocation2 + $0x18] sm:$0xff] %v982
      $region96: #{projected_cspnet_forward.1} parent=91 // pred_fallthru
        _
      %v987 = vld [vmem:[#allocation2] sm:$0xff]
      %v988 = vld [vmem:[#allocation2 + $0x8] sm:$0xff]
      %v989 = vld [vmem:[#allocation2 + $0x10] sm:$0xff]
      %v990 = vld [vmem:[#allocation2 + $0x18] sm:$0xff]
      %991 = vadd.xlane.f32.xlu0 %v987
      %v992 = vpop.xlane.xlu0 %991
      %993 = vadd.xlane.f32.xlu0 %v988
      %v994 = vpop.xlane.xlu0 %993
      %995 = vadd.xlane.f32.xlu0 %v989
      %v996 = vpop.xlane.xlu0 %995
      %997 = vadd.xlane.f32.xlu0 %v990
      %v998 = vpop.xlane.xlu0 %997
      %v999 = vrcp.pop 128.0
      %v1000 = vmul.f32 %v992, %v999
      %v1001 = vmul.f32 %v994, %v999
      %v1002 = vmul.f32 %v996, %v999
      %v1003 = vmul.f32 %v998, %v999
      %v1004 = vsub.f32 %v987, %v1000
      %v1005 = vsub.f32 %v988, %v1001
      %v1006 = vsub.f32 %v989, %v1002
      %v1007 = vsub.f32 %v990, %v1003
      %v1008 = vmul.f32 %v1004, %v1004
      %v1009 = vmul.f32 %v1005, %v1005
      %v1010 = vmul.f32 %v1006, %v1006
      %v1011 = vmul.f32 %v1007, %v1007
      %1012 = vadd.xlane.f32.xlu0 %v1008
      %v1013 = vpop.xlane.xlu0 %1012
      %1014 = vadd.xlane.f32.xlu0 %v1009
      %v1015 = vpop.xlane.xlu0 %1014
      %1016 = vadd.xlane.f32.xlu0 %v1010
      %v1017 = vpop.xlane.xlu0 %1016
      %1018 = vadd.xlane.f32.xlu0 %v1011
      %v1019 = vpop.xlane.xlu0 %1018
      %v1020 = vmul.f32 %v1013, %v999
      %v1021 = vmul.f32 %v1015, %v999
      %v1022 = vmul.f32 %v1017, %v999
      %v1023 = vmul.f32 %v1019, %v999
      %v1024 = vadd.f32 %v1020, 1e-05
      %v1025 = vadd.f32 %v1021, 1e-05
      %v1026 = vadd.f32 %v1022, 1e-05
      %v1027 = vadd.f32 %v1023, 1e-05
      %v1028 = vrsqrt.pop %v1024
      %v1029 = vrsqrt.pop %v1025
      %v1030 = vrsqrt.pop %v1026
      %v1031 = vrsqrt.pop %v1027
      %v1032 = vmul.f32 %v1004, %v1028
      %v1033 = vmul.f32 %v1005, %v1029
      %v1034 = vmul.f32 %v1006, %v1030
      %v1035 = vmul.f32 %v1007, %v1031
      %v1036 = vld [vmem:[%s762] sm:$0x1]
      %v1038 = vlaneseq
      %v1039 = vshrl.u32 %v1038, 7
      %v1040 = vsub.s32 0, %v1039
      %v1041 = vrot.slane %v1036, %v1040
      %v1043 = vmul.f32 %v1032, %v1041
      %v1044 = vmul.f32 %v1033, %v1041
      %v1045 = vmul.f32 %v1034, %v1041
      %v1046 = vmul.f32 %v1035, %v1041
      %v1047 = vld [vmem:[%s765] sm:$0x1]
      %v1049 = vlaneseq
      %v1050 = vshrl.u32 %v1049, 7
      %v1051 = vsub.s32 0, %v1050
      %v1052 = vrot.slane %v1047, %v1051
      %v1054 = vadd.f32 %v1043, %v1052
      %v1055 = vadd.f32 %v1044, %v1052
      %v1056 = vadd.f32 %v1045, %v1052
      %v1057 = vadd.f32 %v1046, %v1052
      %v1058 = vpack.c.bf16 %v1055, %v1054
      %v1059 = vpack.c.bf16 %v1057, %v1056
      %v1060 = vld [vmem:[%s770] sm:$0xff]
      %v1061 = vld [vmem:[%s770 + $0x8] sm:$0xff]
      %v1062 = vld [vmem:[%s770 + $0x10] sm:$0xff]
      %v1063 = vld [vmem:[%s770 + $0x18] sm:$0xff]
      %v1064 = vld [vmem:[%s770 + $0x20] sm:$0xff]
      %v1065 = vld [vmem:[%s770 + $0x28] sm:$0xff]
      %v1066 = vld [vmem:[%s770 + $0x30] sm:$0xff]
      %v1067 = vld [vmem:[%s770 + $0x38] sm:$0xff]
      %v1068 = vld [vmem:[%s770 + $0x40] sm:$0xff]
      %v1069 = vld [vmem:[%s770 + $0x48] sm:$0xff]
      %v1070 = vld [vmem:[%s770 + $0x50] sm:$0xff]
      %v1071 = vld [vmem:[%s770 + $0x58] sm:$0xff]
      %v1072 = vld [vmem:[%s770 + $0x60] sm:$0xff]
      %v1073 = vld [vmem:[%s770 + $0x68] sm:$0xff]
      %v1074 = vld [vmem:[%s770 + $0x70] sm:$0xff]
      %v1075 = vld [vmem:[%s770 + $0x78] sm:$0xff]
      %v1092 = vunpack.c.l.b16 %v1060
      %v1093 = vunpack.c.h.b16 %v1060
      %v1094 = vunpack.c.l.b16 %v1061
      %v1095 = vunpack.c.h.b16 %v1061
      %v1096 = vunpack.c.l.b16 %v1062
      %v1097 = vunpack.c.h.b16 %v1062
      %v1098 = vunpack.c.l.b16 %v1063
      %v1099 = vunpack.c.h.b16 %v1063
      %v1100 = vunpack.c.l.b16 %v1064
      %v1101 = vunpack.c.h.b16 %v1064
      %v1102 = vunpack.c.l.b16 %v1065
      %v1103 = vunpack.c.h.b16 %v1065
      %v1104 = vunpack.c.l.b16 %v1066
      %v1105 = vunpack.c.h.b16 %v1066
      %v1106 = vunpack.c.l.b16 %v1067
      %v1107 = vunpack.c.h.b16 %v1067
      %v1108 = vunpack.c.l.b16 %v1068
      %v1109 = vunpack.c.h.b16 %v1068
      %v1110 = vunpack.c.l.b16 %v1069
      %v1111 = vunpack.c.h.b16 %v1069
      %v1112 = vunpack.c.l.b16 %v1070
      %v1113 = vunpack.c.h.b16 %v1070
      %v1114 = vunpack.c.l.b16 %v1071
      %v1115 = vunpack.c.h.b16 %v1071
      %v1116 = vunpack.c.l.b16 %v1072
      %v1117 = vunpack.c.h.b16 %v1072
      %v1118 = vunpack.c.l.b16 %v1073
      %v1119 = vunpack.c.h.b16 %v1073
      %v1120 = vunpack.c.l.b16 %v1074
      %v1121 = vunpack.c.h.b16 %v1074
      %v1122 = vunpack.c.l.b16 %v1075
      %v1123 = vunpack.c.h.b16 %v1075
      %v1124 = vpack.c.b16 %v1094, %v1092
      %v1125 = vpack.c.b16 %v1095, %v1093
      %v1126 = vpack.c.b16 %v1098, %v1096
      %v1127 = vpack.c.b16 %v1099, %v1097
      %v1128 = vpack.c.b16 %v1102, %v1100
      %v1129 = vpack.c.b16 %v1103, %v1101
      %v1130 = vpack.c.b16 %v1106, %v1104
      %v1131 = vpack.c.b16 %v1107, %v1105
      %v1132 = vpack.c.b16 %v1110, %v1108
      %v1133 = vpack.c.b16 %v1111, %v1109
      %v1134 = vpack.c.b16 %v1114, %v1112
      %v1135 = vpack.c.b16 %v1115, %v1113
      %v1136 = vpack.c.b16 %v1118, %v1116
      %v1137 = vpack.c.b16 %v1119, %v1117
      %v1138 = vpack.c.b16 %v1122, %v1120
      %v1139 = vpack.c.b16 %v1123, %v1121
      %1156 = vmatprep.subr.bf16.mxu0 %v1125
      %1157 = vmatpush1.bf16.msra.mxu0 %v1124
      %1158 = vmatprep.subr.bf16.mxu0 %v1127
      %1159 = vmatpush1.bf16.msra.mxu0 %v1126
      %1160 = vmatprep.subr.bf16.mxu0 %v1129
      %1161 = vmatpush1.bf16.msra.mxu0 %v1128
      %1162 = vmatprep.subr.bf16.mxu0 %v1131
      %1163 = vmatpush1.bf16.msra.mxu0 %v1130
      %1164 = vmatprep.subr.bf16.mxu0 %v1133
      %1165 = vmatpush1.bf16.msra.mxu0 %v1132
      %1166 = vmatprep.subr.bf16.mxu0 %v1135
      %1167 = vmatpush1.bf16.msra.mxu0 %v1134
      %1168 = vmatprep.subr.bf16.mxu0 %v1137
      %1169 = vmatpush1.bf16.msra.mxu0 %v1136
      %1170 = vmatprep.subr.bf16.mxu0 %v1139
      %1171 = vmatpush1.bf16.msra.mxu0 %v1138
      %1172 = vmatprep.subr.bf16.mxu0 0
      %1173 = vmatpush1.bf16.msra.mxu0 0
      %1174 = vmatprep.subr.bf16.mxu0 0
      %1175 = vmatpush1.bf16.msra.mxu0 0
      %1176 = vmatprep.subr.bf16.mxu0 0
      %1177 = vmatpush1.bf16.msra.mxu0 0
      %1178 = vmatprep.subr.bf16.mxu0 0
      %1179 = vmatpush1.bf16.msra.mxu0 0
      %1180 = vmatprep.subr.bf16.mxu0 0
      %1181 = vmatpush1.bf16.msra.mxu0 0
      %1182 = vmatprep.subr.bf16.mxu0 0
      %1183 = vmatpush1.bf16.msra.mxu0 0
      %1184 = vmatprep.subr.bf16.mxu0 0
      %1185 = vmatpush1.bf16.msra.mxu0 0
      %1186 = vmatprep.subr.bf16.mxu0 0
      %1187 = vmatpush1.bf16.msra.mxu0 0
      %1188 = vmatprep.mubr.bf16.mxu0 0
      %1189 = vmatmul.mubr.bf16.gmra.mrb[0].mxu0 %v1058
      %v1190 = vpop.f32.mrb[0].mxu0
      %v1191 = vadd.f32 0.0, %v1190
      %v1192 = vpop.f32.mrb[0].mxu0
      %v1193 = vadd.f32 0.0, %v1192
      %v1194 = vpop.f32.mrb[0].mxu0
      %v1195 = vadd.f32 0.0, %v1194
      %v1196 = vpop.f32.mrb[0].mxu0
      %v1197 = vadd.f32 0.0, %v1196
      %1198 = vmatprep.mubr.bf16.mxu0 0
      %1199 = vmatmul.mubr.bf16.gmra.mrb[0].mxu0 %v1059
      %v1200 = vpop.f32.mrb[0].mxu0
      %v1201 = vadd.f32 0.0, %v1200
      %v1202 = vpop.f32.mrb[0].mxu0
      %v1203 = vadd.f32 0.0, %v1202
      %v1204 = vpop.f32.mrb[0].mxu0
      %v1205 = vadd.f32 0.0, %v1204
      %v1206 = vpop.f32.mrb[0].mxu0
      %v1207 = vadd.f32 0.0, %v1206
      %1208 = vdwg.mxu0
      %v1209 = vld [vmem:[%s783] sm:$0xf]
      %v1212 = vunpack.c.l.s4 1966171168
      %v1213 = vunpack.c.0.s8 %v1212
      %v1214 = vlaneseq
      %v1215 = vshrl.u32 %v1214, 7
      %v1216 = vsub.s32 %v1213, %v1215
      %v1217 = vrot.slane %v1209, %v1216
      %v1218 = vcombine.high %v1217, %v1217
      %v1220 = vunpack.c.l.s4 1966171168
      %v1221 = vunpack.c.0.s8 %v1220
      %v1222 = vlaneseq
      %v1223 = vshrl.u32 %v1222, 7
      %v1224 = vsub.s32 %v1221, %v1223
      %v1225 = vrot.slane %v1217, %v1224
      %v1227 = vunpack.c.l.s4 1966171168
      %v1228 = vunpack.c.0.s8 %v1227
      %v1229 = vlaneseq
      %v1230 = vshrl.u32 %v1229, 7
      %v1231 = vsub.s32 %v1228, %v1230
      %v1232 = vrot.slane %v1218, %v1231
      %v1233 = vcombine.high %v1225, %v1225
      %v1234 = vcombine.high %v1232, %v1232
      %v1235 = vlaneseq
      %v1236 = vshrl.u32 %v1235, 7
      %v1237 = vsub.s32 0, %v1236
      %v1238 = vrot.slane %v1225, %v1237
      %v1239 = vlaneseq
      %v1240 = vshrl.u32 %v1239, 7
      %v1241 = vsub.s32 0, %v1240
      %v1242 = vrot.slane %v1232, %v1241
      %v1243 = vlaneseq
      %v1244 = vshrl.u32 %v1243, 7
      %v1245 = vsub.s32 0, %v1244
      %v1246 = vrot.slane %v1233, %v1245
      %v1247 = vlaneseq
      %v1248 = vshrl.u32 %v1247, 7
      %v1249 = vsub.s32 0, %v1248
      %v1250 = vrot.slane %v1234, %v1249
      %v1255 = vadd.f32 %v1191, %v1238
      %v1256 = vadd.f32 %v1195, %v1242
      %v1257 = vadd.f32 %v1201, %v1246
      %v1258 = vadd.f32 %v1205, %v1250
      %v1259 = vld [vmem:[%s758] sm:$0xf]
      %v1260 = vld [vmem:[%s758 + $0x4] sm:$0xf]
      %v1261 = vld [vmem:[%s758 + $0x8] sm:$0xf]
      %v1262 = vld [vmem:[%s758 + $0xc] sm:$0xf]
      %v1263 = vld [vmem:[%s758 + $0x10] sm:$0xf]
      %v1264 = vld [vmem:[%s758 + $0x14] sm:$0xf]
      %v1265 = vld [vmem:[%s758 + $0x18] sm:$0xf]
      %v1266 = vld [vmem:[%s758 + $0x1c] sm:$0xf]
      %v1267 = vld [vmem:[%s758 + $0x20] sm:$0xf]
      %v1268 = vld [vmem:[%s758 + $0x24] sm:$0xf]
      %v1269 = vld [vmem:[%s758 + $0x28] sm:$0xf]
      %v1270 = vld [vmem:[%s758 + $0x2c] sm:$0xf]
      %v1271 = vld [vmem:[%s758 + $0x30] sm:$0xf]
      %v1272 = vld [vmem:[%s758 + $0x34] sm:$0xf]
      %v1273 = vld [vmem:[%s758 + $0x38] sm:$0xf]
      %v1274 = vld [vmem:[%s758 + $0x3c] sm:$0xf]
      %v1275 = vld [vmem:[%s758 + $0x40] sm:$0xf]
      %v1276 = vld [vmem:[%s758 + $0x44] sm:$0xf]
      %v1277 = vld [vmem:[%s758 + $0x48] sm:$0xf]
      %v1278 = vld [vmem:[%s758 + $0x4c] sm:$0xf]
      %v1279 = vld [vmem:[%s758 + $0x50] sm:$0xf]
      %v1280 = vld [vmem:[%s758 + $0x54] sm:$0xf]
      %v1281 = vld [vmem:[%s758 + $0x58] sm:$0xf]
      %v1282 = vld [vmem:[%s758 + $0x5c] sm:$0xf]
      %v1283 = vld [vmem:[%s758 + $0x60] sm:$0xf]
      %v1284 = vld [vmem:[%s758 + $0x64] sm:$0xf]
      %v1285 = vld [vmem:[%s758 + $0x68] sm:$0xf]
      %v1286 = vld [vmem:[%s758 + $0x6c] sm:$0xf]
      %v1287 = vld [vmem:[%s758 + $0x70] sm:$0xf]
      %v1288 = vld [vmem:[%s758 + $0x74] sm:$0xf]
      %v1289 = vld [vmem:[%s758 + $0x78] sm:$0xf]
      %v1290 = vld [vmem:[%s758 + $0x7c] sm:$0xf]
      %v1291 = vld [vmem:[%s775] sm:$0xf]
      %v1292 = vld [vmem:[%s775 + $0x4] sm:$0xf]
      %v1293 = vld [vmem:[%s775 + $0x8] sm:$0xf]
      %v1326 = vunpack.c.l.b16 %v1259
      %v1327 = vunpack.c.l.b16 %v1260
      %v1328 = vunpack.c.l.b16 %v1261
      %v1329 = vunpack.c.l.b16 %v1262
      %v1330 = vunpack.c.l.b16 %v1263
      %v1331 = vunpack.c.l.b16 %v1264
      %v1332 = vunpack.c.l.b16 %v1265
      %v1333 = vunpack.c.l.b16 %v1266
      %v1334 = vunpack.c.l.b16 %v1267
      %v1335 = vunpack.c.l.b16 %v1268
      %v1336 = vunpack.c.l.b16 %v1269
      %v1337 = vunpack.c.l.b16 %v1270
      %v1338 = vunpack.c.l.b16 %v1271
      %v1339 = vunpack.c.l.b16 %v1272
      %v1340 = vunpack.c.l.b16 %v1273
      %v1341 = vunpack.c.l.b16 %v1274
      %v1342 = vunpack.c.l.b16 %v1275
      %v1343 = vunpack.c.l.b16 %v1276
      %v1344 = vunpack.c.l.b16 %v1277
      %v1345 = vunpack.c.l.b16 %v1278
      %v1346 = vunpack.c.l.b16 %v1279
      %v1347 = vunpack.c.l.b16 %v1280
      %v1348 = vunpack.c.l.b16 %v1281
      %v1349 = vunpack.c.l.b16 %v1282
      %v1350 = vunpack.c.l.b16 %v1283
      %v1351 = vunpack.c.l.b16 %v1284
      %v1352 = vunpack.c.l.b16 %v1285
      %v1353 = vunpack.c.l.b16 %v1286
      %v1354 = vunpack.c.l.b16 %v1287
      %v1355 = vunpack.c.l.b16 %v1288
      %v1356 = vunpack.c.l.b16 %v1289
      %v1357 = vunpack.c.l.b16 %v1290
      %v1358 = vpack.c.b16 %v1327, %v1326
      %v1359 = vpack.c.b16 %v1329, %v1328
      %v1360 = vpack.c.b16 %v1331, %v1330
      %v1361 = vpack.c.b16 %v1333, %v1332
      %v1362 = vpack.c.b16 %v1335, %v1334
      %v1363 = vpack.c.b16 %v1337, %v1336
      %v1364 = vpack.c.b16 %v1339, %v1338
      %v1365 = vpack.c.b16 %v1341, %v1340
      %v1366 = vpack.c.b16 %v1343, %v1342
      %v1367 = vpack.c.b16 %v1345, %v1344
      %v1368 = vpack.c.b16 %v1347, %v1346
      %v1369 = vpack.c.b16 %v1349, %v1348
      %v1370 = vpack.c.b16 %v1351, %v1350
      %v1371 = vpack.c.b16 %v1353, %v1352
      %v1372 = vpack.c.b16 %v1355, %v1354
      %v1373 = vpack.c.b16 %v1357, %v1356
      %v1377 = vunpack.c.l.b16 %v1291
      %v1378 = vunpack.c.l.b16 %v1292
      %v1379 = vunpack.c.l.b16 %v1293
      %v1380 = vpack.c.b16 %v1378, %v1377
      %v1381 = vpack.c.b16 %v1379, %v1379
      %vm1383 = vcmask 195584
      %v1385 = vsel %vm1383, %v1358, 0
      %v1388 = vsel %vm1383, %v1359, 0
      %v1391 = vsel %vm1383, %v1360, 0
      %v1394 = vsel %vm1383, %v1361, 0
      %v1397 = vsel %vm1383, %v1362, 0
      %v1400 = vsel %vm1383, %v1363, 0
      %v1403 = vsel %vm1383, %v1364, 0
      %v1406 = vsel %vm1383, %v1365, 0
      %v1409 = vsel %vm1383, %v1366, 0
      %v1412 = vsel %vm1383, %v1367, 0
      %v1415 = vsel %vm1383, %v1368, 0
      %v1418 = vsel %vm1383, %v1369, 0
      %v1421 = vsel %vm1383, %v1370, 0
      %v1424 = vsel %vm1383, %v1371, 0
      %v1427 = vsel %vm1383, %v1372, 0
      %v1430 = vsel %vm1383, %v1373, 0
      %vm1432 = vcmask 1043456
      %v1434 = vsel %vm1432, %v1381, 0
      %1436 = vmatprep.subr.bf16.mxu0 0
      %1437 = vmatpush1.bf16.msra.mxu0 %v1380
      %1438 = vmatprep.subr.bf16.mxu0 0
      %1439 = vmatpush1.bf16.msra.mxu0 %v1434
      %1440 = vmatprep.subr.bf16.mxu0 0
      %1441 = vmatpush1.bf16.msra.mxu0 0
      %1442 = vmatprep.subr.bf16.mxu0 0
      %1443 = vmatpush1.bf16.msra.mxu0 0
      %1444 = vmatprep.subr.bf16.mxu0 0
      %1445 = vmatpush1.bf16.msra.mxu0 0
      %1446 = vmatprep.subr.bf16.mxu0 0
      %1447 = vmatpush1.bf16.msra.mxu0 0
      %1448 = vmatprep.subr.bf16.mxu0 0
      %1449 = vmatpush1.bf16.msra.mxu0 0
      %1450 = vmatprep.subr.bf16.mxu0 0
      %1451 = vmatpush1.bf16.msra.mxu0 0
      %1452 = vmatprep.subr.bf16.mxu0 0
      %1453 = vmatpush1.bf16.msra.mxu0 0
      %1454 = vmatprep.subr.bf16.mxu0 0
      %1455 = vmatpush1.bf16.msra.mxu0 0
      %1456 = vmatprep.subr.bf16.mxu0 0
      %1457 = vmatpush1.bf16.msra.mxu0 0
      %1458 = vmatprep.subr.bf16.mxu0 0
      %1459 = vmatpush1.bf16.msra.mxu0 0
      %1460 = vmatprep.subr.bf16.mxu0 0
      %1461 = vmatpush1.bf16.msra.mxu0 0
      %1462 = vmatprep.subr.bf16.mxu0 0
      %1463 = vmatpush1.bf16.msra.mxu0 0
      %1464 = vmatprep.subr.bf16.mxu0 0
      %1465 = vmatpush1.bf16.msra.mxu0 0
      %1466 = vmatprep.subr.bf16.mxu0 0
      %1467 = vmatpush1.bf16.msra.mxu0 0
      %1468 = vmatprep.mubr.bf16.mxu0 0
      %1469 = vmatmul.mubr.bf16.gmra.mrb[0].mxu0 %v1385
      %v1470 = vpop.f32.mrb[0].mxu0
      %v1471 = vadd.f32 0.0, %v1470
      %v1472 = vpop.f32.mrb[0].mxu0
      %v1473 = vpop.f32.mrb[0].mxu0
      %v1474 = vadd.f32 0.0, %v1473
      %v1475 = vpop.f32.mrb[0].mxu0
      %1476 = vmatprep.mubr.bf16.mxu0 0
      %1477 = vmatmul.mubr.bf16.gmra.mrb[0].mxu0 %v1388
      %v1478 = vpop.f32.mrb[0].mxu0
      %v1479 = vadd.f32 0.0, %v1478
      %v1480 = vpop.f32.mrb[0].mxu0
      %v1481 = vpop.f32.mrb[0].mxu0
      %v1482 = vadd.f32 0.0, %v1481
      %v1483 = vpop.f32.mrb[0].mxu0
      %1484 = vmatprep.mubr.bf16.mxu0 0
      %1485 = vmatmul.mubr.bf16.gmra.mrb[0].mxu0 %v1391
      %v1486 = vpop.f32.mrb[0].mxu0
      %v1487 = vadd.f32 0.0, %v1486
      %v1488 = vpop.f32.mrb[0].mxu0
      %v1489 = vpop.f32.mrb[0].mxu0
      %v1490 = vadd.f32 0.0, %v1489
      %v1491 = vpop.f32.mrb[0].mxu0
      %1492 = vmatprep.mubr.bf16.mxu0 0
      %1493 = vmatmul.mubr.bf16.gmra.mrb[0].mxu0 %v1394
      %v1494 = vpop.f32.mrb[0].mxu0
      %v1495 = vadd.f32 0.0, %v1494
      %v1496 = vpop.f32.mrb[0].mxu0
      %v1497 = vpop.f32.mrb[0].mxu0
      %v1498 = vadd.f32 0.0, %v1497
      %v1499 = vpop.f32.mrb[0].mxu0
      %1500 = vmatprep.mubr.bf16.mxu0 0
      %1501 = vmatmul.mubr.bf16.gmra.mrb[0].mxu0 %v1397
      %v1502 = vpop.f32.mrb[0].mxu0
      %v1503 = vadd.f32 0.0, %v1502
      %v1504 = vpop.f32.mrb[0].mxu0
      %v1505 = vpop.f32.mrb[0].mxu0
      %v1506 = vadd.f32 0.0, %v1505
      %v1507 = vpop.f32.mrb[0].mxu0
      %1508 = vmatprep.mubr.bf16.mxu0 0
      %1509 = vmatmul.mubr.bf16.gmra.mrb[0].mxu0 %v1400
      %v1510 = vpop.f32.mrb[0].mxu0
      %v1511 = vadd.f32 0.0, %v1510
      %v1512 = vpop.f32.mrb[0].mxu0
      %v1513 = vpop.f32.mrb[0].mxu0
      %v1514 = vadd.f32 0.0, %v1513
      %v1515 = vpop.f32.mrb[0].mxu0
      %1516 = vmatprep.mubr.bf16.mxu0 0
      %1517 = vmatmul.mubr.bf16.gmra.mrb[0].mxu0 %v1403
      %v1518 = vpop.f32.mrb[0].mxu0
      %v1519 = vadd.f32 0.0, %v1518
      %v1520 = vpop.f32.mrb[0].mxu0
      %v1521 = vpop.f32.mrb[0].mxu0
      %v1522 = vadd.f32 0.0, %v1521
      %v1523 = vpop.f32.mrb[0].mxu0
      %1524 = vmatprep.mubr.bf16.mxu0 0
      %1525 = vmatmul.mubr.bf16.gmra.mrb[0].mxu0 %v1406
      %v1526 = vpop.f32.mrb[0].mxu0
      %v1527 = vadd.f32 0.0, %v1526
      %v1528 = vpop.f32.mrb[0].mxu0
      %v1529 = vpop.f32.mrb[0].mxu0
      %v1530 = vadd.f32 0.0, %v1529
      %v1531 = vpop.f32.mrb[0].mxu0
      %1532 = vmatprep.mubr.bf16.mxu0 0
      %1533 = vmatmul.mubr.bf16.gmra.mrb[0].mxu0 %v1409
      %v1534 = vpop.f32.mrb[0].mxu0
      %v1535 = vadd.f32 0.0, %v1534
      %v1536 = vpop.f32.mrb[0].mxu0
      %v1537 = vpop.f32.mrb[0].mxu0
      %v1538 = vadd.f32 0.0, %v1537
      %v1539 = vpop.f32.mrb[0].mxu0
      %1540 = vmatprep.mubr.bf16.mxu0 0
      %1541 = vmatmul.mubr.bf16.gmra.mrb[0].mxu0 %v1412
      %v1542 = vpop.f32.mrb[0].mxu0
      %v1543 = vadd.f32 0.0, %v1542
      %v1544 = vpop.f32.mrb[0].mxu0
      %v1545 = vpop.f32.mrb[0].mxu0
      %v1546 = vadd.f32 0.0, %v1545
      %v1547 = vpop.f32.mrb[0].mxu0
      %1548 = vmatprep.mubr.bf16.mxu0 0
      %1549 = vmatmul.mubr.bf16.gmra.mrb[0].mxu0 %v1415
      %v1550 = vpop.f32.mrb[0].mxu0
      %v1551 = vadd.f32 0.0, %v1550
      %v1552 = vpop.f32.mrb[0].mxu0
      %v1553 = vpop.f32.mrb[0].mxu0
      %v1554 = vadd.f32 0.0, %v1553
      %v1555 = vpop.f32.mrb[0].mxu0
      %1556 = vmatprep.mubr.bf16.mxu0 0
      %1557 = vmatmul.mubr.bf16.gmra.mrb[0].mxu0 %v1418
      %v1558 = vpop.f32.mrb[0].mxu0
      %v1559 = vadd.f32 0.0, %v1558
      %v1560 = vpop.f32.mrb[0].mxu0
      %v1561 = vpop.f32.mrb[0].mxu0
      %v1562 = vadd.f32 0.0, %v1561
      %v1563 = vpop.f32.mrb[0].mxu0
      %1564 = vmatprep.mubr.bf16.mxu0 0
      %1565 = vmatmul.mubr.bf16.gmra.mrb[0].mxu0 %v1421
      %v1566 = vpop.f32.mrb[0].mxu0
      %v1567 = vadd.f32 0.0, %v1566
      %v1568 = vpop.f32.mrb[0].mxu0
      %v1569 = vpop.f32.mrb[0].mxu0
      %v1570 = vadd.f32 0.0, %v1569
      %v1571 = vpop.f32.mrb[0].mxu0
      %1572 = vmatprep.mubr.bf16.mxu0 0
      %1573 = vmatmul.mubr.bf16.gmra.mrb[0].mxu0 %v1424
      %v1574 = vpop.f32.mrb[0].mxu0
      %v1575 = vadd.f32 0.0, %v1574
      %v1576 = vpop.f32.mrb[0].mxu0
      %v1577 = vpop.f32.mrb[0].mxu0
      %v1578 = vadd.f32 0.0, %v1577
      %v1579 = vpop.f32.mrb[0].mxu0
      %1580 = vmatprep.mubr.bf16.mxu0 0
      %1581 = vmatmul.mubr.bf16.gmra.mrb[0].mxu0 %v1427
      %v1582 = vpop.f32.mrb[0].mxu0
      %v1583 = vadd.f32 0.0, %v1582
      %v1584 = vpop.f32.mrb[0].mxu0
      %v1585 = vpop.f32.mrb[0].mxu0
      %v1586 = vadd.f32 0.0, %v1585
      %v1587 = vpop.f32.mrb[0].mxu0
      %1588 = vmatprep.mubr.bf16.mxu0 0
      %1589 = vmatmul.mubr.bf16.gmra.mrb[0].mxu0 %v1430
      %v1590 = vpop.f32.mrb[0].mxu0
      %v1591 = vadd.f32 0.0, %v1590
      %v1592 = vpop.f32.mrb[0].mxu0
      %v1593 = vpop.f32.mrb[0].mxu0
      %v1594 = vadd.f32 0.0, %v1593
      %v1595 = vpop.f32.mrb[0].mxu0
      %1596 = vdwg.mxu0
      %v1601 = vcombine.high %v1255, %v1255
      %v1603 = vunpack.c.l.s4 1966171168
      %v1604 = vunpack.c.0.s8 %v1603
      %v1605 = vlaneseq
      %v1606 = vshrl.u32 %v1605, 7
      %v1607 = vsub.s32 %v1604, %v1606
      %v1608 = vrot.slane %v1255, %v1607
      %v1610 = vunpack.c.l.s4 1966171168
      %v1611 = vunpack.c.0.s8 %v1610
      %v1612 = vlaneseq
      %v1613 = vshrl.u32 %v1612, 7
      %v1614 = vsub.s32 %v1611, %v1613
      %v1615 = vrot.slane %v1601, %v1614
      %v1616 = vcombine.high %v1608, %v1608
      %v1617 = vcombine.high %v1615, %v1615
      %v1619 = vunpack.c.l.s4 1966171168
      %v1620 = vunpack.c.0.s8 %v1619
      %v1621 = vlaneseq
      %v1622 = vshrl.u32 %v1621, 7
      %v1623 = vsub.s32 %v1620, %v1622
      %v1624 = vrot.slane %v1608, %v1623
      %v1626 = vunpack.c.l.s4 1966171168
      %v1627 = vunpack.c.0.s8 %v1626
      %v1628 = vlaneseq
      %v1629 = vshrl.u32 %v1628, 7
      %v1630 = vsub.s32 %v1627, %v1629
      %v1631 = vrot.slane %v1615, %v1630
      %v1633 = vunpack.c.l.s4 1966171168
      %v1634 = vunpack.c.0.s8 %v1633
      %v1635 = vlaneseq
      %v1636 = vshrl.u32 %v1635, 7
      %v1637 = vsub.s32 %v1634, %v1636
      %v1638 = vrot.slane %v1616, %v1637
      %v1640 = vunpack.c.l.s4 1966171168
      %v1641 = vunpack.c.0.s8 %v1640
      %v1642 = vlaneseq
      %v1643 = vshrl.u32 %v1642, 7
      %v1644 = vsub.s32 %v1641, %v1643
      %v1645 = vrot.slane %v1617, %v1644
      %v1646 = vcombine.high %v1624, %v1624
      %v1647 = vcombine.high %v1631, %v1631
      %v1648 = vcombine.high %v1638, %v1638
      %v1649 = vcombine.high %v1645, %v1645
      %v1650 = vcombine.high %v1256, %v1256
      %v1652 = vunpack.c.l.s4 1966171168
      %v1653 = vunpack.c.0.s8 %v1652
      %v1654 = vlaneseq
      %v1655 = vshrl.u32 %v1654, 7
      %v1656 = vsub.s32 %v1653, %v1655
      %v1657 = vrot.slane %v1256, %v1656
      %v1659 = vunpack.c.l.s4 1966171168
      %v1660 = vunpack.c.0.s8 %v1659
      %v1661 = vlaneseq
      %v1662 = vshrl.u32 %v1661, 7
      %v1663 = vsub.s32 %v1660, %v1662
      %v1664 = vrot.slane %v1650, %v1663
      %v1665 = vcombine.high %v1657, %v1657
      %v1666 = vcombine.high %v1664, %v1664
      %v1668 = vunpack.c.l.s4 1966171168
      %v1669 = vunpack.c.0.s8 %v1668
      %v1670 = vlaneseq
      %v1671 = vshrl.u32 %v1670, 7
      %v1672 = vsub.s32 %v1669, %v1671
      %v1673 = vrot.slane %v1657, %v1672
      %v1675 = vunpack.c.l.s4 1966171168
      %v1676 = vunpack.c.0.s8 %v1675
      %v1677 = vlaneseq
      %v1678 = vshrl.u32 %v1677, 7
      %v1679 = vsub.s32 %v1676, %v1678
      %v1680 = vrot.slane %v1664, %v1679
      %v1682 = vunpack.c.l.s4 1966171168
      %v1683 = vunpack.c.0.s8 %v1682
      %v1684 = vlaneseq
      %v1685 = vshrl.u32 %v1684, 7
      %v1686 = vsub.s32 %v1683, %v1685
      %v1687 = vrot.slane %v1665, %v1686
      %v1689 = vunpack.c.l.s4 1966171168
      %v1690 = vunpack.c.0.s8 %v1689
      %v1691 = vlaneseq
      %v1692 = vshrl.u32 %v1691, 7
      %v1693 = vsub.s32 %v1690, %v1692
      %v1694 = vrot.slane %v1666, %v1693
      %v1695 = vcombine.high %v1673, %v1673
      %v1696 = vcombine.high %v1680, %v1680
      %v1697 = vcombine.high %v1687, %v1687
      %v1698 = vcombine.high %v1694, %v1694
      %v1699 = vcombine.high %v1257, %v1257
      %v1701 = vunpack.c.l.s4 1966171168
      %v1702 = vunpack.c.0.s8 %v1701
      %v1703 = vlaneseq
      %v1704 = vshrl.u32 %v1703, 7
      %v1705 = vsub.s32 %v1702, %v1704
      %v1706 = vrot.slane %v1257, %v1705
      %v1708 = vunpack.c.l.s4 1966171168
      %v1709 = vunpack.c.0.s8 %v1708
      %v1710 = vlaneseq
      %v1711 = vshrl.u32 %v1710, 7
      %v1712 = vsub.s32 %v1709, %v1711
      %v1713 = vrot.slane %v1699, %v1712
      %v1714 = vcombine.high %v1706, %v1706
      %v1715 = vcombine.high %v1713, %v1713
      %v1717 = vunpack.c.l.s4 1966171168
      %v1718 = vunpack.c.0.s8 %v1717
      %v1719 = vlaneseq
      %v1720 = vshrl.u32 %v1719, 7
      %v1721 = vsub.s32 %v1718, %v1720
      %v1722 = vrot.slane %v1706, %v1721
      %v1724 = vunpack.c.l.s4 1966171168
      %v1725 = vunpack.c.0.s8 %v1724
      %v1726 = vlaneseq
      %v1727 = vshrl.u32 %v1726, 7
      %v1728 = vsub.s32 %v1725, %v1727
      %v1729 = vrot.slane %v1713, %v1728
      %v1731 = vunpack.c.l.s4 1966171168
      %v1732 = vunpack.c.0.s8 %v1731
      %v1733 = vlaneseq
      %v1734 = vshrl.u32 %v1733, 7
      %v1735 = vsub.s32 %v1732, %v1734
      %v1736 = vrot.slane %v1714, %v1735
      %v1738 = vunpack.c.l.s4 1966171168
      %v1739 = vunpack.c.0.s8 %v1738
      %v1740 = vlaneseq
      %v1741 = vshrl.u32 %v1740, 7
      %v1742 = vsub.s32 %v1739, %v1741
      %v1743 = vrot.slane %v1715, %v1742
      %v1744 = vcombine.high %v1722, %v1722
      %v1745 = vcombine.high %v1729, %v1729
      %v1746 = vcombine.high %v1736, %v1736
      %v1747 = vcombine.high %v1743, %v1743
      %v1748 = vcombine.high %v1258, %v1258
      %v1750 = vunpack.c.l.s4 1966171168
      %v1751 = vunpack.c.0.s8 %v1750
      %v1752 = vlaneseq
      %v1753 = vshrl.u32 %v1752, 7
      %v1754 = vsub.s32 %v1751, %v1753
      %v1755 = vrot.slane %v1258, %v1754
      %v1757 = vunpack.c.l.s4 1966171168
      %v1758 = vunpack.c.0.s8 %v1757
      %v1759 = vlaneseq
      %v1760 = vshrl.u32 %v1759, 7
      %v1761 = vsub.s32 %v1758, %v1760
      %v1762 = vrot.slane %v1748, %v1761
      %v1763 = vcombine.high %v1755, %v1755
      %v1764 = vcombine.high %v1762, %v1762
      %v1766 = vunpack.c.l.s4 1966171168
      %v1767 = vunpack.c.0.s8 %v1766
      %v1768 = vlaneseq
      %v1769 = vshrl.u32 %v1768, 7
      %v1770 = vsub.s32 %v1767, %v1769
      %v1771 = vrot.slane %v1755, %v1770
      %v1773 = vunpack.c.l.s4 1966171168
      %v1774 = vunpack.c.0.s8 %v1773
      %v1775 = vlaneseq
      %v1776 = vshrl.u32 %v1775, 7
      %v1777 = vsub.s32 %v1774, %v1776
      %v1778 = vrot.slane %v1762, %v1777
      %v1780 = vunpack.c.l.s4 1966171168
      %v1781 = vunpack.c.0.s8 %v1780
      %v1782 = vlaneseq
      %v1783 = vshrl.u32 %v1782, 7
      %v1784 = vsub.s32 %v1781, %v1783
      %v1785 = vrot.slane %v1763, %v1784
      %v1787 = vunpack.c.l.s4 1966171168
      %v1788 = vunpack.c.0.s8 %v1787
      %v1789 = vlaneseq
      %v1790 = vshrl.u32 %v1789, 7
      %v1791 = vsub.s32 %v1788, %v1790
      %v1792 = vrot.slane %v1764, %v1791
      %v1793 = vcombine.high %v1771, %v1771
      %v1794 = vcombine.high %v1778, %v1778
      %v1795 = vcombine.high %v1785, %v1785
      %v1796 = vcombine.high %v1792, %v1792
      %v1797 = vlaneseq
      %v1798 = vshrl.u32 %v1797, 7
      %v1799 = vsub.s32 0, %v1798
      %v1800 = vrot.slane %v1624, %v1799
      %v1801 = vlaneseq
      %v1802 = vshrl.u32 %v1801, 7
      %v1803 = vsub.s32 0, %v1802
      %v1804 = vrot.slane %v1638, %v1803
      %v1805 = vlaneseq
      %v1806 = vshrl.u32 %v1805, 7
      %v1807 = vsub.s32 0, %v1806
      %v1808 = vrot.slane %v1646, %v1807
      %v1809 = vlaneseq
      %v1810 = vshrl.u32 %v1809, 7
      %v1811 = vsub.s32 0, %v1810
      %v1812 = vrot.slane %v1648, %v1811
      %v1813 = vlaneseq
      %v1814 = vshrl.u32 %v1813, 7
      %v1815 = vsub.s32 0, %v1814
      %v1816 = vrot.slane %v1631, %v1815
      %v1817 = vlaneseq
      %v1818 = vshrl.u32 %v1817, 7
      %v1819 = vsub.s32 0, %v1818
      %v1820 = vrot.slane %v1645, %v1819
      %v1821 = vlaneseq
      %v1822 = vshrl.u32 %v1821, 7
      %v1823 = vsub.s32 0, %v1822
      %v1824 = vrot.slane %v1647, %v1823
      %v1825 = vlaneseq
      %v1826 = vshrl.u32 %v1825, 7
      %v1827 = vsub.s32 0, %v1826
      %v1828 = vrot.slane %v1649, %v1827
      %v1829 = vlaneseq
      %v1830 = vshrl.u32 %v1829, 7
      %v1831 = vsub.s32 0, %v1830
      %v1832 = vrot.slane %v1673, %v1831
      %v1833 = vlaneseq
      %v1834 = vshrl.u32 %v1833, 7
      %v1835 = vsub.s32 0, %v1834
      %v1836 = vrot.slane %v1687, %v1835
      %v1837 = vlaneseq
      %v1838 = vshrl.u32 %v1837, 7
      %v1839 = vsub.s32 0, %v1838
      %v1840 = vrot.slane %v1695, %v1839
      %v1841 = vlaneseq
      %v1842 = vshrl.u32 %v1841, 7
      %v1843 = vsub.s32 0, %v1842
      %v1844 = vrot.slane %v1697, %v1843
      %v1845 = vlaneseq
      %v1846 = vshrl.u32 %v1845, 7
      %v1847 = vsub.s32 0, %v1846
      %v1848 = vrot.slane %v1680, %v1847
      %v1849 = vlaneseq
      %v1850 = vshrl.u32 %v1849, 7
      %v1851 = vsub.s32 0, %v1850
      %v1852 = vrot.slane %v1694, %v1851
      %v1853 = vlaneseq
      %v1854 = vshrl.u32 %v1853, 7
      %v1855 = vsub.s32 0, %v1854
      %v1856 = vrot.slane %v1696, %v1855
      %v1857 = vlaneseq
      %v1858 = vshrl.u32 %v1857, 7
      %v1859 = vsub.s32 0, %v1858
      %v1860 = vrot.slane %v1698, %v1859
      %v1861 = vlaneseq
      %v1862 = vshrl.u32 %v1861, 7
      %v1863 = vsub.s32 0, %v1862
      %v1864 = vrot.slane %v1722, %v1863
      %v1865 = vlaneseq
      %v1866 = vshrl.u32 %v1865, 7
      %v1867 = vsub.s32 0, %v1866
      %v1868 = vrot.slane %v1736, %v1867
      %v1869 = vlaneseq
      %v1870 = vshrl.u32 %v1869, 7
      %v1871 = vsub.s32 0, %v1870
      %v1872 = vrot.slane %v1744, %v1871
      %v1873 = vlaneseq
      %v1874 = vshrl.u32 %v1873, 7
      %v1875 = vsub.s32 0, %v1874
      %v1876 = vrot.slane %v1746, %v1875
      %v1877 = vlaneseq
      %v1878 = vshrl.u32 %v1877, 7
      %v1879 = vsub.s32 0, %v1878
      %v1880 = vrot.slane %v1729, %v1879
      %v1881 = vlaneseq
      %v1882 = vshrl.u32 %v1881, 7
      %v1883 = vsub.s32 0, %v1882
      %v1884 = vrot.slane %v1743, %v1883
      %v1885 = vlaneseq
      %v1886 = vshrl.u32 %v1885, 7
      %v1887 = vsub.s32 0, %v1886
      %v1888 = vrot.slane %v1745, %v1887
      %v1889 = vlaneseq
      %v1890 = vshrl.u32 %v1889, 7
      %v1891 = vsub.s32 0, %v1890
      %v1892 = vrot.slane %v1747, %v1891
      %v1893 = vlaneseq
      %v1894 = vshrl.u32 %v1893, 7
      %v1895 = vsub.s32 0, %v1894
      %v1896 = vrot.slane %v1771, %v1895
      %v1897 = vlaneseq
      %v1898 = vshrl.u32 %v1897, 7
      %v1899 = vsub.s32 0, %v1898
      %v1900 = vrot.slane %v1785, %v1899
      %v1901 = vlaneseq
      %v1902 = vshrl.u32 %v1901, 7
      %v1903 = vsub.s32 0, %v1902
      %v1904 = vrot.slane %v1793, %v1903
      %v1905 = vlaneseq
      %v1906 = vshrl.u32 %v1905, 7
      %v1907 = vsub.s32 0, %v1906
      %v1908 = vrot.slane %v1795, %v1907
      %v1909 = vlaneseq
      %v1910 = vshrl.u32 %v1909, 7
      %v1911 = vsub.s32 0, %v1910
      %v1912 = vrot.slane %v1778, %v1911
      %v1913 = vlaneseq
      %v1914 = vshrl.u32 %v1913, 7
      %v1915 = vsub.s32 0, %v1914
      %v1916 = vrot.slane %v1792, %v1915
      %v1917 = vlaneseq
      %v1918 = vshrl.u32 %v1917, 7
      %v1919 = vsub.s32 0, %v1918
      %v1920 = vrot.slane %v1794, %v1919
      %v1921 = vlaneseq
      %v1922 = vshrl.u32 %v1921, 7
      %v1923 = vsub.s32 0, %v1922
      %v1924 = vrot.slane %v1796, %v1923
      %v1957 = vadd.f32 %v1800, %v1193
      %v1958 = vadd.f32 %v1804, %v1193
      %v1959 = vadd.f32 %v1808, %v1193
      %v1960 = vadd.f32 %v1812, %v1193
      %v1961 = vadd.f32 %v1816, %v1193
      %v1962 = vadd.f32 %v1820, %v1193
      %v1963 = vadd.f32 %v1824, %v1193
      %v1964 = vadd.f32 %v1828, %v1193
      %v1965 = vadd.f32 %v1832, %v1197
      %v1966 = vadd.f32 %v1836, %v1197
      %v1967 = vadd.f32 %v1840, %v1197
      %v1968 = vadd.f32 %v1844, %v1197
      %v1969 = vadd.f32 %v1848, %v1197
      %v1970 = vadd.f32 %v1852, %v1197
      %v1971 = vadd.f32 %v1856, %v1197
      %v1972 = vadd.f32 %v1860, %v1197
      %v1973 = vadd.f32 %v1864, %v1203
      %v1974 = vadd.f32 %v1868, %v1203
      %v1975 = vadd.f32 %v1872, %v1203
      %v1976 = vadd.f32 %v1876, %v1203
      %v1977 = vadd.f32 %v1880, %v1203
      %v1978 = vadd.f32 %v1884, %v1203
      %v1979 = vadd.f32 %v1888, %v1203
      %v1980 = vadd.f32 %v1892, %v1203
      %v1981 = vadd.f32 %v1896, %v1207
      %v1982 = vadd.f32 %v1900, %v1207
      %v1983 = vadd.f32 %v1904, %v1207
      %v1984 = vadd.f32 %v1908, %v1207
      %v1985 = vadd.f32 %v1912, %v1207
      %v1986 = vadd.f32 %v1916, %v1207
      %v1987 = vadd.f32 %v1920, %v1207
      %v1988 = vadd.f32 %v1924, %v1207
      %v1989 = vadd.f32 %v1957, %v1471
      %v1990 = vadd.f32 %v1958, %v1474
      %v1991 = vadd.f32 %v1959, %v1479
      %v1992 = vadd.f32 %v1960, %v1482
      %v1993 = vadd.f32 %v1961, %v1487
      %v1994 = vadd.f32 %v1962, %v1490
      %v1995 = vadd.f32 %v1963, %v1495
      %v1996 = vadd.f32 %v1964, %v1498
      %v1997 = vadd.f32 %v1965, %v1503
      %v1998 = vadd.f32 %v1966, %v1506
      %v1999 = vadd.f32 %v1967, %v1511
      %v2000 = vadd.f32 %v1968, %v1514
      %v2001 = vadd.f32 %v1969, %v1519
      %v2002 = vadd.f32 %v1970, %v1522
      %v2003 = vadd.f32 %v1971, %v1527
      %v2004 = vadd.f32 %v1972, %v1530
      %v2005 = vadd.f32 %v1973, %v1535
      %v2006 = vadd.f32 %v1974, %v1538
      %v2007 = vadd.f32 %v1975, %v1543
      %v2008 = vadd.f32 %v1976, %v1546
      %v2009 = vadd.f32 %v1977, %v1551
      %v2010 = vadd.f32 %v1978, %v1554
      %v2011 = vadd.f32 %v1979, %v1559
      %v2012 = vadd.f32 %v1980, %v1562
      %v2013 = vadd.f32 %v1981, %v1567
      %v2014 = vadd.f32 %v1982, %v1570
      %v2015 = vadd.f32 %v1983, %v1575
      %v2016 = vadd.f32 %v1984, %v1578
      %v2017 = vadd.f32 %v1985, %v1583
      %v2018 = vadd.f32 %v1986, %v1586
      %v2019 = vadd.f32 %v1987, %v1591
      %v2020 = vadd.f32 %v1988, %v1594
      %v2021 = vxor.u32 %v1989, 2147483648
      %v2022 = vxor.u32 %v1990, 2147483648
      %v2023 = vxor.u32 %v1991, 2147483648
      %v2024 = vxor.u32 %v1992, 2147483648
      %v2025 = vxor.u32 %v1993, 2147483648
      %v2026 = vxor.u32 %v1994, 2147483648
      %v2027 = vxor.u32 %v1995, 2147483648
      %v2028 = vxor.u32 %v1996, 2147483648
      %v2029 = vxor.u32 %v1997, 2147483648
      %v2030 = vxor.u32 %v1998, 2147483648
      %v2031 = vxor.u32 %v1999, 2147483648
      %v2032 = vxor.u32 %v2000, 2147483648
      %v2033 = vxor.u32 %v2001, 2147483648
      %v2034 = vxor.u32 %v2002, 2147483648
      %v2035 = vxor.u32 %v2003, 2147483648
      %v2036 = vxor.u32 %v2004, 2147483648
      %v2037 = vxor.u32 %v2005, 2147483648
      %v2038 = vxor.u32 %v2006, 2147483648
      %v2039 = vxor.u32 %v2007, 2147483648
      %v2040 = vxor.u32 %v2008, 2147483648
      %v2041 = vxor.u32 %v2009, 2147483648
      %v2042 = vxor.u32 %v2010, 2147483648
      %v2043 = vxor.u32 %v2011, 2147483648
      %v2044 = vxor.u32 %v2012, 2147483648
      %v2045 = vxor.u32 %v2013, 2147483648
      %v2046 = vxor.u32 %v2014, 2147483648
      %v2047 = vxor.u32 %v2015, 2147483648
      %v2048 = vxor.u32 %v2016, 2147483648
      %v2049 = vxor.u32 %v2017, 2147483648
      %v2050 = vxor.u32 %v2018, 2147483648
      %v2051 = vxor.u32 %v2019, 2147483648
      %v2052 = vxor.u32 %v2020, 2147483648
      %v2053 = vmul.f32 %v2021, 1.442695
      %v2054 = vpow.pop %v2053
      %v2055 = vmul.f32 %v2022, 1.442695
      %v2056 = vpow.pop %v2055
      %v2057 = vmul.f32 %v2023, 1.442695
      %v2058 = vpow.pop %v2057
      %v2059 = vmul.f32 %v2024, 1.442695
      %v2060 = vpow.pop %v2059
      %v2061 = vmul.f32 %v2025, 1.442695
      %v2062 = vpow.pop %v2061
      %v2063 = vmul.f32 %v2026, 1.442695
      %v2064 = vpow.pop %v2063
      %v2065 = vmul.f32 %v2027, 1.442695
      %v2066 = vpow.pop %v2065
      %v2067 = vmul.f32 %v2028, 1.442695
      %v2068 = vpow.pop %v2067
      %v2069 = vmul.f32 %v2029, 1.442695
      %v2070 = vpow.pop %v2069
      %v2071 = vmul.f32 %v2030, 1.442695
      %v2072 = vpow.pop %v2071
      %v2073 = vmul.f32 %v2031, 1.442695
      %v2074 = vpow.pop %v2073
      %v2075 = vmul.f32 %v2032, 1.442695
      %v2076 = vpow.pop %v2075
      %v2077 = vmul.f32 %v2033, 1.442695
      %v2078 = vpow.pop %v2077
      %v2079 = vmul.f32 %v2034, 1.442695
      %v2080 = vpow.pop %v2079
      %v2081 = vmul.f32 %v2035, 1.442695
      %v2082 = vpow.pop %v2081
      %v2083 = vmul.f32 %v2036, 1.442695
      %v2084 = vpow.pop %v2083
      %v2085 = vmul.f32 %v2037, 1.442695
      %v2086 = vpow.pop %v2085
      %v2087 = vmul.f32 %v2038, 1.442695
      %v2088 = vpow.pop %v2087
      %v2089 = vmul.f32 %v2039, 1.442695
      %v2090 = vpow.pop %v2089
      %v2091 = vmul.f32 %v2040, 1.442695
      %v2092 = vpow.pop %v2091
      %v2093 = vmul.f32 %v2041, 1.442695
      %v2094 = vpow.pop %v2093
      %v2095 = vmul.f32 %v2042, 1.442695
      %v2096 = vpow.pop %v2095
      %v2097 = vmul.f32 %v2043, 1.442695
      %v2098 = vpow.pop %v2097
      %v2099 = vmul.f32 %v2044, 1.442695
      %v2100 = vpow.pop %v2099
      %v2101 = vmul.f32 %v2045, 1.442695
      %v2102 = vpow.pop %v2101
      %v2103 = vmul.f32 %v2046, 1.442695
      %v2104 = vpow.pop %v2103
      %v2105 = vmul.f32 %v2047, 1.442695
      %v2106 = vpow.pop %v2105
      %v2107 = vmul.f32 %v2048, 1.442695
      %v2108 = vpow.pop %v2107
      %v2109 = vmul.f32 %v2049, 1.442695
      %v2110 = vpow.pop %v2109
      %v2111 = vmul.f32 %v2050, 1.442695
      %v2112 = vpow.pop %v2111
      %v2113 = vmul.f32 %v2051, 1.442695
      %v2114 = vpow.pop %v2113
      %v2115 = vmul.f32 %v2052, 1.442695
      %v2116 = vpow.pop %v2115
      %v2117 = vadd.f32 %v2054, 1.0
      %v2118 = vadd.f32 %v2056, 1.0
      %v2119 = vadd.f32 %v2058, 1.0
      %v2120 = vadd.f32 %v2060, 1.0
      %v2121 = vadd.f32 %v2062, 1.0
      %v2122 = vadd.f32 %v2064, 1.0
      %v2123 = vadd.f32 %v2066, 1.0
      %v2124 = vadd.f32 %v2068, 1.0
      %v2125 = vadd.f32 %v2070, 1.0
      %v2126 = vadd.f32 %v2072, 1.0
      %v2127 = vadd.f32 %v2074, 1.0
      %v2128 = vadd.f32 %v2076, 1.0
      %v2129 = vadd.f32 %v2078, 1.0
      %v2130 = vadd.f32 %v2080, 1.0
      %v2131 = vadd.f32 %v2082, 1.0
      %v2132 = vadd.f32 %v2084, 1.0
      %v2133 = vadd.f32 %v2086, 1.0
      %v2134 = vadd.f32 %v2088, 1.0
      %v2135 = vadd.f32 %v2090, 1.0
      %v2136 = vadd.f32 %v2092, 1.0
      %v2137 = vadd.f32 %v2094, 1.0
      %v2138 = vadd.f32 %v2096, 1.0
      %v2139 = vadd.f32 %v2098, 1.0
      %v2140 = vadd.f32 %v2100, 1.0
      %v2141 = vadd.f32 %v2102, 1.0
      %v2142 = vadd.f32 %v2104, 1.0
      %v2143 = vadd.f32 %v2106, 1.0
      %v2144 = vadd.f32 %v2108, 1.0
      %v2145 = vadd.f32 %v2110, 1.0
      %v2146 = vadd.f32 %v2112, 1.0
      %v2147 = vadd.f32 %v2114, 1.0
      %v2148 = vadd.f32 %v2116, 1.0
      %v2149 = vrcp.pop %v2117
      %v2150 = vmul.f32 1.0, %v2149
      %v2151 = vrcp.pop %v2118
      %v2152 = vmul.f32 1.0, %v2151
      %v2153 = vrcp.pop %v2119
      %v2154 = vmul.f32 1.0, %v2153
      %v2155 = vrcp.pop %v2120
      %v2156 = vmul.f32 1.0, %v2155
      %v2157 = vrcp.pop %v2121
      %v2158 = vmul.f32 1.0, %v2157
      %v2159 = vrcp.pop %v2122
      %v2160 = vmul.f32 1.0, %v2159
      %v2161 = vrcp.pop %v2123
      %v2162 = vmul.f32 1.0, %v2161
      %v2163 = vrcp.pop %v2124
      %v2164 = vmul.f32 1.0, %v2163
      %v2165 = vrcp.pop %v2125
      %v2166 = vmul.f32 1.0, %v2165
      %v2167 = vrcp.pop %v2126
      %v2168 = vmul.f32 1.0, %v2167
      %v2169 = vrcp.pop %v2127
      %v2170 = vmul.f32 1.0, %v2169
      %v2171 = vrcp.pop %v2128
      %v2172 = vmul.f32 1.0, %v2171
      %v2173 = vrcp.pop %v2129
      %v2174 = vmul.f32 1.0, %v2173
      %v2175 = vrcp.pop %v2130
      %v2176 = vmul.f32 1.0, %v2175
      %v2177 = vrcp.pop %v2131
      %v2178 = vmul.f32 1.0, %v2177
      %v2179 = vrcp.pop %v2132
      %v2180 = vmul.f32 1.0, %v2179
      %v2181 = vrcp.pop %v2133
      %v2182 = vmul.f32 1.0, %v2181
      %v2183 = vrcp.pop %v2134
      %v2184 = vmul.f32 1.0, %v2183
      %v2185 = vrcp.pop %v2135
      %v2186 = vmul.f32 1.0, %v2185
      %v2187 = vrcp.pop %v2136
      %v2188 = vmul.f32 1.0, %v2187
      %v2189 = vrcp.pop %v2137
      %v2190 = vmul.f32 1.0, %v2189
      %v2191 = vrcp.pop %v2138
      %v2192 = vmul.f32 1.0, %v2191
      %v2193 = vrcp.pop %v2139
      %v2194 = vmul.f32 1.0, %v2193
      %v2195 = vrcp.pop %v2140
      %v2196 = vmul.f32 1.0, %v2195
      %v2197 = vrcp.pop %v2141
      %v2198 = vmul.f32 1.0, %v2197
      %v2199 = vrcp.pop %v2142
      %v2200 = vmul.f32 1.0, %v2199
      %v2201 = vrcp.pop %v2143
      %v2202 = vmul.f32 1.0, %v2201
      %v2203 = vrcp.pop %v2144
      %v2204 = vmul.f32 1.0, %v2203
      %v2205 = vrcp.pop %v2145
      %v2206 = vmul.f32 1.0, %v2205
      %v2207 = vrcp.pop %v2146
      %v2208 = vmul.f32 1.0, %v2207
      %v2209 = vrcp.pop %v2147
      %v2210 = vmul.f32 1.0, %v2209
      %v2211 = vrcp.pop %v2148
      %v2212 = vmul.f32 1.0, %v2211
      %v2213 = vmul.f32 %v1989, %v2150
      %v2214 = vmul.f32 %v1990, %v2152
      %v2215 = vmul.f32 %v1991, %v2154
      %v2216 = vmul.f32 %v1992, %v2156
      %v2217 = vmul.f32 %v1993, %v2158
      %v2218 = vmul.f32 %v1994, %v2160
      %v2219 = vmul.f32 %v1995, %v2162
      %v2220 = vmul.f32 %v1996, %v2164
      %v2221 = vmul.f32 %v1997, %v2166
      %v2222 = vmul.f32 %v1998, %v2168
      %v2223 = vmul.f32 %v1999, %v2170
      %v2224 = vmul.f32 %v2000, %v2172
      %v2225 = vmul.f32 %v2001, %v2174
      %v2226 = vmul.f32 %v2002, %v2176
      %v2227 = vmul.f32 %v2003, %v2178
      %v2228 = vmul.f32 %v2004, %v2180
      %v2229 = vmul.f32 %v2005, %v2182
      %v2230 = vmul.f32 %v2006, %v2184
      %v2231 = vmul.f32 %v2007, %v2186
      %v2232 = vmul.f32 %v2008, %v2188
      %v2233 = vmul.f32 %v2009, %v2190
      %v2234 = vmul.f32 %v2010, %v2192
      %v2235 = vmul.f32 %v2011, %v2194
      %v2236 = vmul.f32 %v2012, %v2196
      %v2237 = vmul.f32 %v2013, %v2198
      %v2238 = vmul.f32 %v2014, %v2200
      %v2239 = vmul.f32 %v2015, %v2202
      %v2240 = vmul.f32 %v2016, %v2204
      %v2241 = vmul.f32 %v2017, %v2206
      %v2242 = vmul.f32 %v2018, %v2208
      %v2243 = vmul.f32 %v2019, %v2210
      %v2244 = vmul.f32 %v2020, %v2212
      %v2245 = vpack.c.bf16 %v2213, %v2213
      %v2246 = vpack.c.bf16 %v2214, %v2214
      %v2247 = vpack.c.bf16 %v2215, %v2215
      %v2248 = vpack.c.bf16 %v2216, %v2216
      %v2249 = vpack.c.bf16 %v2217, %v2217
      %v2250 = vpack.c.bf16 %v2218, %v2218
      %v2251 = vpack.c.bf16 %v2219, %v2219
      %v2252 = vpack.c.bf16 %v2220, %v2220
      %v2253 = vpack.c.bf16 %v2221, %v2221
      %v2254 = vpack.c.bf16 %v2222, %v2222
      %v2255 = vpack.c.bf16 %v2223, %v2223
      %v2256 = vpack.c.bf16 %v2224, %v2224
      %v2257 = vpack.c.bf16 %v2225, %v2225
      %v2258 = vpack.c.bf16 %v2226, %v2226
      %v2259 = vpack.c.bf16 %v2227, %v2227
      %v2260 = vpack.c.bf16 %v2228, %v2228
      %v2261 = vpack.c.bf16 %v2229, %v2229
      %v2262 = vpack.c.bf16 %v2230, %v2230
      %v2263 = vpack.c.bf16 %v2231, %v2231
      %v2264 = vpack.c.bf16 %v2232, %v2232
      %v2265 = vpack.c.bf16 %v2233, %v2233
      %v2266 = vpack.c.bf16 %v2234, %v2234
      %v2267 = vpack.c.bf16 %v2235, %v2235
      %v2268 = vpack.c.bf16 %v2236, %v2236
      %v2269 = vpack.c.bf16 %v2237, %v2237
      %v2270 = vpack.c.bf16 %v2238, %v2238
      %v2271 = vpack.c.bf16 %v2239, %v2239
      %v2272 = vpack.c.bf16 %v2240, %v2240
      %v2273 = vpack.c.bf16 %v2241, %v2241
      %v2274 = vpack.c.bf16 %v2242, %v2242
      %v2275 = vpack.c.bf16 %v2243, %v2243
      %v2276 = vpack.c.bf16 %v2244, %v2244
      %v2277 = vld [vmem:[%s788] sm:$0xf]
      %v2278 = vld [vmem:[%s788 + $0x4] sm:$0xf]
      %v2279 = vld [vmem:[%s788 + $0x8] sm:$0xf]
      %v2280 = vld [vmem:[%s788 + $0xc] sm:$0xf]
      %v2281 = vld [vmem:[%s788 + $0x10] sm:$0xf]
      %v2282 = vld [vmem:[%s788 + $0x14] sm:$0xf]
      %v2283 = vld [vmem:[%s788 + $0x18] sm:$0xf]
      %v2284 = vld [vmem:[%s788 + $0x1c] sm:$0xf]
      %v2285 = vld [vmem:[%s788 + $0x20] sm:$0xf]
      %v2286 = vld [vmem:[%s788 + $0x24] sm:$0xf]
      %v2287 = vld [vmem:[%s788 + $0x28] sm:$0xf]
      %v2288 = vld [vmem:[%s788 + $0x2c] sm:$0xf]
      %v2289 = vld [vmem:[%s788 + $0x30] sm:$0xf]
      %v2290 = vld [vmem:[%s788 + $0x34] sm:$0xf]
      %v2291 = vld [vmem:[%s788 + $0x38] sm:$0xf]
      %v2292 = vld [vmem:[%s788 + $0x3c] sm:$0xf]
      %v2293 = vld [vmem:[%s791] sm:$0x1]
      %v2295 = vlaneseq
      %v2296 = vshrl.u32 %v2295, 7
      %v2297 = vsub.s32 0, %v2296
      %v2298 = vrot.slane %v2293, %v2297
      %v2332 = vunpack.c.l.b16 %v2245
      %v2333 = vunpack.c.l.b16 %v2246
      %v2334 = vunpack.c.l.b16 %v2247
      %v2335 = vunpack.c.l.b16 %v2248
      %v2336 = vunpack.c.l.b16 %v2249
      %v2337 = vunpack.c.l.b16 %v2250
      %v2338 = vunpack.c.l.b16 %v2251
      %v2339 = vunpack.c.l.b16 %v2252
      %v2340 = vunpack.c.l.b16 %v2253
      %v2341 = vunpack.c.l.b16 %v2254
      %v2342 = vunpack.c.l.b16 %v2255
      %v2343 = vunpack.c.l.b16 %v2256
      %v2344 = vunpack.c.l.b16 %v2257
      %v2345 = vunpack.c.l.b16 %v2258
      %v2346 = vunpack.c.l.b16 %v2259
      %v2347 = vunpack.c.l.b16 %v2260
      %v2348 = vunpack.c.l.b16 %v2261
      %v2349 = vunpack.c.l.b16 %v2262
      %v2350 = vunpack.c.l.b16 %v2263
      %v2351 = vunpack.c.l.b16 %v2264
      %v2352 = vunpack.c.l.b16 %v2265
      %v2353 = vunpack.c.l.b16 %v2266
      %v2354 = vunpack.c.l.b16 %v2267
      %v2355 = vunpack.c.l.b16 %v2268
      %v2356 = vunpack.c.l.b16 %v2269
      %v2357 = vunpack.c.l.b16 %v2270
      %v2358 = vunpack.c.l.b16 %v2271
      %v2359 = vunpack.c.l.b16 %v2272
      %v2360 = vunpack.c.l.b16 %v2273
      %v2361 = vunpack.c.l.b16 %v2274
      %v2362 = vunpack.c.l.b16 %v2275
      %v2363 = vunpack.c.l.b16 %v2276
      %v2364 = vpack.c.b16 %v2333, %v2332
      %v2365 = vpack.c.b16 %v2335, %v2334
      %v2366 = vpack.c.b16 %v2337, %v2336
      %v2367 = vpack.c.b16 %v2339, %v2338
      %v2368 = vpack.c.b16 %v2341, %v2340
      %v2369 = vpack.c.b16 %v2343, %v2342
      %v2370 = vpack.c.b16 %v2345, %v2344
      %v2371 = vpack.c.b16 %v2347, %v2346
      %v2372 = vpack.c.b16 %v2349, %v2348
      %v2373 = vpack.c.b16 %v2351, %v2350
      %v2374 = vpack.c.b16 %v2353, %v2352
      %v2375 = vpack.c.b16 %v2355, %v2354
      %v2376 = vpack.c.b16 %v2357, %v2356
      %v2377 = vpack.c.b16 %v2359, %v2358
      %v2378 = vpack.c.b16 %v2361, %v2360
      %v2379 = vpack.c.b16 %v2363, %v2362
      %v2412 = vunpack.c.l.b16 %v2277
      %v2413 = vunpack.c.l.b16 %v2278
      %v2414 = vunpack.c.l.b16 %v2279
      %v2415 = vunpack.c.l.b16 %v2280
      %v2416 = vunpack.c.l.b16 %v2281
      %v2417 = vunpack.c.l.b16 %v2282
      %v2418 = vunpack.c.l.b16 %v2283
      %v2419 = vunpack.c.l.b16 %v2284
      %v2420 = vunpack.c.l.b16 %v2285
      %v2421 = vunpack.c.l.b16 %v2286
      %v2422 = vunpack.c.l.b16 %v2287
      %v2423 = vunpack.c.l.b16 %v2288
      %v2424 = vunpack.c.l.b16 %v2289
      %v2425 = vunpack.c.l.b16 %v2290
      %v2426 = vunpack.c.l.b16 %v2291
      %v2427 = vunpack.c.l.b16 %v2292
      %v2428 = vpack.c.b16 %v2413, %v2412
      %v2429 = vpack.c.b16 %v2415, %v2414
      %v2430 = vpack.c.b16 %v2417, %v2416
      %v2431 = vpack.c.b16 %v2419, %v2418
      %v2432 = vpack.c.b16 %v2421, %v2420
      %v2433 = vpack.c.b16 %v2423, %v2422
      %v2434 = vpack.c.b16 %v2425, %v2424
      %v2435 = vpack.c.b16 %v2427, %v2426
      %2444 = vmatprep.subr.bf16.mxu0 0
      %2445 = vmatpush1.bf16.msra.mxu0 %v2428
      %2446 = vmatprep.subr.bf16.mxu0 0
      %2447 = vmatpush1.bf16.msra.mxu0 %v2429
      %2448 = vmatprep.subr.bf16.mxu0 0
      %2449 = vmatpush1.bf16.msra.mxu0 %v2430
      %2450 = vmatprep.subr.bf16.mxu0 0
      %2451 = vmatpush1.bf16.msra.mxu0 %v2431
      %2452 = vmatprep.subr.bf16.mxu0 0
      %2453 = vmatpush1.bf16.msra.mxu0 %v2432
      %2454 = vmatprep.subr.bf16.mxu0 0
      %2455 = vmatpush1.bf16.msra.mxu0 %v2433
      %2456 = vmatprep.subr.bf16.mxu0 0
      %2457 = vmatpush1.bf16.msra.mxu0 %v2434
      %2458 = vmatprep.subr.bf16.mxu0 0
      %2459 = vmatpush1.bf16.msra.mxu0 %v2435
      %2460 = vmatprep.subr.bf16.mxu0 0
      %2461 = vmatpush1.bf16.msra.mxu0 0
      %2462 = vmatprep.subr.bf16.mxu0 0
      %2463 = vmatpush1.bf16.msra.mxu0 0
      %2464 = vmatprep.subr.bf16.mxu0 0
      %2465 = vmatpush1.bf16.msra.mxu0 0
      %2466 = vmatprep.subr.bf16.mxu0 0
      %2467 = vmatpush1.bf16.msra.mxu0 0
      %2468 = vmatprep.subr.bf16.mxu0 0
      %2469 = vmatpush1.bf16.msra.mxu0 0
      %2470 = vmatprep.subr.bf16.mxu0 0
      %2471 = vmatpush1.bf16.msra.mxu0 0
      %2472 = vmatprep.subr.bf16.mxu0 0
      %2473 = vmatpush1.bf16.msra.mxu0 0
      %2474 = vmatprep.subr.bf16.mxu0 0
      %2475 = vmatpush1.bf16.msra.mxu0 0
      %2476 = vmatprep.mubr.bf16.mxu0 0
      %2477 = vmatmul.mubr.bf16.gmra.mrb[0].mxu0 %v2364
      %v2478 = vpop.f32.mrb[0].mxu0
      %v2479 = vadd.f32 %v2298, %v2478
      %v2480 = vpop.f32.mrb[0].mxu0
      %v2481 = vpop.f32.mrb[0].mxu0
      %v2482 = vadd.f32 %v2298, %v2481
      %v2483 = vpop.f32.mrb[0].mxu0
      %2484 = vmatprep.mubr.bf16.mxu0 0
      %2485 = vmatmul.mubr.bf16.gmra.mrb[0].mxu0 %v2365
      %v2486 = vpop.f32.mrb[0].mxu0
      %v2487 = vadd.f32 %v2298, %v2486
      %v2488 = vpop.f32.mrb[0].mxu0
      %v2489 = vpop.f32.mrb[0].mxu0
      %v2490 = vadd.f32 %v2298, %v2489
      %v2491 = vpop.f32.mrb[0].mxu0
      %2492 = vmatprep.mubr.bf16.mxu0 0
      %2493 = vmatmul.mubr.bf16.gmra.mrb[0].mxu0 %v2366
      %v2494 = vpop.f32.mrb[0].mxu0
      %v2495 = vadd.f32 %v2298, %v2494
      %v2496 = vpop.f32.mrb[0].mxu0
      %v2497 = vpop.f32.mrb[0].mxu0
      %v2498 = vadd.f32 %v2298, %v2497
      %v2499 = vpop.f32.mrb[0].mxu0
      %2500 = vmatprep.mubr.bf16.mxu0 0
      %2501 = vmatmul.mubr.bf16.gmra.mrb[0].mxu0 %v2367
      %v2502 = vpop.f32.mrb[0].mxu0
      %v2503 = vadd.f32 %v2298, %v2502
      %v2504 = vpop.f32.mrb[0].mxu0
      %v2505 = vpop.f32.mrb[0].mxu0
      %v2506 = vadd.f32 %v2298, %v2505
      %v2507 = vpop.f32.mrb[0].mxu0
      %2508 = vmatprep.mubr.bf16.mxu0 0
      %2509 = vmatmul.mubr.bf16.gmra.mrb[0].mxu0 %v2368
      %v2510 = vpop.f32.mrb[0].mxu0
      %v2511 = vadd.f32 %v2298, %v2510
      %v2512 = vpop.f32.mrb[0].mxu0
      %v2513 = vpop.f32.mrb[0].mxu0
      %v2514 = vadd.f32 %v2298, %v2513
      %v2515 = vpop.f32.mrb[0].mxu0
      %2516 = vmatprep.mubr.bf16.mxu0 0
      %2517 = vmatmul.mubr.bf16.gmra.mrb[0].mxu0 %v2369
      %v2518 = vpop.f32.mrb[0].mxu0
      %v2519 = vadd.f32 %v2298, %v2518
      %v2520 = vpop.f32.mrb[0].mxu0
      %v2521 = vpop.f32.mrb[0].mxu0
      %v2522 = vadd.f32 %v2298, %v2521
      %v2523 = vpop.f32.mrb[0].mxu0
      %2524 = vmatprep.mubr.bf16.mxu0 0
      %2525 = vmatmul.mubr.bf16.gmra.mrb[0].mxu0 %v2370
      %v2526 = vpop.f32.mrb[0].mxu0
      %v2527 = vadd.f32 %v2298, %v2526
      %v2528 = vpop.f32.mrb[0].mxu0
      %v2529 = vpop.f32.mrb[0].mxu0
      %v2530 = vadd.f32 %v2298, %v2529
      %v2531 = vpop.f32.mrb[0].mxu0
      %2532 = vmatprep.mubr.bf16.mxu0 0
      %2533 = vmatmul.mubr.bf16.gmra.mrb[0].mxu0 %v2371
      %v2534 = vpop.f32.mrb[0].mxu0
      %v2535 = vadd.f32 %v2298, %v2534
      %v2536 = vpop.f32.mrb[0].mxu0
      %v2537 = vpop.f32.mrb[0].mxu0
      %v2538 = vadd.f32 %v2298, %v2537
      %v2539 = vpop.f32.mrb[0].mxu0
      %2540 = vmatprep.mubr.bf16.mxu0 0
      %2541 = vmatmul.mubr.bf16.gmra.mrb[0].mxu0 %v2372
      %v2542 = vpop.f32.mrb[0].mxu0
      %v2543 = vadd.f32 %v2298, %v2542
      %v2544 = vpop.f32.mrb[0].mxu0
      %v2545 = vpop.f32.mrb[0].mxu0
      %v2546 = vadd.f32 %v2298, %v2545
      %v2547 = vpop.f32.mrb[0].mxu0
      %2548 = vmatprep.mubr.bf16.mxu0 0
      %2549 = vmatmul.mubr.bf16.gmra.mrb[0].mxu0 %v2373
      %v2550 = vpop.f32.mrb[0].mxu0
      %v2551 = vadd.f32 %v2298, %v2550
      %v2552 = vpop.f32.mrb[0].mxu0
      %v2553 = vpop.f32.mrb[0].mxu0
      %v2554 = vadd.f32 %v2298, %v2553
      %v2555 = vpop.f32.mrb[0].mxu0
      %2556 = vmatprep.mubr.bf16.mxu0 0
      %2557 = vmatmul.mubr.bf16.gmra.mrb[0].mxu0 %v2374
      %v2558 = vpop.f32.mrb[0].mxu0
      %v2559 = vadd.f32 %v2298, %v2558
      %v2560 = vpop.f32.mrb[0].mxu0
      %v2561 = vpop.f32.mrb[0].mxu0
      %v2562 = vadd.f32 %v2298, %v2561
      %v2563 = vpop.f32.mrb[0].mxu0
      %2564 = vmatprep.mubr.bf16.mxu0 0
      %2565 = vmatmul.mubr.bf16.gmra.mrb[0].mxu0 %v2375
      %v2566 = vpop.f32.mrb[0].mxu0
      %v2567 = vadd.f32 %v2298, %v2566
      %v2568 = vpop.f32.mrb[0].mxu0
      %v2569 = vpop.f32.mrb[0].mxu0
      %v2570 = vadd.f32 %v2298, %v2569
      %v2571 = vpop.f32.mrb[0].mxu0
      %2572 = vmatprep.mubr.bf16.mxu0 0
      %2573 = vmatmul.mubr.bf16.gmra.mrb[0].mxu0 %v2376
      %v2574 = vpop.f32.mrb[0].mxu0
      %v2575 = vadd.f32 %v2298, %v2574
      %v2576 = vpop.f32.mrb[0].mxu0
      %v2577 = vpop.f32.mrb[0].mxu0
      %v2578 = vadd.f32 %v2298, %v2577
      %v2579 = vpop.f32.mrb[0].mxu0
      %2580 = vmatprep.mubr.bf16.mxu0 0
      %2581 = vmatmul.mubr.bf16.gmra.mrb[0].mxu0 %v2377
      %v2582 = vpop.f32.mrb[0].mxu0
      %v2583 = vadd.f32 %v2298, %v2582
      %v2584 = vpop.f32.mrb[0].mxu0
      %v2585 = vpop.f32.mrb[0].mxu0
      %v2586 = vadd.f32 %v2298, %v2585
      %v2587 = vpop.f32.mrb[0].mxu0
      %2588 = vmatprep.mubr.bf16.mxu0 0
      %2589 = vmatmul.mubr.bf16.gmra.mrb[0].mxu0 %v2378
      %v2590 = vpop.f32.mrb[0].mxu0
      %v2591 = vadd.f32 %v2298, %v2590
      %v2592 = vpop.f32.mrb[0].mxu0
      %v2593 = vpop.f32.mrb[0].mxu0
      %v2594 = vadd.f32 %v2298, %v2593
      %v2595 = vpop.f32.mrb[0].mxu0
      %2596 = vmatprep.mubr.bf16.mxu0 0
      %2597 = vmatmul.mubr.bf16.gmra.mrb[0].mxu0 %v2379
      %v2598 = vpop.f32.mrb[0].mxu0
      %v2599 = vadd.f32 %v2298, %v2598
      %v2600 = vpop.f32.mrb[0].mxu0
      %v2601 = vpop.f32.mrb[0].mxu0
      %v2602 = vadd.f32 %v2298, %v2601
      %v2603 = vpop.f32.mrb[0].mxu0
      %2604 = vdwg.mxu0
      %v2605 = vxor.u32 %v2479, 2147483648
      %v2606 = vxor.u32 %v2482, 2147483648
      %v2607 = vxor.u32 %v2487, 2147483648
      %v2608 = vxor.u32 %v2490, 2147483648
      %v2609 = vxor.u32 %v2495, 2147483648
      %v2610 = vxor.u32 %v2498, 2147483648
      %v2611 = vxor.u32 %v2503, 2147483648
      %v2612 = vxor.u32 %v2506, 2147483648
      %v2613 = vxor.u32 %v2511, 2147483648
      %v2614 = vxor.u32 %v2514, 2147483648
      %v2615 = vxor.u32 %v2519, 2147483648
      %v2616 = vxor.u32 %v2522, 2147483648
      %v2617 = vxor.u32 %v2527, 2147483648
      %v2618 = vxor.u32 %v2530, 2147483648
      %v2619 = vxor.u32 %v2535, 2147483648
      %v2620 = vxor.u32 %v2538, 2147483648
      %v2621 = vxor.u32 %v2543, 2147483648
      %v2622 = vxor.u32 %v2546, 2147483648
      %v2623 = vxor.u32 %v2551, 2147483648
      %v2624 = vxor.u32 %v2554, 2147483648
      %v2625 = vxor.u32 %v2559, 2147483648
      %v2626 = vxor.u32 %v2562, 2147483648
      %v2627 = vxor.u32 %v2567, 2147483648
      %v2628 = vxor.u32 %v2570, 2147483648
      %v2629 = vxor.u32 %v2575, 2147483648
      %v2630 = vxor.u32 %v2578, 2147483648
      %v2631 = vxor.u32 %v2583, 2147483648
      %v2632 = vxor.u32 %v2586, 2147483648
      %v2633 = vxor.u32 %v2591, 2147483648
      %v2634 = vxor.u32 %v2594, 2147483648
      %v2635 = vxor.u32 %v2599, 2147483648
      %v2636 = vxor.u32 %v2602, 2147483648
      %v2637 = vmul.f32 %v2605, 1.442695
      %v2638 = vpow.pop %v2637
      %v2639 = vmul.f32 %v2606, 1.442695
      %v2640 = vpow.pop %v2639
      %v2641 = vmul.f32 %v2607, 1.442695
      %v2642 = vpow.pop %v2641
      %v2643 = vmul.f32 %v2608, 1.442695
      %v2644 = vpow.pop %v2643
      %v2645 = vmul.f32 %v2609, 1.442695
      %v2646 = vpow.pop %v2645
      %v2647 = vmul.f32 %v2610, 1.442695
      %v2648 = vpow.pop %v2647
      %v2649 = vmul.f32 %v2611, 1.442695
      %v2650 = vpow.pop %v2649
      %v2651 = vmul.f32 %v2612, 1.442695
      %v2652 = vpow.pop %v2651
      %v2653 = vmul.f32 %v2613, 1.442695
      %v2654 = vpow.pop %v2653
      %v2655 = vmul.f32 %v2614, 1.442695
      %v2656 = vpow.pop %v2655
      %v2657 = vmul.f32 %v2615, 1.442695
      %v2658 = vpow.pop %v2657
      %v2659 = vmul.f32 %v2616, 1.442695
      %v2660 = vpow.pop %v2659
      %v2661 = vmul.f32 %v2617, 1.442695
      %v2662 = vpow.pop %v2661
      %v2663 = vmul.f32 %v2618, 1.442695
      %v2664 = vpow.pop %v2663
      %v2665 = vmul.f32 %v2619, 1.442695
      %v2666 = vpow.pop %v2665
      %v2667 = vmul.f32 %v2620, 1.442695
      %v2668 = vpow.pop %v2667
      %v2669 = vmul.f32 %v2621, 1.442695
      %v2670 = vpow.pop %v2669
      %v2671 = vmul.f32 %v2622, 1.442695
      %v2672 = vpow.pop %v2671
      %v2673 = vmul.f32 %v2623, 1.442695
      %v2674 = vpow.pop %v2673
      %v2675 = vmul.f32 %v2624, 1.442695
      %v2676 = vpow.pop %v2675
      %v2677 = vmul.f32 %v2625, 1.442695
      %v2678 = vpow.pop %v2677
      %v2679 = vmul.f32 %v2626, 1.442695
      %v2680 = vpow.pop %v2679
      %v2681 = vmul.f32 %v2627, 1.442695
      %v2682 = vpow.pop %v2681
      %v2683 = vmul.f32 %v2628, 1.442695
      %v2684 = vpow.pop %v2683
      %v2685 = vmul.f32 %v2629, 1.442695
      %v2686 = vpow.pop %v2685
      %v2687 = vmul.f32 %v2630, 1.442695
      %v2688 = vpow.pop %v2687
      %v2689 = vmul.f32 %v2631, 1.442695
      %v2690 = vpow.pop %v2689
      %v2691 = vmul.f32 %v2632, 1.442695
      %v2692 = vpow.pop %v2691
      %v2693 = vmul.f32 %v2633, 1.442695
      %v2694 = vpow.pop %v2693
      %v2695 = vmul.f32 %v2634, 1.442695
      %v2696 = vpow.pop %v2695
      %v2697 = vmul.f32 %v2635, 1.442695
      %v2698 = vpow.pop %v2697
      %v2699 = vmul.f32 %v2636, 1.442695
      %v2700 = vpow.pop %v2699
      %v2701 = vadd.f32 %v2638, 1.0
      %v2702 = vadd.f32 %v2640, 1.0
      %v2703 = vadd.f32 %v2642, 1.0
      %v2704 = vadd.f32 %v2644, 1.0
      %v2705 = vadd.f32 %v2646, 1.0
      %v2706 = vadd.f32 %v2648, 1.0
      %v2707 = vadd.f32 %v2650, 1.0
      %v2708 = vadd.f32 %v2652, 1.0
      %v2709 = vadd.f32 %v2654, 1.0
      %v2710 = vadd.f32 %v2656, 1.0
      %v2711 = vadd.f32 %v2658, 1.0
      %v2712 = vadd.f32 %v2660, 1.0
      %v2713 = vadd.f32 %v2662, 1.0
      %v2714 = vadd.f32 %v2664, 1.0
      %v2715 = vadd.f32 %v2666, 1.0
      %v2716 = vadd.f32 %v2668, 1.0
      %v2717 = vadd.f32 %v2670, 1.0
      %v2718 = vadd.f32 %v2672, 1.0
      %v2719 = vadd.f32 %v2674, 1.0
      %v2720 = vadd.f32 %v2676, 1.0
      %v2721 = vadd.f32 %v2678, 1.0
      %v2722 = vadd.f32 %v2680, 1.0
      %v2723 = vadd.f32 %v2682, 1.0
      %v2724 = vadd.f32 %v2684, 1.0
      %v2725 = vadd.f32 %v2686, 1.0
      %v2726 = vadd.f32 %v2688, 1.0
      %v2727 = vadd.f32 %v2690, 1.0
      %v2728 = vadd.f32 %v2692, 1.0
      %v2729 = vadd.f32 %v2694, 1.0
      %v2730 = vadd.f32 %v2696, 1.0
      %v2731 = vadd.f32 %v2698, 1.0
      %v2732 = vadd.f32 %v2700, 1.0
      %v2733 = vrcp.pop %v2701
      %v2734 = vmul.f32 1.0, %v2733
      %v2735 = vrcp.pop %v2702
      %v2736 = vmul.f32 1.0, %v2735
      %v2737 = vrcp.pop %v2703
      %v2738 = vmul.f32 1.0, %v2737
      %v2739 = vrcp.pop %v2704
      %v2740 = vmul.f32 1.0, %v2739
      %v2741 = vrcp.pop %v2705
      %v2742 = vmul.f32 1.0, %v2741
      %v2743 = vrcp.pop %v2706
      %v2744 = vmul.f32 1.0, %v2743
      %v2745 = vrcp.pop %v2707
      %v2746 = vmul.f32 1.0, %v2745
      %v2747 = vrcp.pop %v2708
      %v2748 = vmul.f32 1.0, %v2747
      %v2749 = vrcp.pop %v2709
      %v2750 = vmul.f32 1.0, %v2749
      %v2751 = vrcp.pop %v2710
      %v2752 = vmul.f32 1.0, %v2751
      %v2753 = vrcp.pop %v2711
      %v2754 = vmul.f32 1.0, %v2753
      %v2755 = vrcp.pop %v2712
      %v2756 = vmul.f32 1.0, %v2755
      %v2757 = vrcp.pop %v2713
      %v2758 = vmul.f32 1.0, %v2757
      %v2759 = vrcp.pop %v2714
      %v2760 = vmul.f32 1.0, %v2759
      %v2761 = vrcp.pop %v2715
      %v2762 = vmul.f32 1.0, %v2761
      %v2763 = vrcp.pop %v2716
      %v2764 = vmul.f32 1.0, %v2763
      %v2765 = vrcp.pop %v2717
      %v2766 = vmul.f32 1.0, %v2765
      %v2767 = vrcp.pop %v2718
      %v2768 = vmul.f32 1.0, %v2767
      %v2769 = vrcp.pop %v2719
      %v2770 = vmul.f32 1.0, %v2769
      %v2771 = vrcp.pop %v2720
      %v2772 = vmul.f32 1.0, %v2771
      %v2773 = vrcp.pop %v2721
      %v2774 = vmul.f32 1.0, %v2773
      %v2775 = vrcp.pop %v2722
      %v2776 = vmul.f32 1.0, %v2775
      %v2777 = vrcp.pop %v2723
      %v2778 = vmul.f32 1.0, %v2777
      %v2779 = vrcp.pop %v2724
      %v2780 = vmul.f32 1.0, %v2779
      %v2781 = vrcp.pop %v2725
      %v2782 = vmul.f32 1.0, %v2781
      %v2783 = vrcp.pop %v2726
      %v2784 = vmul.f32 1.0, %v2783
      %v2785 = vrcp.pop %v2727
      %v2786 = vmul.f32 1.0, %v2785
      %v2787 = vrcp.pop %v2728
      %v2788 = vmul.f32 1.0, %v2787
      %v2789 = vrcp.pop %v2729
      %v2790 = vmul.f32 1.0, %v2789
      %v2791 = vrcp.pop %v2730
      %v2792 = vmul.f32 1.0, %v2791
      %v2793 = vrcp.pop %v2731
      %v2794 = vmul.f32 1.0, %v2793
      %v2795 = vrcp.pop %v2732
      %v2796 = vmul.f32 1.0, %v2795
      %v2797 = vmul.f32 %v2479, %v2734
      %v2798 = vmul.f32 %v2482, %v2736
      %v2799 = vmul.f32 %v2487, %v2738
      %v2800 = vmul.f32 %v2490, %v2740
      %v2801 = vmul.f32 %v2495, %v2742
      %v2802 = vmul.f32 %v2498, %v2744
      %v2803 = vmul.f32 %v2503, %v2746
      %v2804 = vmul.f32 %v2506, %v2748
      %v2805 = vmul.f32 %v2511, %v2750
      %v2806 = vmul.f32 %v2514, %v2752
      %v2807 = vmul.f32 %v2519, %v2754
      %v2808 = vmul.f32 %v2522, %v2756
      %v2809 = vmul.f32 %v2527, %v2758
      %v2810 = vmul.f32 %v2530, %v2760
      %v2811 = vmul.f32 %v2535, %v2762
      %v2812 = vmul.f32 %v2538, %v2764
      %v2813 = vmul.f32 %v2543, %v2766
      %v2814 = vmul.f32 %v2546, %v2768
      %v2815 = vmul.f32 %v2551, %v2770
      %v2816 = vmul.f32 %v2554, %v2772
      %v2817 = vmul.f32 %v2559, %v2774
      %v2818 = vmul.f32 %v2562, %v2776
      %v2819 = vmul.f32 %v2567, %v2778
      %v2820 = vmul.f32 %v2570, %v2780
      %v2821 = vmul.f32 %v2575, %v2782
      %v2822 = vmul.f32 %v2578, %v2784
      %v2823 = vmul.f32 %v2583, %v2786
      %v2824 = vmul.f32 %v2586, %v2788
      %v2825 = vmul.f32 %v2591, %v2790
      %v2826 = vmul.f32 %v2594, %v2792
      %v2827 = vmul.f32 %v2599, %v2794
      %v2828 = vmul.f32 %v2602, %v2796
      %v2829 = vrot.slane %v2797, 4
      %v2830 = vadd.f32 %v2797, %v2829
      %v2831 = vrot.slane %v2830, 2
      %v2832 = vadd.f32 %v2830, %v2831
      %v2833 = vrot.slane %v2832, 1
      %v2834 = vadd.f32 %v2832, %v2833
      %v2835 = vrot.slane %v2798, 4
      %v2836 = vadd.f32 %v2798, %v2835
      %v2837 = vrot.slane %v2836, 2
      %v2838 = vadd.f32 %v2836, %v2837
      %v2839 = vrot.slane %v2838, 1
      %v2840 = vadd.f32 %v2838, %v2839
      %v2841 = vrot.slane %v2799, 4
      %v2842 = vadd.f32 %v2799, %v2841
      %v2843 = vrot.slane %v2842, 2
      %v2844 = vadd.f32 %v2842, %v2843
      %v2845 = vrot.slane %v2844, 1
      %v2846 = vadd.f32 %v2844, %v2845
      %v2847 = vrot.slane %v2800, 4
      %v2848 = vadd.f32 %v2800, %v2847
      %v2849 = vrot.slane %v2848, 2
      %v2850 = vadd.f32 %v2848, %v2849
      %v2851 = vrot.slane %v2850, 1
      %v2852 = vadd.f32 %v2850, %v2851
      %v2853 = vrot.slane %v2801, 4
      %v2854 = vadd.f32 %v2801, %v2853
      %v2855 = vrot.slane %v2854, 2
      %v2856 = vadd.f32 %v2854, %v2855
      %v2857 = vrot.slane %v2856, 1
      %v2858 = vadd.f32 %v2856, %v2857
      %v2859 = vrot.slane %v2802, 4
      %v2860 = vadd.f32 %v2802, %v2859
      %v2861 = vrot.slane %v2860, 2
      %v2862 = vadd.f32 %v2860, %v2861
      %v2863 = vrot.slane %v2862, 1
      %v2864 = vadd.f32 %v2862, %v2863
      %v2865 = vrot.slane %v2803, 4
      %v2866 = vadd.f32 %v2803, %v2865
      %v2867 = vrot.slane %v2866, 2
      %v2868 = vadd.f32 %v2866, %v2867
      %v2869 = vrot.slane %v2868, 1
      %v2870 = vadd.f32 %v2868, %v2869
      %v2871 = vrot.slane %v2804, 4
      %v2872 = vadd.f32 %v2804, %v2871
      %v2873 = vrot.slane %v2872, 2
      %v2874 = vadd.f32 %v2872, %v2873
      %v2875 = vrot.slane %v2874, 1
      %v2876 = vadd.f32 %v2874, %v2875
      %v2877 = vrot.slane %v2805, 4
      %v2878 = vadd.f32 %v2805, %v2877
      %v2879 = vrot.slane %v2878, 2
      %v2880 = vadd.f32 %v2878, %v2879
      %v2881 = vrot.slane %v2880, 1
      %v2882 = vadd.f32 %v2880, %v2881
      %v2883 = vrot.slane %v2806, 4
      %v2884 = vadd.f32 %v2806, %v2883
      %v2885 = vrot.slane %v2884, 2
      %v2886 = vadd.f32 %v2884, %v2885
      %v2887 = vrot.slane %v2886, 1
      %v2888 = vadd.f32 %v2886, %v2887
      %v2889 = vrot.slane %v2807, 4
      %v2890 = vadd.f32 %v2807, %v2889
      %v2891 = vrot.slane %v2890, 2
      %v2892 = vadd.f32 %v2890, %v2891
      %v2893 = vrot.slane %v2892, 1
      %v2894 = vadd.f32 %v2892, %v2893
      %v2895 = vrot.slane %v2808, 4
      %v2896 = vadd.f32 %v2808, %v2895
      %v2897 = vrot.slane %v2896, 2
      %v2898 = vadd.f32 %v2896, %v2897
      %v2899 = vrot.slane %v2898, 1
      %v2900 = vadd.f32 %v2898, %v2899
      %v2901 = vrot.slane %v2809, 4
      %v2902 = vadd.f32 %v2809, %v2901
      %v2903 = vrot.slane %v2902, 2
      %v2904 = vadd.f32 %v2902, %v2903
      %v2905 = vrot.slane %v2904, 1
      %v2906 = vadd.f32 %v2904, %v2905
      %v2907 = vrot.slane %v2810, 4
      %v2908 = vadd.f32 %v2810, %v2907
      %v2909 = vrot.slane %v2908, 2
      %v2910 = vadd.f32 %v2908, %v2909
      %v2911 = vrot.slane %v2910, 1
      %v2912 = vadd.f32 %v2910, %v2911
      %v2913 = vrot.slane %v2811, 4
      %v2914 = vadd.f32 %v2811, %v2913
      %v2915 = vrot.slane %v2914, 2
      %v2916 = vadd.f32 %v2914, %v2915
      %v2917 = vrot.slane %v2916, 1
      %v2918 = vadd.f32 %v2916, %v2917
      %v2919 = vrot.slane %v2812, 4
      %v2920 = vadd.f32 %v2812, %v2919
      %v2921 = vrot.slane %v2920, 2
      %v2922 = vadd.f32 %v2920, %v2921
      %v2923 = vrot.slane %v2922, 1
      %v2924 = vadd.f32 %v2922, %v2923
      %v2925 = vrot.slane %v2813, 4
      %v2926 = vadd.f32 %v2813, %v2925
      %v2927 = vrot.slane %v2926, 2
      %v2928 = vadd.f32 %v2926, %v2927
      %v2929 = vrot.slane %v2928, 1
      %v2930 = vadd.f32 %v2928, %v2929
      %v2931 = vrot.slane %v2814, 4
      %v2932 = vadd.f32 %v2814, %v2931
      %v2933 = vrot.slane %v2932, 2
      %v2934 = vadd.f32 %v2932, %v2933
      %v2935 = vrot.slane %v2934, 1
      %v2936 = vadd.f32 %v2934, %v2935
      %v2937 = vrot.slane %v2815, 4
      %v2938 = vadd.f32 %v2815, %v2937
      %v2939 = vrot.slane %v2938, 2
      %v2940 = vadd.f32 %v2938, %v2939
      %v2941 = vrot.slane %v2940, 1
      %v2942 = vadd.f32 %v2940, %v2941
      %v2943 = vrot.slane %v2816, 4
      %v2944 = vadd.f32 %v2816, %v2943
      %v2945 = vrot.slane %v2944, 2
      %v2946 = vadd.f32 %v2944, %v2945
      %v2947 = vrot.slane %v2946, 1
      %v2948 = vadd.f32 %v2946, %v2947
      %v2949 = vrot.slane %v2817, 4
      %v2950 = vadd.f32 %v2817, %v2949
      %v2951 = vrot.slane %v2950, 2
      %v2952 = vadd.f32 %v2950, %v2951
      %v2953 = vrot.slane %v2952, 1
      %v2954 = vadd.f32 %v2952, %v2953
      %v2955 = vrot.slane %v2818, 4
      %v2956 = vadd.f32 %v2818, %v2955
      %v2957 = vrot.slane %v2956, 2
      %v2958 = vadd.f32 %v2956, %v2957
      %v2959 = vrot.slane %v2958, 1
      %v2960 = vadd.f32 %v2958, %v2959
      %v2961 = vrot.slane %v2819, 4
      %v2962 = vadd.f32 %v2819, %v2961
      %v2963 = vrot.slane %v2962, 2
      %v2964 = vadd.f32 %v2962, %v2963
      %v2965 = vrot.slane %v2964, 1
      %v2966 = vadd.f32 %v2964, %v2965
      %v2967 = vrot.slane %v2820, 4
      %v2968 = vadd.f32 %v2820, %v2967
      %v2969 = vrot.slane %v2968, 2
      %v2970 = vadd.f32 %v2968, %v2969
      %v2971 = vrot.slane %v2970, 1
      %v2972 = vadd.f32 %v2970, %v2971
      %v2973 = vrot.slane %v2821, 4
      %v2974 = vadd.f32 %v2821, %v2973
      %v2975 = vrot.slane %v2974, 2
      %v2976 = vadd.f32 %v2974, %v2975
      %v2977 = vrot.slane %v2976, 1
      %v2978 = vadd.f32 %v2976, %v2977
      %v2979 = vrot.slane %v2822, 4
      %v2980 = vadd.f32 %v2822, %v2979
      %v2981 = vrot.slane %v2980, 2
      %v2982 = vadd.f32 %v2980, %v2981
      %v2983 = vrot.slane %v2982, 1
      %v2984 = vadd.f32 %v2982, %v2983
      %v2985 = vrot.slane %v2823, 4
      %v2986 = vadd.f32 %v2823, %v2985
      %v2987 = vrot.slane %v2986, 2
      %v2988 = vadd.f32 %v2986, %v2987
      %v2989 = vrot.slane %v2988, 1
      %v2990 = vadd.f32 %v2988, %v2989
      %v2991 = vrot.slane %v2824, 4
      %v2992 = vadd.f32 %v2824, %v2991
      %v2993 = vrot.slane %v2992, 2
      %v2994 = vadd.f32 %v2992, %v2993
      %v2995 = vrot.slane %v2994, 1
      %v2996 = vadd.f32 %v2994, %v2995
      %v2997 = vrot.slane %v2825, 4
      %v2998 = vadd.f32 %v2825, %v2997
      %v2999 = vrot.slane %v2998, 2
      %v3000 = vadd.f32 %v2998, %v2999
      %v3001 = vrot.slane %v3000, 1
      %v3002 = vadd.f32 %v3000, %v3001
      %v3003 = vrot.slane %v2826, 4
      %v3004 = vadd.f32 %v2826, %v3003
      %v3005 = vrot.slane %v3004, 2
      %v3006 = vadd.f32 %v3004, %v3005
      %v3007 = vrot.slane %v3006, 1
      %v3008 = vadd.f32 %v3006, %v3007
      %v3009 = vrot.slane %v2827, 4
      %v3010 = vadd.f32 %v2827, %v3009
      %v3011 = vrot.slane %v3010, 2
      %v3012 = vadd.f32 %v3010, %v3011
      %v3013 = vrot.slane %v3012, 1
      %v3014 = vadd.f32 %v3012, %v3013
      %v3015 = vrot.slane %v2828, 4
      %v3016 = vadd.f32 %v2828, %v3015
      %v3017 = vrot.slane %v3016, 2
      %v3018 = vadd.f32 %v3016, %v3017
      %v3019 = vrot.slane %v3018, 1
      %v3020 = vadd.f32 %v3018, %v3019
      %v3021 = vmul.f32 %v2834, 0.125
      %v3022 = vmul.f32 %v2840, 0.125
      %v3023 = vmul.f32 %v2846, 0.125
      %v3024 = vmul.f32 %v2852, 0.125
      %v3025 = vmul.f32 %v2858, 0.125
      %v3026 = vmul.f32 %v2864, 0.125
      %v3027 = vmul.f32 %v2870, 0.125
      %v3028 = vmul.f32 %v2876, 0.125
      %v3029 = vmul.f32 %v2882, 0.125
      %v3030 = vmul.f32 %v2888, 0.125
      %v3031 = vmul.f32 %v2894, 0.125
      %v3032 = vmul.f32 %v2900, 0.125
      %v3033 = vmul.f32 %v2906, 0.125
      %v3034 = vmul.f32 %v2912, 0.125
      %v3035 = vmul.f32 %v2918, 0.125
      %v3036 = vmul.f32 %v2924, 0.125
      %v3037 = vmul.f32 %v2930, 0.125
      %v3038 = vmul.f32 %v2936, 0.125
      %v3039 = vmul.f32 %v2942, 0.125
      %v3040 = vmul.f32 %v2948, 0.125
      %v3041 = vmul.f32 %v2954, 0.125
      %v3042 = vmul.f32 %v2960, 0.125
      %v3043 = vmul.f32 %v2966, 0.125
      %v3044 = vmul.f32 %v2972, 0.125
      %v3045 = vmul.f32 %v2978, 0.125
      %v3046 = vmul.f32 %v2984, 0.125
      %v3047 = vmul.f32 %v2990, 0.125
      %v3048 = vmul.f32 %v2996, 0.125
      %v3049 = vmul.f32 %v3002, 0.125
      %v3050 = vmul.f32 %v3008, 0.125
      %v3051 = vmul.f32 %v3014, 0.125
      %v3052 = vmul.f32 %v3020, 0.125
      %v3053 = vpack.c.bf16 %v3021, %v3021
      %v3054 = vpack.c.bf16 %v3022, %v3022
      %v3055 = vpack.c.bf16 %v3023, %v3023
      %v3056 = vpack.c.bf16 %v3024, %v3024
      %v3057 = vpack.c.bf16 %v3025, %v3025
      %v3058 = vpack.c.bf16 %v3026, %v3026
      %v3059 = vpack.c.bf16 %v3027, %v3027
      %v3060 = vpack.c.bf16 %v3028, %v3028
      %v3061 = vpack.c.bf16 %v3029, %v3029
      %v3062 = vpack.c.bf16 %v3030, %v3030
      %v3063 = vpack.c.bf16 %v3031, %v3031
      %v3064 = vpack.c.bf16 %v3032, %v3032
      %v3065 = vpack.c.bf16 %v3033, %v3033
      %v3066 = vpack.c.bf16 %v3034, %v3034
      %v3067 = vpack.c.bf16 %v3035, %v3035
      %v3068 = vpack.c.bf16 %v3036, %v3036
      %v3069 = vpack.c.bf16 %v3037, %v3037
      %v3070 = vpack.c.bf16 %v3038, %v3038
      %v3071 = vpack.c.bf16 %v3039, %v3039
      %v3072 = vpack.c.bf16 %v3040, %v3040
      %v3073 = vpack.c.bf16 %v3041, %v3041
      %v3074 = vpack.c.bf16 %v3042, %v3042
      %v3075 = vpack.c.bf16 %v3043, %v3043
      %v3076 = vpack.c.bf16 %v3044, %v3044
      %v3077 = vpack.c.bf16 %v3045, %v3045
      %v3078 = vpack.c.bf16 %v3046, %v3046
      %v3079 = vpack.c.bf16 %v3047, %v3047
      %v3080 = vpack.c.bf16 %v3048, %v3048
      %v3081 = vpack.c.bf16 %v3049, %v3049
      %v3082 = vpack.c.bf16 %v3050, %v3050
      %v3083 = vpack.c.bf16 %v3051, %v3051
      %v3084 = vpack.c.bf16 %v3052, %v3052
      %v3117 = vunpack.c.l.b16 %v3053
      %v3118 = vunpack.c.l.b16 %v3054
      %v3119 = vunpack.c.l.b16 %v3055
      %v3120 = vunpack.c.l.b16 %v3056
      %v3121 = vunpack.c.l.b16 %v3057
      %v3122 = vunpack.c.l.b16 %v3058
      %v3123 = vunpack.c.l.b16 %v3059
      %v3124 = vunpack.c.l.b16 %v3060
      %v3125 = vunpack.c.l.b16 %v3061
      %v3126 = vunpack.c.l.b16 %v3062
      %v3127 = vunpack.c.l.b16 %v3063
      %v3128 = vunpack.c.l.b16 %v3064
      %v3129 = vunpack.c.l.b16 %v3065
      %v3130 = vunpack.c.l.b16 %v3066
      %v3131 = vunpack.c.l.b16 %v3067
      %v3132 = vunpack.c.l.b16 %v3068
      %v3133 = vunpack.c.l.b16 %v3069
      %v3134 = vunpack.c.l.b16 %v3070
      %v3135 = vunpack.c.l.b16 %v3071
      %v3136 = vunpack.c.l.b16 %v3072
      %v3137 = vunpack.c.l.b16 %v3073
      %v3138 = vunpack.c.l.b16 %v3074
      %v3139 = vunpack.c.l.b16 %v3075
      %v3140 = vunpack.c.l.b16 %v3076
      %v3141 = vunpack.c.l.b16 %v3077
      %v3142 = vunpack.c.l.b16 %v3078
      %v3143 = vunpack.c.l.b16 %v3079
      %v3144 = vunpack.c.l.b16 %v3080
      %v3145 = vunpack.c.l.b16 %v3081
      %v3146 = vunpack.c.l.b16 %v3082
      %v3147 = vunpack.c.l.b16 %v3083
      %v3148 = vunpack.c.l.b16 %v3084
      %vm3149 = vcmask 1041409
      %v3150 = vsel %vm3149, %v3118, %v3117
      %vm3151 = vcmask 1042434
      %v3152 = vsel %vm3151, %v3119, %v3150
      %vm3153 = vcmask 1043459
      %v3154 = vsel %vm3153, %v3120, %v3152
      %vm3155 = vcmask 1044484
      %v3156 = vsel %vm3155, %v3121, %v3154
      %vm3157 = vcmask 1045509
      %v3158 = vsel %vm3157, %v3122, %v3156
      %vm3159 = vcmask 1046534
      %v3160 = vsel %vm3159, %v3123, %v3158
      %vm3161 = vcmask 1047559
      %v3162 = vsel %vm3161, %v3124, %v3160
      %v3163 = vsel %vm3149, %v3126, %v3125
      %v3164 = vsel %vm3151, %v3127, %v3163
      %v3165 = vsel %vm3153, %v3128, %v3164
      %v3166 = vsel %vm3155, %v3129, %v3165
      %v3167 = vsel %vm3157, %v3130, %v3166
      %v3168 = vsel %vm3159, %v3131, %v3167
      %v3169 = vsel %vm3161, %v3132, %v3168
      %v3170 = vsel %vm3149, %v3134, %v3133
      %v3171 = vsel %vm3151, %v3135, %v3170
      %v3172 = vsel %vm3153, %v3136, %v3171
      %v3173 = vsel %vm3155, %v3137, %v3172
      %v3174 = vsel %vm3157, %v3138, %v3173
      %v3175 = vsel %vm3159, %v3139, %v3174
      %v3176 = vsel %vm3161, %v3140, %v3175
      %v3177 = vsel %vm3149, %v3142, %v3141
      %v3178 = vsel %vm3151, %v3143, %v3177
      %v3179 = vsel %vm3153, %v3144, %v3178
      %v3180 = vsel %vm3155, %v3145, %v3179
      %v3181 = vsel %vm3157, %v3146, %v3180
      %v3182 = vsel %vm3159, %v3147, %v3181
      %v3183 = vsel %vm3161, %v3148, %v3182
      %v3184 = vpack.c.b16 %v3169, %v3162
      %v3185 = vpack.c.b16 %v3183, %v3176
      %v3188 = vld [vmem:[%s796] sm:$0xf]
      %v3189 = vld [vmem:[%s796 + $0x4] sm:$0xf]
      %v3190 = vld [vmem:[%s796 + $0x8] sm:$0xf]
      %v3191 = vld [vmem:[%s796 + $0xc] sm:$0xf]
      %v3192 = vld [vmem:[%s796 + $0x10] sm:$0xf]
      %v3193 = vld [vmem:[%s796 + $0x14] sm:$0xf]
      %v3194 = vld [vmem:[%s796 + $0x18] sm:$0xf]
      %v3195 = vld [vmem:[%s796 + $0x1c] sm:$0xf]
      %v3196 = vld [vmem:[%s796 + $0x20] sm:$0xf]
      %v3197 = vld [vmem:[%s796 + $0x24] sm:$0xf]
      %v3198 = vld [vmem:[%s796 + $0x28] sm:$0xf]
      %v3199 = vld [vmem:[%s796 + $0x2c] sm:$0xf]
      %v3200 = vld [vmem:[%s796 + $0x30] sm:$0xf]
      %v3201 = vld [vmem:[%s796 + $0x34] sm:$0xf]
      %v3202 = vld [vmem:[%s796 + $0x38] sm:$0xf]
      %v3203 = vld [vmem:[%s796 + $0x3c] sm:$0xf]
      %v3204 = vld [vmem:[%s796 + $0x40] sm:$0xf]
      %v3205 = vld [vmem:[%s796 + $0x44] sm:$0xf]
      %v3206 = vld [vmem:[%s796 + $0x48] sm:$0xf]
      %v3207 = vld [vmem:[%s796 + $0x4c] sm:$0xf]
      %v3208 = vld [vmem:[%s796 + $0x50] sm:$0xf]
      %v3209 = vld [vmem:[%s796 + $0x54] sm:$0xf]
      %v3210 = vld [vmem:[%s796 + $0x58] sm:$0xf]
      %v3211 = vld [vmem:[%s796 + $0x5c] sm:$0xf]
      %v3212 = vld [vmem:[%s796 + $0x60] sm:$0xf]
      %v3213 = vld [vmem:[%s796 + $0x64] sm:$0xf]
      %v3214 = vld [vmem:[%s796 + $0x68] sm:$0xf]
      %v3215 = vld [vmem:[%s796 + $0x6c] sm:$0xf]
      %v3216 = vld [vmem:[%s796 + $0x70] sm:$0xf]
      %v3217 = vld [vmem:[%s796 + $0x74] sm:$0xf]
      %v3218 = vld [vmem:[%s796 + $0x78] sm:$0xf]
      %v3219 = vld [vmem:[%s796 + $0x7c] sm:$0xf]
      %v3220 = vld [vmem:[%s799] sm:$0x1]
      %v3222 = vlaneseq
      %v3223 = vshrl.u32 %v3222, 7
      %v3224 = vsub.s32 0, %v3223
      %v3225 = vrot.slane %v3220, %v3224
      %v3259 = vunpack.c.l.b16 %v3188
      %v3260 = vunpack.c.l.b16 %v3189
      %v3261 = vunpack.c.l.b16 %v3190
      %v3262 = vunpack.c.l.b16 %v3191
      %v3263 = vunpack.c.l.b16 %v3192
      %v3264 = vunpack.c.l.b16 %v3193
      %v3265 = vunpack.c.l.b16 %v3194
      %v3266 = vunpack.c.l.b16 %v3195
      %v3267 = vunpack.c.l.b16 %v3196
      %v3268 = vunpack.c.l.b16 %v3197
      %v3269 = vunpack.c.l.b16 %v3198
      %v3270 = vunpack.c.l.b16 %v3199
      %v3271 = vunpack.c.l.b16 %v3200
      %v3272 = vunpack.c.l.b16 %v3201
      %v3273 = vunpack.c.l.b16 %v3202
      %v3274 = vunpack.c.l.b16 %v3203
      %v3275 = vunpack.c.l.b16 %v3204
      %v3276 = vunpack.c.l.b16 %v3205
      %v3277 = vunpack.c.l.b16 %v3206
      %v3278 = vunpack.c.l.b16 %v3207
      %v3279 = vunpack.c.l.b16 %v3208
      %v3280 = vunpack.c.l.b16 %v3209
      %v3281 = vunpack.c.l.b16 %v3210
      %v3282 = vunpack.c.l.b16 %v3211
      %v3283 = vunpack.c.l.b16 %v3212
      %v3284 = vunpack.c.l.b16 %v3213
      %v3285 = vunpack.c.l.b16 %v3214
      %v3286 = vunpack.c.l.b16 %v3215
      %v3287 = vunpack.c.l.b16 %v3216
      %v3288 = vunpack.c.l.b16 %v3217
      %v3289 = vunpack.c.l.b16 %v3218
      %v3290 = vunpack.c.l.b16 %v3219
      %v3291 = vpack.c.b16 %v3260, %v3259
      %v3292 = vpack.c.b16 %v3262, %v3261
      %v3293 = vpack.c.b16 %v3264, %v3263
      %v3294 = vpack.c.b16 %v3266, %v3265
      %v3295 = vpack.c.b16 %v3268, %v3267
      %v3296 = vpack.c.b16 %v3270, %v3269
      %v3297 = vpack.c.b16 %v3272, %v3271
      %v3298 = vpack.c.b16 %v3274, %v3273
      %v3299 = vpack.c.b16 %v3276, %v3275
      %v3300 = vpack.c.b16 %v3278, %v3277
      %v3301 = vpack.c.b16 %v3280, %v3279
      %v3302 = vpack.c.b16 %v3282, %v3281
      %v3303 = vpack.c.b16 %v3284, %v3283
      %v3304 = vpack.c.b16 %v3286, %v3285
      %v3305 = vpack.c.b16 %v3288, %v3287
      %v3306 = vpack.c.b16 %v3290, %v3289
      %3323 = vmatprep.subr.bf16.mxu0 0
      %3324 = vmatpush1.bf16.msra.mxu0 %v3291
      %3325 = vmatprep.subr.bf16.mxu0 0
      %3326 = vmatpush1.bf16.msra.mxu0 %v3292
      %3327 = vmatprep.subr.bf16.mxu0 0
      %3328 = vmatpush1.bf16.msra.mxu0 %v3293
      %3329 = vmatprep.subr.bf16.mxu0 0
      %3330 = vmatpush1.bf16.msra.mxu0 %v3294
      %3331 = vmatprep.subr.bf16.mxu0 0
      %3332 = vmatpush1.bf16.msra.mxu0 %v3295
      %3333 = vmatprep.subr.bf16.mxu0 0
      %3334 = vmatpush1.bf16.msra.mxu0 %v3296
      %3335 = vmatprep.subr.bf16.mxu0 0
      %3336 = vmatpush1.bf16.msra.mxu0 %v3297
      %3337 = vmatprep.subr.bf16.mxu0 0
      %3338 = vmatpush1.bf16.msra.mxu0 %v3298
      %3339 = vmatprep.subr.bf16.mxu0 0
      %3340 = vmatpush1.bf16.msra.mxu0 %v3299
      %3341 = vmatprep.subr.bf16.mxu0 0
      %3342 = vmatpush1.bf16.msra.mxu0 %v3300
      %3343 = vmatprep.subr.bf16.mxu0 0
      %3344 = vmatpush1.bf16.msra.mxu0 %v3301
      %3345 = vmatprep.subr.bf16.mxu0 0
      %3346 = vmatpush1.bf16.msra.mxu0 %v3302
      %3347 = vmatprep.subr.bf16.mxu0 0
      %3348 = vmatpush1.bf16.msra.mxu0 %v3303
      %3349 = vmatprep.subr.bf16.mxu0 0
      %3350 = vmatpush1.bf16.msra.mxu0 %v3304
      %3351 = vmatprep.subr.bf16.mxu0 0
      %3352 = vmatpush1.bf16.msra.mxu0 %v3305
      %3353 = vmatprep.subr.bf16.mxu0 0
      %3354 = vmatpush1.bf16.msra.mxu0 %v3306
      %3355 = vmatprep.mubr.bf16.mxu0 %v3184
      %3356 = vmatmul.mubr.bf16.gmra.mrb[0].mxu0 %v1058
      %v3357 = vpop.f32.mrb[0].mxu0
      %v3358 = vadd.f32 %v3225, %v3357
      %v3359 = vpop.f32.mrb[0].mxu0
      %v3360 = vpop.f32.mrb[0].mxu0
      %v3361 = vadd.f32 %v3225, %v3360
      %v3362 = vpop.f32.mrb[0].mxu0
      %3363 = vmatprep.mubr.bf16.mxu0 %v3185
      %3364 = vmatmul.mubr.bf16.gmra.mrb[0].mxu0 %v1059
      %v3365 = vpop.f32.mrb[0].mxu0
      %v3366 = vadd.f32 %v3225, %v3365
      %v3367 = vpop.f32.mrb[0].mxu0
      %v3368 = vpop.f32.mrb[0].mxu0
      %v3369 = vadd.f32 %v3225, %v3368
      %v3370 = vpop.f32.mrb[0].mxu0
      %3371 = vdwg.mxu0
      %v3372 = vxor.u32 %v3358, 2147483648
      %v3373 = vxor.u32 %v3361, 2147483648
      %v3374 = vxor.u32 %v3366, 2147483648
      %v3375 = vxor.u32 %v3369, 2147483648
      %v3376 = vmul.f32 %v3372, 1.442695
      %v3377 = vpow.pop %v3376
      %v3378 = vmul.f32 %v3373, 1.442695
      %v3379 = vpow.pop %v3378
      %v3380 = vmul.f32 %v3374, 1.442695
      %v3381 = vpow.pop %v3380
      %v3382 = vmul.f32 %v3375, 1.442695
      %v3383 = vpow.pop %v3382
      %v3384 = vadd.f32 %v3377, 1.0
      %v3385 = vadd.f32 %v3379, 1.0
      %v3386 = vadd.f32 %v3381, 1.0
      %v3387 = vadd.f32 %v3383, 1.0
      %v3388 = vrcp.pop %v3384
      %v3389 = vmul.f32 1.0, %v3388
      %v3390 = vrcp.pop %v3385
      %v3391 = vmul.f32 1.0, %v3390
      %v3392 = vrcp.pop %v3386
      %v3393 = vmul.f32 1.0, %v3392
      %v3394 = vrcp.pop %v3387
      %v3395 = vmul.f32 1.0, %v3394
      %v3396 = vmul.f32 %v3358, %v3389
      %v3397 = vmul.f32 %v3361, %v3391
      %v3398 = vmul.f32 %v3366, %v3393
      %v3399 = vmul.f32 %v3369, %v3395
      %v3400 = vpack.c.bf16 %v3397, %v3396
      %v3401 = vpack.c.bf16 %v3399, %v3398
      %v3402 = vld [vmem:[%s804] sm:$0xf]
      %v3403 = vld [vmem:[%s804 + $0x4] sm:$0xf]
      %v3404 = vld [vmem:[%s804 + $0x8] sm:$0xf]
      %v3405 = vld [vmem:[%s804 + $0xc] sm:$0xf]
      %v3406 = vld [vmem:[%s804 + $0x10] sm:$0xf]
      %v3407 = vld [vmem:[%s804 + $0x14] sm:$0xf]
      %v3408 = vld [vmem:[%s804 + $0x18] sm:$0xf]
      %v3409 = vld [vmem:[%s804 + $0x1c] sm:$0xf]
      %v3410 = vld [vmem:[%s804 + $0x20] sm:$0xf]
      %v3411 = vld [vmem:[%s804 + $0x24] sm:$0xf]
      %v3412 = vld [vmem:[%s804 + $0x28] sm:$0xf]
      %v3413 = vld [vmem:[%s804 + $0x2c] sm:$0xf]
      %v3414 = vld [vmem:[%s804 + $0x30] sm:$0xf]
      %v3415 = vld [vmem:[%s804 + $0x34] sm:$0xf]
      %v3416 = vld [vmem:[%s804 + $0x38] sm:$0xf]
      %v3417 = vld [vmem:[%s804 + $0x3c] sm:$0xf]
      %v3418 = vld [vmem:[%s807] sm:$0x1]
      %v3420 = vlaneseq
      %v3421 = vshrl.u32 %v3420, 7
      %v3422 = vsub.s32 0, %v3421
      %v3423 = vrot.slane %v3418, %v3422
      %v3441 = vunpack.c.l.b16 %v3402
      %v3442 = vunpack.c.l.b16 %v3403
      %v3443 = vunpack.c.l.b16 %v3404
      %v3444 = vunpack.c.l.b16 %v3405
      %v3445 = vunpack.c.l.b16 %v3406
      %v3446 = vunpack.c.l.b16 %v3407
      %v3447 = vunpack.c.l.b16 %v3408
      %v3448 = vunpack.c.l.b16 %v3409
      %v3449 = vunpack.c.l.b16 %v3410
      %v3450 = vunpack.c.l.b16 %v3411
      %v3451 = vunpack.c.l.b16 %v3412
      %v3452 = vunpack.c.l.b16 %v3413
      %v3453 = vunpack.c.l.b16 %v3414
      %v3454 = vunpack.c.l.b16 %v3415
      %v3455 = vunpack.c.l.b16 %v3416
      %v3456 = vunpack.c.l.b16 %v3417
      %v3457 = vpack.c.b16 %v3442, %v3441
      %v3458 = vpack.c.b16 %v3444, %v3443
      %v3459 = vpack.c.b16 %v3446, %v3445
      %v3460 = vpack.c.b16 %v3448, %v3447
      %v3461 = vpack.c.b16 %v3450, %v3449
      %v3462 = vpack.c.b16 %v3452, %v3451
      %v3463 = vpack.c.b16 %v3454, %v3453
      %v3464 = vpack.c.b16 %v3456, %v3455
      %3473 = vmatprep.subr.bf16.mxu0 0
      %3474 = vmatpush1.bf16.msra.mxu0 %v3457
      %3475 = vmatprep.subr.bf16.mxu0 0
      %3476 = vmatpush1.bf16.msra.mxu0 %v3458
      %3477 = vmatprep.subr.bf16.mxu0 0
      %3478 = vmatpush1.bf16.msra.mxu0 %v3459
      %3479 = vmatprep.subr.bf16.mxu0 0
      %3480 = vmatpush1.bf16.msra.mxu0 %v3460
      %3481 = vmatprep.subr.bf16.mxu0 0
      %3482 = vmatpush1.bf16.msra.mxu0 %v3461
      %3483 = vmatprep.subr.bf16.mxu0 0
      %3484 = vmatpush1.bf16.msra.mxu0 %v3462
      %3485 = vmatprep.subr.bf16.mxu0 0
      %3486 = vmatpush1.bf16.msra.mxu0 %v3463
      %3487 = vmatprep.subr.bf16.mxu0 0
      %3488 = vmatpush1.bf16.msra.mxu0 %v3464
      %3489 = vmatprep.subr.bf16.mxu0 0
      %3490 = vmatpush1.bf16.msra.mxu0 0
      %3491 = vmatprep.subr.bf16.mxu0 0
      %3492 = vmatpush1.bf16.msra.mxu0 0
      %3493 = vmatprep.subr.bf16.mxu0 0
      %3494 = vmatpush1.bf16.msra.mxu0 0
      %3495 = vmatprep.subr.bf16.mxu0 0
      %3496 = vmatpush1.bf16.msra.mxu0 0
      %3497 = vmatprep.subr.bf16.mxu0 0
      %3498 = vmatpush1.bf16.msra.mxu0 0
      %3499 = vmatprep.subr.bf16.mxu0 0
      %3500 = vmatpush1.bf16.msra.mxu0 0
      %3501 = vmatprep.subr.bf16.mxu0 0
      %3502 = vmatpush1.bf16.msra.mxu0 0
      %3503 = vmatprep.subr.bf16.mxu0 0
      %3504 = vmatpush1.bf16.msra.mxu0 0
      %3505 = vmatprep.mubr.bf16.mxu0 0
      %3506 = vmatmul.mubr.bf16.gmra.mrb[0].mxu0 %v3400
      %v3507 = vpop.f32.mrb[0].mxu0
      %v3508 = vadd.f32 %v3423, %v3507
      %v3509 = vpop.f32.mrb[0].mxu0
      %v3510 = vpop.f32.mrb[0].mxu0
      %v3511 = vadd.f32 %v3423, %v3510
      %v3512 = vpop.f32.mrb[0].mxu0
      %3513 = vmatprep.mubr.bf16.mxu0 0
      %3514 = vmatmul.mubr.bf16.gmra.mrb[0].mxu0 %v3401
      %v3515 = vpop.f32.mrb[0].mxu0
      %v3516 = vadd.f32 %v3423, %v3515
      %v3517 = vpop.f32.mrb[0].mxu0
      %v3518 = vpop.f32.mrb[0].mxu0
      %v3519 = vadd.f32 %v3423, %v3518
      %v3520 = vpop.f32.mrb[0].mxu0
      %3521 = vdwg.mxu0
      %v3522 = vxor.u32 %v3508, 2147483648
      %v3523 = vxor.u32 %v3511, 2147483648
      %v3524 = vxor.u32 %v3516, 2147483648
      %v3525 = vxor.u32 %v3519, 2147483648
      %v3526 = vmul.f32 %v3522, 1.442695
      %v3527 = vpow.pop %v3526
      %v3528 = vmul.f32 %v3523, 1.442695
      %v3529 = vpow.pop %v3528
      %v3530 = vmul.f32 %v3524, 1.442695
      %v3531 = vpow.pop %v3530
      %v3532 = vmul.f32 %v3525, 1.442695
      %v3533 = vpow.pop %v3532
      %v3534 = vadd.f32 %v3527, 1.0
      %v3535 = vadd.f32 %v3529, 1.0
      %v3536 = vadd.f32 %v3531, 1.0
      %v3537 = vadd.f32 %v3533, 1.0
      %v3538 = vrcp.pop %v3534
      %v3539 = vmul.f32 1.0, %v3538
      %v3540 = vrcp.pop %v3535
      %v3541 = vmul.f32 1.0, %v3540
      %v3542 = vrcp.pop %v3536
      %v3543 = vmul.f32 1.0, %v3542
      %v3544 = vrcp.pop %v3537
      %v3545 = vmul.f32 1.0, %v3544
      %v3546 = vmul.f32 %v3508, %v3539
      %v3547 = vmul.f32 %v3511, %v3541
      %v3548 = vmul.f32 %v3516, %v3543
      %v3549 = vmul.f32 %v3519, %v3545
      %v3550 = vadd.f32 %v987, %v3546
      %v3551 = vadd.f32 %v988, %v3547
      %v3552 = vadd.f32 %v989, %v3548
      %v3553 = vadd.f32 %v990, %v3549
      %3554 = vst [vmem:[#allocation2] sm:$0xff] %v3550
      %3555 = vst [vmem:[#allocation2 + $0x8] sm:$0xff] %v3551
      %3556 = vst [vmem:[#allocation2 + $0x10] sm:$0xff] %v3552
      %3557 = vst [vmem:[#allocation2 + $0x18] sm:$0xff] %v3553
      %p3558 = scmp.eq.s32.totalorder %s34, 2
      // Predicated region
      $region97: #{projected_cspnet_forward.1} parent=91 // pred_check
        %p3559 = pneg %p3558
      $region98: #{projected_cspnet_forward.1} parent=91 // pred_check_branch
        %3561 = sbr.rel (%p3559) target = $region100
      $region99: #{projected_cspnet_forward.1} parent=91 // pred_region
        %v3562 = vld [vmem:[#allocation2] sm:$0xff]
        %v3563 = vld [vmem:[#allocation2 + $0x8] sm:$0xff]
        %v3564 = vld [vmem:[#allocation2 + $0x10] sm:$0xff]
        %v3565 = vld [vmem:[#allocation2 + $0x18] sm:$0xff]
        %3566 = vadd.xlane.f32.xlu0 %v3562
        %v3567 = vpop.xlane.xlu0 %3566
        %3568 = vadd.xlane.f32.xlu0 %v3563
        %v3569 = vpop.xlane.xlu0 %3568
        %3570 = vadd.xlane.f32.xlu0 %v3564
        %v3571 = vpop.xlane.xlu0 %3570
        %3572 = vadd.xlane.f32.xlu0 %v3565
        %v3573 = vpop.xlane.xlu0 %3572
        %v3574 = vmul.f32 %v3567, %v999
        %v3575 = vmul.f32 %v3569, %v999
        %v3576 = vmul.f32 %v3571, %v999
        %v3577 = vmul.f32 %v3573, %v999
        %v3578 = vsub.f32 %v3562, %v3574
        %v3579 = vsub.f32 %v3563, %v3575
        %v3580 = vsub.f32 %v3564, %v3576
        %v3581 = vsub.f32 %v3565, %v3577
        %v3582 = vmul.f32 %v3578, %v3578
        %v3583 = vmul.f32 %v3579, %v3579
        %v3584 = vmul.f32 %v3580, %v3580
        %v3585 = vmul.f32 %v3581, %v3581
        %3586 = vadd.xlane.f32.xlu0 %v3582
        %v3587 = vpop.xlane.xlu0 %3586
        %3588 = vadd.xlane.f32.xlu0 %v3583
        %v3589 = vpop.xlane.xlu0 %3588
        %3590 = vadd.xlane.f32.xlu0 %v3584
        %v3591 = vpop.xlane.xlu0 %3590
        %3592 = vadd.xlane.f32.xlu0 %v3585
        %v3593 = vpop.xlane.xlu0 %3592
        %v3594 = vmul.f32 %v3587, %v999
        %v3595 = vmul.f32 %v3589, %v999
        %v3596 = vmul.f32 %v3591, %v999
        %v3597 = vmul.f32 %v3593, %v999
        %v3598 = vadd.f32 %v3594, 1e-05
        %v3599 = vadd.f32 %v3595, 1e-05
        %v3600 = vadd.f32 %v3596, 1e-05
        %v3601 = vadd.f32 %v3597, 1e-05
        %v3602 = vrsqrt.pop %v3598
        %v3603 = vrsqrt.pop %v3599
        %v3604 = vrsqrt.pop %v3600
        %v3605 = vrsqrt.pop %v3601
        %v3606 = vmul.f32 %v3578, %v3602
        %v3607 = vmul.f32 %v3579, %v3603
        %v3608 = vmul.f32 %v3580, %v3604
        %v3609 = vmul.f32 %v3581, %v3605
        %v3610 = vld [vmem:[%s15] sm:$0x1]
        %v3612 = vlaneseq
        %v3613 = vshrl.u32 %v3612, 7
        %v3614 = vsub.s32 0, %v3613
        %v3615 = vrot.slane %v3610, %v3614
        %v3617 = vmul.f32 %v3606, %v3615
        %v3618 = vmul.f32 %v3607, %v3615
        %v3619 = vmul.f32 %v3608, %v3615
        %v3620 = vmul.f32 %v3609, %v3615
        %v3621 = vld [vmem:[%s16] sm:$0x1]
        %v3623 = vlaneseq
        %v3624 = vshrl.u32 %v3623, 7
        %v3625 = vsub.s32 0, %v3624
        %v3626 = vrot.slane %v3621, %v3625
        %v3628 = vadd.f32 %v3617, %v3626
        %v3629 = vadd.f32 %v3618, %v3626
        %v3630 = vadd.f32 %v3619, %v3626
        %v3631 = vadd.f32 %v3620, %v3626
        %v3632 = vld [vmem:[%s17] sm:$0xff]
        %v3633 = vld [vmem:[%s17 + $0x8] sm:$0xff]
        %v3634 = vld [vmem:[%s17 + $0x10] sm:$0xff]
        %v3635 = vld [vmem:[%s17 + $0x18] sm:$0xff]
        %v3636 = vld [vmem:[%s17 + $0x20] sm:$0xff]
        %v3637 = vld [vmem:[%s17 + $0x28] sm:$0xff]
        %v3638 = vld [vmem:[%s17 + $0x30] sm:$0xff]
        %v3639 = vld [vmem:[%s17 + $0x38] sm:$0xff]
        %v3640 = vld [vmem:[%s17 + $0x40] sm:$0xff]
        %v3641 = vld [vmem:[%s17 + $0x48] sm:$0xff]
        %v3642 = vld [vmem:[%s17 + $0x50] sm:$0xff]
        %v3643 = vld [vmem:[%s17 + $0x58] sm:$0xff]
        %v3644 = vld [vmem:[%s17 + $0x60] sm:$0xff]
        %v3645 = vld [vmem:[%s17 + $0x68] sm:$0xff]
        %v3646 = vld [vmem:[%s17 + $0x70] sm:$0xff]
        %v3647 = vld [vmem:[%s17 + $0x78] sm:$0xff]
        %3648 = vmatprep.subr.mxu0 0.0
        %3649 = vmatpush1.msra.mxu0 %v3632
        %3650 = vmatprep.subr.mxu0 0.0
        %3651 = vmatpush1.msra.mxu0 %v3633
        %3652 = vmatprep.subr.mxu0 0.0
        %3653 = vmatpush1.msra.mxu0 %v3634
        %3654 = vmatprep.subr.mxu0 0.0
        %3655 = vmatpush1.msra.mxu0 %v3635
        %3656 = vmatprep.subr.mxu0 0.0
        %3657 = vmatpush1.msra.mxu0 %v3636
        %3658 = vmatprep.subr.mxu0 0.0
        %3659 = vmatpush1.msra.mxu0 %v3637
        %3660 = vmatprep.subr.mxu0 0.0
        %3661 = vmatpush1.msra.mxu0 %v3638
        %3662 = vmatprep.subr.mxu0 0.0
        %3663 = vmatpush1.msra.mxu0 %v3639
        %3664 = vmatprep.subr.mxu0 0.0
        %3665 = vmatpush1.msra.mxu0 %v3640
        %3666 = vmatprep.subr.mxu0 0.0
        %3667 = vmatpush1.msra.mxu0 %v3641
        %3668 = vmatprep.subr.mxu0 0.0
        %3669 = vmatpush1.msra.mxu0 %v3642
        %3670 = vmatprep.subr.mxu0 0.0
        %3671 = vmatpush1.msra.mxu0 %v3643
        %3672 = vmatprep.subr.mxu0 0.0
        %3673 = vmatpush1.msra.mxu0 %v3644
        %3674 = vmatprep.subr.mxu0 0.0
        %3675 = vmatpush1.msra.mxu0 %v3645
        %3676 = vmatprep.subr.mxu0 0.0
        %3677 = vmatpush1.msra.mxu0 %v3646
        %3678 = vmatprep.subr.mxu0 0.0
        %3679 = vmatpush1.msra.mxu0 %v3647
        %3680 = vmatprep.subr.mxu0 0.0
        %3681 = vmatpush1.msra.mxu0 0.0
        %3682 = vmatprep.subr.mxu0 0.0
        %3683 = vmatpush1.msra.mxu0 0.0
        %3684 = vmatprep.subr.mxu0 0.0
        %3685 = vmatpush1.msra.mxu0 0.0
        %3686 = vmatprep.subr.mxu0 0.0
        %3687 = vmatpush1.msra.mxu0 0.0
        %3688 = vmatprep.subr.mxu0 0.0
        %3689 = vmatpush1.msra.mxu0 0.0
        %3690 = vmatprep.subr.mxu0 0.0
        %3691 = vmatpush1.msra.mxu0 0.0
        %3692 = vmatprep.subr.mxu0 0.0
        %3693 = vmatpush1.msra.mxu0 0.0
        %3694 = vmatprep.subr.mxu0 0.0
        %3695 = vmatpush1.msra.mxu0 0.0
        %3696 = vmatprep.subr.mxu0 0.0
        %3697 = vmatpush1.msra.mxu0 0.0
        %3698 = vmatprep.subr.mxu0 0.0
        %3699 = vmatpush1.msra.mxu0 0.0
        %3700 = vmatprep.subr.mxu0 0.0
        %3701 = vmatpush1.msra.mxu0 0.0
        %3702 = vmatprep.subr.mxu0 0.0
        %3703 = vmatpush1.msra.mxu0 0.0
        %3704 = vmatprep.subr.mxu0 0.0
        %3705 = vmatpush1.msra.mxu0 0.0
        %3706 = vmatprep.subr.mxu0 0.0
        %3707 = vmatpush1.msra.mxu0 0.0
        %3708 = vmatprep.subr.mxu0 0.0
        %3709 = vmatpush1.msra.mxu0 0.0
        %3710 = vmatprep.subr.mxu0 0.0
        %3711 = vmatpush1.msra.mxu0 0.0
        %3712 = vmatprep.mubr.f32.mxu0 0.0
        %3713 = vmatmul.mubr.f32.gmra.mrb[0].mxu0 %v3628
        %v3714 = vpop.f32.mrb[0].mxu0
        %v3715 = vadd.f32 0.0, %v3714
        %v3716 = vpop.f32.mrb[0].mxu0
        %3717 = vmatprep.mubr.f32.mxu0 0.0
        %3718 = vmatmul.mubr.f32.gmra.mrb[0].mxu0 %v3629
        %v3719 = vpop.f32.mrb[0].mxu0
        %v3720 = vadd.f32 0.0, %v3719
        %v3721 = vpop.f32.mrb[0].mxu0
        %3722 = vmatprep.mubr.f32.mxu0 0.0
        %3723 = vmatmul.mubr.f32.gmra.mrb[0].mxu0 %v3630
        %v3724 = vpop.f32.mrb[0].mxu0
        %v3725 = vadd.f32 0.0, %v3724
        %v3726 = vpop.f32.mrb[0].mxu0
        %3727 = vmatprep.mubr.f32.mxu0 0.0
        %3728 = vmatmul.mubr.f32.gmra.mrb[0].mxu0 %v3631
        %v3729 = vpop.f32.mrb[0].mxu0
        %v3730 = vadd.f32 0.0, %v3729
        %v3731 = vpop.f32.mrb[0].mxu0
        %3732 = vdwg.mxu0
        %3733 = vst [vmem:[%s812] sm:$0xff] %v3715
        %3734 = vst [vmem:[%s812 + $0x8] sm:$0xff] %v3720
        %3735 = vst [vmem:[%s812 + $0x10] sm:$0xff] %v3725
        %3736 = vst [vmem:[%s812 + $0x18] sm:$0xff] %v3730
      $region100: #{projected_cspnet_forward.1} parent=91 // pred_fallthru
        _
      %s3737 = smul.u32 4, %s33
      %p3738 = scmp.lt.s32.totalorder %s3737, 7
      %s3739 = scalar_select %p3738, %s3737, 7
      %s3740 = smul.addr %s3739, 8
      %s3741 = scalar_lea.vmem %s18, %s3740
      // Predicated region
      $region101: #{projected_cspnet_forward.1} parent=91 // pred_check
        %p3742 = pneg %p504
      $region102: #{projected_cspnet_forward.1} parent=91 // pred_check_branch
        %3744 = sbr.rel (%p3742) target = $region104
      $region103: #{projected_cspnet_forward.1} parent=91 // pred_region
        %s3745 = smul.u32 4, %s33
      $region104: #{projected_cspnet_forward.1} parent=91 // pred_fallthru
        _
    $region92: #{projected_cspnet_forward.1} parent=5 // pred_fallthru
      _
    %p3746 = scmp.le.s32.totalorder 2, %s24
    // Predicated region
    $region105: #{projected_cspnet_forward.1} parent=5 // pred_check
      %p3747 = pneg %p3746
    $region106: #{projected_cspnet_forward.1} parent=5 // pred_check_branch
      %3749 = sbr.rel (%p3747) target = $region108
    $region107: #{projected_cspnet_forward.1} parent=5 // pred_region
      %s3750 = ssub.s32 %s24, 2
      // Predicated region
      $region109: #{projected_cspnet_forward.1} parent=107 // pred_check
        %p3751 = pneg %p510
      $region110: #{projected_cspnet_forward.1} parent=107 // pred_check_branch
        %3753 = sbr.rel (%p3751) target = $region112
      $region111: #{projected_cspnet_forward.1} parent=107 // pred_region
        %s3754 = smul.u32 4, %s35
        %p3755 = scmp.lt.s32.totalorder %s3754, 7
        %s3756 = scalar_select %p3755, %s3754, 7
        %s3757 = smul.addr %s3756, 8
        %s3758 = scalar_lea.vmem %s18, %s3757
      $region112: #{projected_cspnet_forward.1} parent=107 // pred_fallthru
        _
    $region108: #{projected_cspnet_forward.1} parent=5 // pred_fallthru
      _
  $region6: #{projected_cspnet_forward.1} parent=0 // loop_footer
    %s28 = sadd.s32 1, %s24
  $region7: #{projected_cspnet_forward.1} parent=0 // loop_footer_branch
    %23 = sbr.rel target = $region3
  $region8: #{projected_cspnet_forward.1} parent=0 // loop_exit
    _

</llo_original>
